<compile_context>
chip_gen: v7x
topology: tpu7x:2x2x1
jax: 0.10.0
libtpu: 0.0.40
codegen_flags: <defaults>
</compile_context>

<pallas_src>
import math
from functools import partial

import jax
import jax.numpy as jnp
from jax.experimental import pallas as pl
from jax.experimental.pallas import tpu as pltpu

_VMEM = pl.BlockSpec(memory_space=pltpu.MemorySpace.VMEM)


def _round_up(n, m):
    return ((n + m - 1) // m) * m


# ----------------------------- Pallas kernel -----------------------------


def _gru_step(gi, h, wh, bhn):
    """One GRU step in the gate-padded layout (PyTorch gate order r, z, n).

    gi : (N, 3G) hoisted input projection + fused biases; each gate occupies
                 its own aligned G-lane tile.
    h  : (N, G)  carried hidden; real dims live in lanes [0:H]. Padded lanes
                 see only zero weight rows/cols and zero h0, so they stay
                 harmless and never feed real lanes or downstream matmuls.
    wh : (G, 3G) gate-padded recurrent weights (zero-padded rows/cols).
    bhn: (N, G)  recurrent n-gate bias, pre-broadcast outside the loop.
    """
    G = h.shape[-1]
    gh = jnp.dot(h, wh, preferred_element_type=jnp.float32)
    rz = jax.nn.sigmoid(gi[:, :2 * G] + gh[:, :2 * G])      # r and z in one op
    r = rz[:, :G]
    z = rz[:, G:]
    n = jnp.tanh(gi[:, 2 * G:] + r * (gh[:, 2 * G:] + bhn))
    return (1.0 - z) * n + z * h


def _build_kernel(W, S, Bp, Ep, L, G):
    G3 = 3 * G
    SBp = S * Bp

    def kernel(x_ref, h0_ref, wi_ref, wh_ref, b_ref, cw_ref, out_ref):
        # ---------------- word bi-GRU ----------------
        # One hoisted input projection for ALL timesteps and BOTH directions:
        # lanes [0:3G] = fwd gates, [3G:6G] = bwd gates (only last step used).
        gi_w = (jnp.dot(x_ref[...], wi_ref[0:Ep, :],
                        preferred_element_type=jnp.float32)
                + b_ref[0:1, :])                               # (W*SBp, 6G)

        wh_wf = wh_ref[0:G, :]
        bhn_wf = jnp.broadcast_to(b_ref[2:3, 0:G], (SBp, G))   # hoisted broadcast
        h = h0_ref[0:SBp, :]
        for t in range(W):                                     # unrolled recurrence
            h = _gru_step(gi_w[t * SBp:(t + 1) * SBp, 0:G3], h, wh_wf, bhn_wf)

        # bwd half of output[-1]: one bwd GRU step on x[W-1] from h0_bwd.
        bhn_wb = jnp.broadcast_to(b_ref[2:3, G:2 * G], (SBp, G))
        hb = _gru_step(gi_w[(W - 1) * SBp:W * SBp, G3:2 * G3],
                       h0_ref[SBp:2 * SBp, :], wh_ref[G:2 * G, :], bhn_wb)

        # ---------------- sentence bi-GRU ----------------
        # Input projection with row-split weights (no concat([h, hb])); fwd|bwd
        # sentence directions folded along lanes, all S steps in one pass.
        gi_s = (jnp.dot(h, wi_ref[Ep:Ep + G, :],
                        preferred_element_type=jnp.float32)
                + jnp.dot(hb, wi_ref[Ep + G:Ep + 2 * G, :],
                          preferred_element_type=jnp.float32)
                + b_ref[1:2, :])                               # (SBp, 6G)

        wh_sf = wh_ref[2 * G:3 * G, :]
        bhn_sf = jnp.broadcast_to(b_ref[2:3, 2 * G:3 * G], (Bp, G))
        hs = h0_ref[2 * SBp:2 * SBp + Bp, :]
        for s in range(S):                                     # unrolled recurrence
            hs = _gru_step(gi_s[s * Bp:(s + 1) * Bp, 0:G3], hs, wh_sf, bhn_sf)

        bhn_sb = jnp.broadcast_to(b_ref[2:3, 3 * G:4 * G], (Bp, G))
        hsb = _gru_step(gi_s[(S - 1) * Bp:S * Bp, G3:2 * G3],
                        h0_ref[2 * SBp + Bp:2 * SBp + 2 * Bp, :],
                        wh_ref[3 * G:4 * G, :], bhn_sb)

        # ---------------- classifier (row-split: no concat([hs, hsb])) ----------------
        out_ref[...] = (
            jnp.dot(hs, cw_ref[0:G, :], preferred_element_type=jnp.float32)
            + jnp.dot(hsb, cw_ref[G:2 * G, :], preferred_element_type=jnp.float32)
            + b_ref[3:4, 0:L])

    return kernel


# ----------------------------- param packing -----------------------------


def _padc(a, w):
    return jnp.pad(a, ((0, 0), (0, w - a.shape[-1])))


def _padr(a, r):
    return jnp.pad(a, ((0, r - a.shape[0]), (0, 0)))


def _pack_dir(wi, wh, bi, bh, G):
    """One GRU direction -> gate-padded stacked forms (gate stride G lanes).

    wi:(3,in,H) wh:(3,H,H) bi,bh:(3,1,H) ->
      wi_s (in,3G), wh_s (G,3G), b_in (1,3G) = [bi_r+bh_r | bi_z+bh_z | bi_n],
      bh_n (1,G) kept separate (it sits inside r * (...)).
    """
    stack = lambda ms: jnp.concatenate([_padc(m, G) for m in ms], axis=1)
    wi_s = stack([wi[0], wi[1], wi[2]])
    wh_s = _padr(stack([wh[0], wh[1], wh[2]]), G)
    b_in = stack([bi[0] + bh[0], bi[1] + bh[1], bi[2]])
    bh_n = _padc(bh[2], G)
    return wi_s, wh_s, b_in, bh_n


def _pack_params(params, E, Ep, H, L, G):
    H2 = 2 * H
    G3 = 3 * G

    wiwf, whwf, bwf, bnwf = _pack_dir(*params["word"][0:4], G)
    wiwb, whwb, bwb, bnwb = _pack_dir(*params["word"][4:8], G)
    wisf, whsf, bsf, bnsf = _pack_dir(*params["sent"][0:4], G)
    wisb, whsb, bsb, bnsb = _pack_dir(*params["sent"][4:8], G)

    # Word input projection: fwd | bwd gates folded along the lane dim.
    wi_word = _padr(jnp.concatenate([wiwf, wiwb], axis=1), Ep)            # (Ep, 6G)

    # Sentence input projection: fwd | bwd sentence dirs along lanes; rows split
    # into (acts on word-fwd h | acts on word-bwd h), each padded to G rows.
    wi_sent = jnp.concatenate([wisf, wisb], axis=1)                       # (2H, 6G)
    wi_sent_f = _padr(wi_sent[:H], G)                                     # (G, 6G)
    wi_sent_b = _padr(wi_sent[H:], G)                                     # (G, 6G)
    wi_slab = jnp.concatenate([wi_word, wi_sent_f, wi_sent_b], axis=0)    # (Ep+2G, 6G)

    wh_slab = jnp.concatenate([whwf, whwb, whsf, whsb], axis=0)           # (4G, 3G)

    # Bias slab rows: 0 = word b_in, 1 = sent b_in,
    #                 2 = [bh_n word-f | word-b | sent-f | sent-b], 3 = clf bias.
    b_word = jnp.concatenate([bwf, bwb], axis=1)
    b_sent = jnp.concatenate([bsf, bsb], axis=1)
    bhn_row = _padc(jnp.concatenate([bnwf, bnwb, bnsf, bnsb], axis=1), 2 * G3)
    cb_row = _padc(params["clf_b"], 2 * G3)
    b_slab = jnp.concatenate([b_word, b_sent, bhn_row, cb_row], axis=0)   # (4, 6G)

    # Classifier: row-split so the kernel needs no concat([hs, hsb]).
    cw = params["clf_w"]                                                  # (4H, L)
    cw_slab = jnp.concatenate([_padr(cw[:H2], G), _padr(cw[H2:], G)], axis=0)  # (2G, L)

    return wi_slab, wh_slab, b_slab, cw_slab


# ----------------------------- wrapper -----------------------------


@partial(jax.jit, static_argnames=("embed_dim", "hidden_dim"))
def word_sent_model_forward(tokens, word_hidden, sent_hidden, params,
                            embed_dim, hidden_dim):
    B, S, W = tokens.shape
    H = hidden_dim
    H2 = 2 * H
    E = embed_dim
    L = params["clf_w"].shape[1]

    G = max(128, _round_up(H2, 128))   # per-gate lane stride (lane-tile aligned)
    Bp = _round_up(B, 8)               # sublane-aligned batch
    Ep = _round_up(E, 8)
    SBp = S * Bp

    # Transpose the tiny int32 tokens BEFORE the embedding gather (cheaper than
    # transposing the (B,S,W,E) activation); pad batch with token 0 — padded
    # batch rows never mix with real rows and are sliced off the output.
    tok = jnp.pad(tokens.transpose(2, 1, 0), ((0, 0), (0, 0), (0, Bp - B)))
    x = params["embedding"][tok].reshape(W * SBp, E)      # row = w*SBp + s*Bp + b
    x = jnp.pad(x, ((0, 0), (0, Ep - E)))

    # Hidden-state slab: word h0 reordered from PyTorch's (b*S+s) row order to
    # (s*Bp+b), lane-padded to G; rows = [word fwd | word bwd | sent fwd | sent bwd].
    wh0 = word_hidden.reshape(2, B, S, H).transpose(0, 2, 1, 3)
    wh0 = jnp.pad(wh0, ((0, 0), (0, 0), (0, Bp - B), (0, G - H))).reshape(2, SBp, G)
    sh0 = jnp.pad(sent_hidden, ((0, 0), (0, Bp - B), (0, G - H2)))
    h0 = jnp.concatenate([wh0[0], wh0[1], sh0[0], sh0[1]], axis=0)   # (2*SBp+2*Bp, G)

    wi_slab, wh_slab, b_slab, cw_slab = _pack_params(params, E, Ep, H, L, G)

    out = pl.pallas_call(
        _build_kernel(W, S, Bp, Ep, L, G),
        out_shape=jax.ShapeDtypeStruct((Bp, L), jnp.float32),
        in_specs=[_VMEM] * 6,
        out_specs=_VMEM,
    )(x, h0, wi_slab, wh_slab, b_slab, cw_slab)
    return out[:B]


# ----------------------------- pure-JAX reference -----------------------------


def _gru_cell_ref(x_t, h, wi, wh, bi, bh):
    r = jax.nn.sigmoid(x_t @ wi[0] + bi[0] + h @ wh[0] + bh[0])
    z = jax.nn.sigmoid(x_t @ wi[1] + bi[1] + h @ wh[1] + bh[1])
    n = jnp.tanh(x_t @ wi[2] + bi[2] + r * (h @ wh[2] + bh[2]))
    return (1.0 - z) * n + z * h


def bigru_last_ref(x, h0f, h0b, p):
    wif, whf, bif, bhf, wib, whb, bib, bhb = p

    def step(h, x_t):
        return _gru_cell_ref(x_t, h, wif, whf, bif, bhf), None

    hf, _ = jax.lax.scan(step, h0f, x)
    # output[-1] bwd half == first step of the reverse scan (x[T-1] from h0_bwd)
    hb = _gru_cell_ref(x[-1], h0b, wib, whb, bib, bhb)
    return jnp.concatenate([hf, hb], axis=-1)


def word_sent_model_ref(tokens, word_hidden, sent_hidden, params,
                        embed_dim, hidden_dim):
    B, S, W = tokens.shape
    emb = params["embedding"][tokens.reshape(B, -1)]
    x = emb.reshape(B * S, W, embed_dim).transpose(1, 0, 2)
    word_out = bigru_last_ref(x, word_hidden[0], word_hidden[1], params["word"])
    sent_in = word_out.reshape(B, S, 2 * hidden_dim).transpose(1, 0, 2)
    sent_out = bigru_last_ref(sent_in, sent_hidden[0], sent_hidden[1], params["sent"])
    return sent_out @ params["clf_w"] + params["clf_b"]


# ----------------------------- param init -----------------------------


def init_gru_params(key, in_dim, hidden_dim):
    k = 1.0 / math.sqrt(hidden_dim)
    keys = jax.random.split(key, 8)
    u = lambda kk, shape: jax.random.uniform(kk, shape, jnp.float32, -k, k)
    wif = u(keys[0], (3, in_dim, hidden_dim))
    whf = u(keys[1], (3, hidden_dim, hidden_dim))
    bif = u(keys[2], (3, 1, hidden_dim))
    bhf = u(keys[3], (3, 1, hidden_dim))
    wib = u(keys[4], (3, in_dim, hidden_dim))
    whb = u(keys[5], (3, hidden_dim, hidden_dim))
    bib = u(keys[6], (3, 1, hidden_dim))
    bhb = u(keys[7], (3, 1, hidden_dim))
    return (wif, whf, bif, bhf, wib, whb, bib, bhb)


# ----------------------------- main -----------------------------

if __name__ == "__main__":
    # Small shapes consistent with the module's forward:
    B, S, W = 2, 3, 5          # batch, sentences per doc, words per sentence
    E, H = 32, 32              # embed_dim, hidden_dim
    VOCAB, NUM_LABELS = 50, 4  # vocabulary_size, len(label_map)

    root = jax.random.PRNGKey(0)
    k_emb, k_word, k_sent, k_clf, k_tok = jax.random.split(root, 5)

    params = {
        "embedding": jax.random.uniform(k_emb, (VOCAB, E), jnp.float32, -0.1, 0.1),
        "word": init_gru_params(k_word, E, H),          # GRU(E,   H, bidirectional)
        "sent": init_gru_params(k_sent, 2 * H, 2 * H),  # GRU(2H, 2H, bidirectional)
        "clf_w": jax.random.uniform(k_clf, (4 * H, NUM_LABELS), jnp.float32,
                                    -1.0 / math.sqrt(4 * H), 1.0 / math.sqrt(4 * H)),
        "clf_b": jnp.zeros((1, NUM_LABELS), jnp.float32),
    }

    tokens = jax.random.randint(k_tok, (B, S, W), 0, VOCAB, dtype=jnp.int32)
    word_hidden = jnp.zeros((2, B * S, H), jnp.float32)   # WordModel.init_hidden(B*S)
    sent_hidden = jnp.zeros((2, B, 2 * H), jnp.float32)   # SentModel.init_hidden()
    # length_x is unused by the reference forward; omitted.

    logits = word_sent_model_forward(tokens, word_hidden, sent_hidden, params,
                                     embed_dim=E, hidden_dim=H)
    logits = jax.block_until_ready(logits)

    ref = word_sent_model_ref(tokens, word_hidden, sent_hidden, params, E, H)
    assert logits.shape == (B, NUM_LABELS)
    assert bool(jnp.all(jnp.isfinite(logits)))
    assert bool(jnp.allclose(logits, ref, atol=2e-4, rtol=2e-4))

    print("KERNEL_OK")
</pallas_src>

<mosaic_0001>
module attributes {stable_mosaic.version = 11 : i64} {
  func.func @kernel(%arg0: memref<120x32xf32, #tpu.memory_space<vmem>>, %arg1: memref<64x128xf32, #tpu.memory_space<vmem>>, %arg2: memref<288x768xf32, #tpu.memory_space<vmem>>, %arg3: memref<512x384xf32, #tpu.memory_space<vmem>>, %arg4: memref<4x768xf32, #tpu.memory_space<vmem>>, %arg5: memref<256x4xf32, #tpu.memory_space<vmem>>, %arg6: memref<8x4xf32, #tpu.memory_space<vmem>>) attributes {dimension_semantics = [], scalar_prefetch = 0 : i64, scratch_operands = 0 : i64, tpu.core_type = #tpu.core_type<tc>} {
    %c0 = arith.constant 0 : index
    %c0_0 = arith.constant 0 : index
    %0 = vector.load %arg0[%c0, %c0_0] : memref<120x32xf32, #tpu.memory_space<vmem>>, vector<120x32xf32>
    %c0_1 = arith.constant 0 : index
    %c0_2 = arith.constant 0 : index
    %1 = vector.load %arg2[%c0_1, %c0_2] : memref<288x768xf32, #tpu.memory_space<vmem>>, vector<32x768xf32>
    %cst = arith.constant dense<0.000000e+00> : vector<120x768xf32>
    %2 = tpu.matmul %0, %1, %cst {dimension_numbers = #tpu.dot_dimension_numbers<[1], [0], [0], [1], [0, 0, 1, 1], [], []>} : vector<120x32xf32>, vector<32x768xf32>, vector<120x768xf32> -> vector<120x768xf32>
    %c0_3 = arith.constant 0 : index
    %c0_4 = arith.constant 0 : index
    %3 = vector.load %arg4[%c0_3, %c0_4] : memref<4x768xf32, #tpu.memory_space<vmem>>, vector<1x768xf32>
    %4 = vector.broadcast %3 : vector<1x768xf32> to vector<120x768xf32>
    %5 = arith.addf %2, %4 : vector<120x768xf32>
    %c0_5 = arith.constant 0 : index
    %c0_6 = arith.constant 0 : index
    %6 = vector.load %arg3[%c0_5, %c0_6] : memref<512x384xf32, #tpu.memory_space<vmem>>, vector<128x384xf32>
    %c2 = arith.constant 2 : index
    %c0_7 = arith.constant 0 : index
    %7 = vector.load %arg4[%c2, %c0_7] : memref<4x768xf32, #tpu.memory_space<vmem>>, vector<1x128xf32>
    %8 = vector.shape_cast %7 : vector<1x128xf32> to vector<1x128xf32>
    %9 = vector.broadcast %8 : vector<1x128xf32> to vector<24x128xf32>
    %c0_8 = arith.constant 0 : index
    %c0_9 = arith.constant 0 : index
    %10 = vector.load %arg1[%c0_8, %c0_9] : memref<64x128xf32, #tpu.memory_space<vmem>>, vector<24x128xf32>
    %11 = vector.extract_strided_slice %5 {offsets = [0, 0], sizes = [24, 384], strides = [1, 1]} : vector<120x768xf32> to vector<24x384xf32>
    %cst_10 = arith.constant dense<0.000000e+00> : vector<24x384xf32>
    %12 = tpu.matmul %10, %6, %cst_10 {dimension_numbers = #tpu.dot_dimension_numbers<[1], [0], [0], [1], [0, 0, 1, 1], [], []>} : vector<24x128xf32>, vector<128x384xf32>, vector<24x384xf32> -> vector<24x384xf32>
    %13 = vector.extract_strided_slice %11 {offsets = [0, 0], sizes = [24, 256], strides = [1, 1]} : vector<24x384xf32> to vector<24x256xf32>
    %14 = vector.extract_strided_slice %12 {offsets = [0, 0], sizes = [24, 256], strides = [1, 1]} : vector<24x384xf32> to vector<24x256xf32>
    %15 = arith.addf %13, %14 : vector<24x256xf32>
    %16 = arith.negf %15 : vector<24x256xf32>
    %17 = math.exp %16 : vector<24x256xf32>
    %cst_11 = arith.constant 1.000000e+00 : f32
    %18 = vector.broadcast %cst_11 : f32 to vector<24x256xf32>
    %19 = arith.addf %18, %17 : vector<24x256xf32>
    %20 = arith.divf %18, %19 : vector<24x256xf32>
    %21 = vector.extract_strided_slice %20 {offsets = [0, 0], sizes = [24, 128], strides = [1, 1]} : vector<24x256xf32> to vector<24x128xf32>
    %22 = vector.extract_strided_slice %20 {offsets = [0, 128], sizes = [24, 128], strides = [1, 1]} : vector<24x256xf32> to vector<24x128xf32>
    %23 = vector.extract_strided_slice %11 {offsets = [0, 256], sizes = [24, 128], strides = [1, 1]} : vector<24x384xf32> to vector<24x128xf32>
    %24 = vector.extract_strided_slice %12 {offsets = [0, 256], sizes = [24, 128], strides = [1, 1]} : vector<24x384xf32> to vector<24x128xf32>
    %25 = arith.addf %24, %9 : vector<24x128xf32>
    %26 = arith.mulf %21, %25 : vector<24x128xf32>
    %27 = arith.addf %23, %26 : vector<24x128xf32>
    %28 = math.tanh %27 : vector<24x128xf32>
    %cst_12 = arith.constant 1.000000e+00 : f32
    %29 = vector.broadcast %cst_12 : f32 to vector<24x128xf32>
    %30 = arith.subf %29, %22 : vector<24x128xf32>
    %31 = arith.mulf %30, %28 : vector<24x128xf32>
    %32 = arith.mulf %22, %10 : vector<24x128xf32>
    %33 = arith.addf %31, %32 : vector<24x128xf32>
    %34 = vector.extract_strided_slice %5 {offsets = [24, 0], sizes = [24, 384], strides = [1, 1]} : vector<120x768xf32> to vector<24x384xf32>
    %cst_13 = arith.constant dense<0.000000e+00> : vector<24x384xf32>
    %35 = tpu.matmul %33, %6, %cst_13 {dimension_numbers = #tpu.dot_dimension_numbers<[1], [0], [0], [1], [0, 0, 1, 1], [], []>} : vector<24x128xf32>, vector<128x384xf32>, vector<24x384xf32> -> vector<24x384xf32>
    %36 = vector.extract_strided_slice %34 {offsets = [0, 0], sizes = [24, 256], strides = [1, 1]} : vector<24x384xf32> to vector<24x256xf32>
    %37 = vector.extract_strided_slice %35 {offsets = [0, 0], sizes = [24, 256], strides = [1, 1]} : vector<24x384xf32> to vector<24x256xf32>
    %38 = arith.addf %36, %37 : vector<24x256xf32>
    %39 = arith.negf %38 : vector<24x256xf32>
    %40 = math.exp %39 : vector<24x256xf32>
    %cst_14 = arith.constant 1.000000e+00 : f32
    %41 = vector.broadcast %cst_14 : f32 to vector<24x256xf32>
    %42 = arith.addf %41, %40 : vector<24x256xf32>
    %43 = arith.divf %41, %42 : vector<24x256xf32>
    %44 = vector.extract_strided_slice %43 {offsets = [0, 0], sizes = [24, 128], strides = [1, 1]} : vector<24x256xf32> to vector<24x128xf32>
    %45 = vector.extract_strided_slice %43 {offsets = [0, 128], sizes = [24, 128], strides = [1, 1]} : vector<24x256xf32> to vector<24x128xf32>
    %46 = vector.extract_strided_slice %34 {offsets = [0, 256], sizes = [24, 128], strides = [1, 1]} : vector<24x384xf32> to vector<24x128xf32>
    %47 = vector.extract_strided_slice %35 {offsets = [0, 256], sizes = [24, 128], strides = [1, 1]} : vector<24x384xf32> to vector<24x128xf32>
    %48 = arith.addf %47, %9 : vector<24x128xf32>
    %49 = arith.mulf %44, %48 : vector<24x128xf32>
    %50 = arith.addf %46, %49 : vector<24x128xf32>
    %51 = math.tanh %50 : vector<24x128xf32>
    %cst_15 = arith.constant 1.000000e+00 : f32
    %52 = vector.broadcast %cst_15 : f32 to vector<24x128xf32>
    %53 = arith.subf %52, %45 : vector<24x128xf32>
    %54 = arith.mulf %53, %51 : vector<24x128xf32>
    %55 = arith.mulf %45, %33 : vector<24x128xf32>
    %56 = arith.addf %54, %55 : vector<24x128xf32>
    %57 = vector.extract_strided_slice %5 {offsets = [48, 0], sizes = [24, 384], strides = [1, 1]} : vector<120x768xf32> to vector<24x384xf32>
    %cst_16 = arith.constant dense<0.000000e+00> : vector<24x384xf32>
    %58 = tpu.matmul %56, %6, %cst_16 {dimension_numbers = #tpu.dot_dimension_numbers<[1], [0], [0], [1], [0, 0, 1, 1], [], []>} : vector<24x128xf32>, vector<128x384xf32>, vector<24x384xf32> -> vector<24x384xf32>
    %59 = vector.extract_strided_slice %57 {offsets = [0, 0], sizes = [24, 256], strides = [1, 1]} : vector<24x384xf32> to vector<24x256xf32>
    %60 = vector.extract_strided_slice %58 {offsets = [0, 0], sizes = [24, 256], strides = [1, 1]} : vector<24x384xf32> to vector<24x256xf32>
    %61 = arith.addf %59, %60 : vector<24x256xf32>
    %62 = arith.negf %61 : vector<24x256xf32>
    %63 = math.exp %62 : vector<24x256xf32>
    %cst_17 = arith.constant 1.000000e+00 : f32
    %64 = vector.broadcast %cst_17 : f32 to vector<24x256xf32>
    %65 = arith.addf %64, %63 : vector<24x256xf32>
    %66 = arith.divf %64, %65 : vector<24x256xf32>
    %67 = vector.extract_strided_slice %66 {offsets = [0, 0], sizes = [24, 128], strides = [1, 1]} : vector<24x256xf32> to vector<24x128xf32>
    %68 = vector.extract_strided_slice %66 {offsets = [0, 128], sizes = [24, 128], strides = [1, 1]} : vector<24x256xf32> to vector<24x128xf32>
    %69 = vector.extract_strided_slice %57 {offsets = [0, 256], sizes = [24, 128], strides = [1, 1]} : vector<24x384xf32> to vector<24x128xf32>
    %70 = vector.extract_strided_slice %58 {offsets = [0, 256], sizes = [24, 128], strides = [1, 1]} : vector<24x384xf32> to vector<24x128xf32>
    %71 = arith.addf %70, %9 : vector<24x128xf32>
    %72 = arith.mulf %67, %71 : vector<24x128xf32>
    %73 = arith.addf %69, %72 : vector<24x128xf32>
    %74 = math.tanh %73 : vector<24x128xf32>
    %cst_18 = arith.constant 1.000000e+00 : f32
    %75 = vector.broadcast %cst_18 : f32 to vector<24x128xf32>
    %76 = arith.subf %75, %68 : vector<24x128xf32>
    %77 = arith.mulf %76, %74 : vector<24x128xf32>
    %78 = arith.mulf %68, %56 : vector<24x128xf32>
    %79 = arith.addf %77, %78 : vector<24x128xf32>
    %80 = vector.extract_strided_slice %5 {offsets = [72, 0], sizes = [24, 384], strides = [1, 1]} : vector<120x768xf32> to vector<24x384xf32>
    %cst_19 = arith.constant dense<0.000000e+00> : vector<24x384xf32>
    %81 = tpu.matmul %79, %6, %cst_19 {dimension_numbers = #tpu.dot_dimension_numbers<[1], [0], [0], [1], [0, 0, 1, 1], [], []>} : vector<24x128xf32>, vector<128x384xf32>, vector<24x384xf32> -> vector<24x384xf32>
    %82 = vector.extract_strided_slice %80 {offsets = [0, 0], sizes = [24, 256], strides = [1, 1]} : vector<24x384xf32> to vector<24x256xf32>
    %83 = vector.extract_strided_slice %81 {offsets = [0, 0], sizes = [24, 256], strides = [1, 1]} : vector<24x384xf32> to vector<24x256xf32>
    %84 = arith.addf %82, %83 : vector<24x256xf32>
    %85 = arith.negf %84 : vector<24x256xf32>
    %86 = math.exp %85 : vector<24x256xf32>
    %cst_20 = arith.constant 1.000000e+00 : f32
    %87 = vector.broadcast %cst_20 : f32 to vector<24x256xf32>
    %88 = arith.addf %87, %86 : vector<24x256xf32>
    %89 = arith.divf %87, %88 : vector<24x256xf32>
    %90 = vector.extract_strided_slice %89 {offsets = [0, 0], sizes = [24, 128], strides = [1, 1]} : vector<24x256xf32> to vector<24x128xf32>
    %91 = vector.extract_strided_slice %89 {offsets = [0, 128], sizes = [24, 128], strides = [1, 1]} : vector<24x256xf32> to vector<24x128xf32>
    %92 = vector.extract_strided_slice %80 {offsets = [0, 256], sizes = [24, 128], strides = [1, 1]} : vector<24x384xf32> to vector<24x128xf32>
    %93 = vector.extract_strided_slice %81 {offsets = [0, 256], sizes = [24, 128], strides = [1, 1]} : vector<24x384xf32> to vector<24x128xf32>
    %94 = arith.addf %93, %9 : vector<24x128xf32>
    %95 = arith.mulf %90, %94 : vector<24x128xf32>
    %96 = arith.addf %92, %95 : vector<24x128xf32>
    %97 = math.tanh %96 : vector<24x128xf32>
    %cst_21 = arith.constant 1.000000e+00 : f32
    %98 = vector.broadcast %cst_21 : f32 to vector<24x128xf32>
    %99 = arith.subf %98, %91 : vector<24x128xf32>
    %100 = arith.mulf %99, %97 : vector<24x128xf32>
    %101 = arith.mulf %91, %79 : vector<24x128xf32>
    %102 = arith.addf %100, %101 : vector<24x128xf32>
    %103 = vector.extract_strided_slice %5 {offsets = [96, 0], sizes = [24, 384], strides = [1, 1]} : vector<120x768xf32> to vector<24x384xf32>
    %cst_22 = arith.constant dense<0.000000e+00> : vector<24x384xf32>
    %104 = tpu.matmul %102, %6, %cst_22 {dimension_numbers = #tpu.dot_dimension_numbers<[1], [0], [0], [1], [0, 0, 1, 1], [], []>} : vector<24x128xf32>, vector<128x384xf32>, vector<24x384xf32> -> vector<24x384xf32>
    %105 = vector.extract_strided_slice %103 {offsets = [0, 0], sizes = [24, 256], strides = [1, 1]} : vector<24x384xf32> to vector<24x256xf32>
    %106 = vector.extract_strided_slice %104 {offsets = [0, 0], sizes = [24, 256], strides = [1, 1]} : vector<24x384xf32> to vector<24x256xf32>
    %107 = arith.addf %105, %106 : vector<24x256xf32>
    %108 = arith.negf %107 : vector<24x256xf32>
    %109 = math.exp %108 : vector<24x256xf32>
    %cst_23 = arith.constant 1.000000e+00 : f32
    %110 = vector.broadcast %cst_23 : f32 to vector<24x256xf32>
    %111 = arith.addf %110, %109 : vector<24x256xf32>
    %112 = arith.divf %110, %111 : vector<24x256xf32>
    %113 = vector.extract_strided_slice %112 {offsets = [0, 0], sizes = [24, 128], strides = [1, 1]} : vector<24x256xf32> to vector<24x128xf32>
    %114 = vector.extract_strided_slice %112 {offsets = [0, 128], sizes = [24, 128], strides = [1, 1]} : vector<24x256xf32> to vector<24x128xf32>
    %115 = vector.extract_strided_slice %103 {offsets = [0, 256], sizes = [24, 128], strides = [1, 1]} : vector<24x384xf32> to vector<24x128xf32>
    %116 = vector.extract_strided_slice %104 {offsets = [0, 256], sizes = [24, 128], strides = [1, 1]} : vector<24x384xf32> to vector<24x128xf32>
    %117 = arith.addf %116, %9 : vector<24x128xf32>
    %118 = arith.mulf %113, %117 : vector<24x128xf32>
    %119 = arith.addf %115, %118 : vector<24x128xf32>
    %120 = math.tanh %119 : vector<24x128xf32>
    %cst_24 = arith.constant 1.000000e+00 : f32
    %121 = vector.broadcast %cst_24 : f32 to vector<24x128xf32>
    %122 = arith.subf %121, %114 : vector<24x128xf32>
    %123 = arith.mulf %122, %120 : vector<24x128xf32>
    %124 = arith.mulf %114, %102 : vector<24x128xf32>
    %125 = arith.addf %123, %124 : vector<24x128xf32>
    %c2_25 = arith.constant 2 : index
    %c128 = arith.constant 128 : index
    %126 = vector.load %arg4[%c2_25, %c128] : memref<4x768xf32, #tpu.memory_space<vmem>>, vector<1x128xf32>
    %127 = vector.shape_cast %126 : vector<1x128xf32> to vector<1x128xf32>
    %128 = vector.broadcast %127 : vector<1x128xf32> to vector<24x128xf32>
    %129 = vector.extract_strided_slice %5 {offsets = [96, 384], sizes = [24, 384], strides = [1, 1]} : vector<120x768xf32> to vector<24x384xf32>
    %c24 = arith.constant 24 : index
    %c0_26 = arith.constant 0 : index
    %130 = vector.load %arg1[%c24, %c0_26] : memref<64x128xf32, #tpu.memory_space<vmem>>, vector<24x128xf32>
    %c128_27 = arith.constant 128 : index
    %c0_28 = arith.constant 0 : index
    %131 = vector.load %arg3[%c128_27, %c0_28] : memref<512x384xf32, #tpu.memory_space<vmem>>, vector<128x384xf32>
    %cst_29 = arith.constant dense<0.000000e+00> : vector<24x384xf32>
    %132 = tpu.matmul %130, %131, %cst_29 {dimension_numbers = #tpu.dot_dimension_numbers<[1], [0], [0], [1], [0, 0, 1, 1], [], []>} : vector<24x128xf32>, vector<128x384xf32>, vector<24x384xf32> -> vector<24x384xf32>
    %133 = vector.extract_strided_slice %129 {offsets = [0, 0], sizes = [24, 256], strides = [1, 1]} : vector<24x384xf32> to vector<24x256xf32>
    %134 = vector.extract_strided_slice %132 {offsets = [0, 0], sizes = [24, 256], strides = [1, 1]} : vector<24x384xf32> to vector<24x256xf32>
    %135 = arith.addf %133, %134 : vector<24x256xf32>
    %136 = arith.negf %135 : vector<24x256xf32>
    %137 = math.exp %136 : vector<24x256xf32>
    %cst_30 = arith.constant 1.000000e+00 : f32
    %138 = vector.broadcast %cst_30 : f32 to vector<24x256xf32>
    %139 = arith.addf %138, %137 : vector<24x256xf32>
    %140 = arith.divf %138, %139 : vector<24x256xf32>
    %141 = vector.extract_strided_slice %140 {offsets = [0, 0], sizes = [24, 128], strides = [1, 1]} : vector<24x256xf32> to vector<24x128xf32>
    %142 = vector.extract_strided_slice %140 {offsets = [0, 128], sizes = [24, 128], strides = [1, 1]} : vector<24x256xf32> to vector<24x128xf32>
    %143 = vector.extract_strided_slice %129 {offsets = [0, 256], sizes = [24, 128], strides = [1, 1]} : vector<24x384xf32> to vector<24x128xf32>
    %144 = vector.extract_strided_slice %132 {offsets = [0, 256], sizes = [24, 128], strides = [1, 1]} : vector<24x384xf32> to vector<24x128xf32>
    %145 = arith.addf %144, %128 : vector<24x128xf32>
    %146 = arith.mulf %141, %145 : vector<24x128xf32>
    %147 = arith.addf %143, %146 : vector<24x128xf32>
    %148 = math.tanh %147 : vector<24x128xf32>
    %cst_31 = arith.constant 1.000000e+00 : f32
    %149 = vector.broadcast %cst_31 : f32 to vector<24x128xf32>
    %150 = arith.subf %149, %142 : vector<24x128xf32>
    %151 = arith.mulf %150, %148 : vector<24x128xf32>
    %152 = arith.mulf %142, %130 : vector<24x128xf32>
    %153 = arith.addf %151, %152 : vector<24x128xf32>
    %c32 = arith.constant 32 : index
    %c0_32 = arith.constant 0 : index
    %154 = vector.load %arg2[%c32, %c0_32] : memref<288x768xf32, #tpu.memory_space<vmem>>, vector<128x768xf32>
    %cst_33 = arith.constant dense<0.000000e+00> : vector<24x768xf32>
    %155 = tpu.matmul %125, %154, %cst_33 {dimension_numbers = #tpu.dot_dimension_numbers<[1], [0], [0], [1], [0, 0, 1, 1], [], []>} : vector<24x128xf32>, vector<128x768xf32>, vector<24x768xf32> -> vector<24x768xf32>
    %c160 = arith.constant 160 : index
    %c0_34 = arith.constant 0 : index
    %156 = vector.load %arg2[%c160, %c0_34] : memref<288x768xf32, #tpu.memory_space<vmem>>, vector<128x768xf32>
    %cst_35 = arith.constant dense<0.000000e+00> : vector<24x768xf32>
    %157 = tpu.matmul %153, %156, %cst_35 {dimension_numbers = #tpu.dot_dimension_numbers<[1], [0], [0], [1], [0, 0, 1, 1], [], []>} : vector<24x128xf32>, vector<128x768xf32>, vector<24x768xf32> -> vector<24x768xf32>
    %158 = arith.addf %155, %157 : vector<24x768xf32>
    %c1 = arith.constant 1 : index
    %c0_36 = arith.constant 0 : index
    %159 = vector.load %arg4[%c1, %c0_36] : memref<4x768xf32, #tpu.memory_space<vmem>>, vector<1x768xf32>
    %160 = vector.broadcast %159 : vector<1x768xf32> to vector<24x768xf32>
    %161 = arith.addf %158, %160 : vector<24x768xf32>
    %c256 = arith.constant 256 : index
    %c0_37 = arith.constant 0 : index
    %162 = vector.load %arg3[%c256, %c0_37] : memref<512x384xf32, #tpu.memory_space<vmem>>, vector<128x384xf32>
    %c2_38 = arith.constant 2 : index
    %c256_39 = arith.constant 256 : index
    %163 = vector.load %arg4[%c2_38, %c256_39] : memref<4x768xf32, #tpu.memory_space<vmem>>, vector<1x128xf32>
    %164 = vector.shape_cast %163 : vector<1x128xf32> to vector<1x128xf32>
    %165 = vector.broadcast %164 : vector<1x128xf32> to vector<8x128xf32>
    %c48 = arith.constant 48 : index
    %c0_40 = arith.constant 0 : index
    %166 = vector.load %arg1[%c48, %c0_40] : memref<64x128xf32, #tpu.memory_space<vmem>>, vector<8x128xf32>
    %167 = vector.extract_strided_slice %161 {offsets = [0, 0], sizes = [8, 384], strides = [1, 1]} : vector<24x768xf32> to vector<8x384xf32>
    %cst_41 = arith.constant dense<0.000000e+00> : vector<8x384xf32>
    %168 = tpu.matmul %166, %162, %cst_41 {dimension_numbers = #tpu.dot_dimension_numbers<[1], [0], [0], [1], [0, 0, 1, 1], [], []>} : vector<8x128xf32>, vector<128x384xf32>, vector<8x384xf32> -> vector<8x384xf32>
    %169 = vector.extract_strided_slice %167 {offsets = [0, 0], sizes = [8, 256], strides = [1, 1]} : vector<8x384xf32> to vector<8x256xf32>
    %170 = vector.extract_strided_slice %168 {offsets = [0, 0], sizes = [8, 256], strides = [1, 1]} : vector<8x384xf32> to vector<8x256xf32>
    %171 = arith.addf %169, %170 : vector<8x256xf32>
    %172 = arith.negf %171 : vector<8x256xf32>
    %173 = math.exp %172 : vector<8x256xf32>
    %cst_42 = arith.constant 1.000000e+00 : f32
    %174 = vector.broadcast %cst_42 : f32 to vector<8x256xf32>
    %175 = arith.addf %174, %173 : vector<8x256xf32>
    %176 = arith.divf %174, %175 : vector<8x256xf32>
    %177 = vector.extract_strided_slice %176 {offsets = [0, 0], sizes = [8, 128], strides = [1, 1]} : vector<8x256xf32> to vector<8x128xf32>
    %178 = vector.extract_strided_slice %176 {offsets = [0, 128], sizes = [8, 128], strides = [1, 1]} : vector<8x256xf32> to vector<8x128xf32>
    %179 = vector.extract_strided_slice %167 {offsets = [0, 256], sizes = [8, 128], strides = [1, 1]} : vector<8x384xf32> to vector<8x128xf32>
    %180 = vector.extract_strided_slice %168 {offsets = [0, 256], sizes = [8, 128], strides = [1, 1]} : vector<8x384xf32> to vector<8x128xf32>
    %181 = arith.addf %180, %165 : vector<8x128xf32>
    %182 = arith.mulf %177, %181 : vector<8x128xf32>
    %183 = arith.addf %179, %182 : vector<8x128xf32>
    %184 = math.tanh %183 : vector<8x128xf32>
    %cst_43 = arith.constant 1.000000e+00 : f32
    %185 = vector.broadcast %cst_43 : f32 to vector<8x128xf32>
    %186 = arith.subf %185, %178 : vector<8x128xf32>
    %187 = arith.mulf %186, %184 : vector<8x128xf32>
    %188 = arith.mulf %178, %166 : vector<8x128xf32>
    %189 = arith.addf %187, %188 : vector<8x128xf32>
    %190 = vector.extract_strided_slice %161 {offsets = [8, 0], sizes = [8, 384], strides = [1, 1]} : vector<24x768xf32> to vector<8x384xf32>
    %cst_44 = arith.constant dense<0.000000e+00> : vector<8x384xf32>
    %191 = tpu.matmul %189, %162, %cst_44 {dimension_numbers = #tpu.dot_dimension_numbers<[1], [0], [0], [1], [0, 0, 1, 1], [], []>} : vector<8x128xf32>, vector<128x384xf32>, vector<8x384xf32> -> vector<8x384xf32>
    %192 = vector.extract_strided_slice %190 {offsets = [0, 0], sizes = [8, 256], strides = [1, 1]} : vector<8x384xf32> to vector<8x256xf32>
    %193 = vector.extract_strided_slice %191 {offsets = [0, 0], sizes = [8, 256], strides = [1, 1]} : vector<8x384xf32> to vector<8x256xf32>
    %194 = arith.addf %192, %193 : vector<8x256xf32>
    %195 = arith.negf %194 : vector<8x256xf32>
    %196 = math.exp %195 : vector<8x256xf32>
    %cst_45 = arith.constant 1.000000e+00 : f32
    %197 = vector.broadcast %cst_45 : f32 to vector<8x256xf32>
    %198 = arith.addf %197, %196 : vector<8x256xf32>
    %199 = arith.divf %197, %198 : vector<8x256xf32>
    %200 = vector.extract_strided_slice %199 {offsets = [0, 0], sizes = [8, 128], strides = [1, 1]} : vector<8x256xf32> to vector<8x128xf32>
    %201 = vector.extract_strided_slice %199 {offsets = [0, 128], sizes = [8, 128], strides = [1, 1]} : vector<8x256xf32> to vector<8x128xf32>
    %202 = vector.extract_strided_slice %190 {offsets = [0, 256], sizes = [8, 128], strides = [1, 1]} : vector<8x384xf32> to vector<8x128xf32>
    %203 = vector.extract_strided_slice %191 {offsets = [0, 256], sizes = [8, 128], strides = [1, 1]} : vector<8x384xf32> to vector<8x128xf32>
    %204 = arith.addf %203, %165 : vector<8x128xf32>
    %205 = arith.mulf %200, %204 : vector<8x128xf32>
    %206 = arith.addf %202, %205 : vector<8x128xf32>
    %207 = math.tanh %206 : vector<8x128xf32>
    %cst_46 = arith.constant 1.000000e+00 : f32
    %208 = vector.broadcast %cst_46 : f32 to vector<8x128xf32>
    %209 = arith.subf %208, %201 : vector<8x128xf32>
    %210 = arith.mulf %209, %207 : vector<8x128xf32>
    %211 = arith.mulf %201, %189 : vector<8x128xf32>
    %212 = arith.addf %210, %211 : vector<8x128xf32>
    %213 = vector.extract_strided_slice %161 {offsets = [16, 0], sizes = [8, 384], strides = [1, 1]} : vector<24x768xf32> to vector<8x384xf32>
    %cst_47 = arith.constant dense<0.000000e+00> : vector<8x384xf32>
    %214 = tpu.matmul %212, %162, %cst_47 {dimension_numbers = #tpu.dot_dimension_numbers<[1], [0], [0], [1], [0, 0, 1, 1], [], []>} : vector<8x128xf32>, vector<128x384xf32>, vector<8x384xf32> -> vector<8x384xf32>
    %215 = vector.extract_strided_slice %213 {offsets = [0, 0], sizes = [8, 256], strides = [1, 1]} : vector<8x384xf32> to vector<8x256xf32>
    %216 = vector.extract_strided_slice %214 {offsets = [0, 0], sizes = [8, 256], strides = [1, 1]} : vector<8x384xf32> to vector<8x256xf32>
    %217 = arith.addf %215, %216 : vector<8x256xf32>
    %218 = arith.negf %217 : vector<8x256xf32>
    %219 = math.exp %218 : vector<8x256xf32>
    %cst_48 = arith.constant 1.000000e+00 : f32
    %220 = vector.broadcast %cst_48 : f32 to vector<8x256xf32>
    %221 = arith.addf %220, %219 : vector<8x256xf32>
    %222 = arith.divf %220, %221 : vector<8x256xf32>
    %223 = vector.extract_strided_slice %222 {offsets = [0, 0], sizes = [8, 128], strides = [1, 1]} : vector<8x256xf32> to vector<8x128xf32>
    %224 = vector.extract_strided_slice %222 {offsets = [0, 128], sizes = [8, 128], strides = [1, 1]} : vector<8x256xf32> to vector<8x128xf32>
    %225 = vector.extract_strided_slice %213 {offsets = [0, 256], sizes = [8, 128], strides = [1, 1]} : vector<8x384xf32> to vector<8x128xf32>
    %226 = vector.extract_strided_slice %214 {offsets = [0, 256], sizes = [8, 128], strides = [1, 1]} : vector<8x384xf32> to vector<8x128xf32>
    %227 = arith.addf %226, %165 : vector<8x128xf32>
    %228 = arith.mulf %223, %227 : vector<8x128xf32>
    %229 = arith.addf %225, %228 : vector<8x128xf32>
    %230 = math.tanh %229 : vector<8x128xf32>
    %cst_49 = arith.constant 1.000000e+00 : f32
    %231 = vector.broadcast %cst_49 : f32 to vector<8x128xf32>
    %232 = arith.subf %231, %224 : vector<8x128xf32>
    %233 = arith.mulf %232, %230 : vector<8x128xf32>
    %234 = arith.mulf %224, %212 : vector<8x128xf32>
    %235 = arith.addf %233, %234 : vector<8x128xf32>
    %c2_50 = arith.constant 2 : index
    %c384 = arith.constant 384 : index
    %236 = vector.load %arg4[%c2_50, %c384] : memref<4x768xf32, #tpu.memory_space<vmem>>, vector<1x128xf32>
    %237 = vector.shape_cast %236 : vector<1x128xf32> to vector<1x128xf32>
    %238 = vector.broadcast %237 : vector<1x128xf32> to vector<8x128xf32>
    %239 = vector.extract_strided_slice %161 {offsets = [16, 384], sizes = [8, 384], strides = [1, 1]} : vector<24x768xf32> to vector<8x384xf32>
    %c56 = arith.constant 56 : index
    %c0_51 = arith.constant 0 : index
    %240 = vector.load %arg1[%c56, %c0_51] : memref<64x128xf32, #tpu.memory_space<vmem>>, vector<8x128xf32>
    %c384_52 = arith.constant 384 : index
    %c0_53 = arith.constant 0 : index
    %241 = vector.load %arg3[%c384_52, %c0_53] : memref<512x384xf32, #tpu.memory_space<vmem>>, vector<128x384xf32>
    %cst_54 = arith.constant dense<0.000000e+00> : vector<8x384xf32>
    %242 = tpu.matmul %240, %241, %cst_54 {dimension_numbers = #tpu.dot_dimension_numbers<[1], [0], [0], [1], [0, 0, 1, 1], [], []>} : vector<8x128xf32>, vector<128x384xf32>, vector<8x384xf32> -> vector<8x384xf32>
    %243 = vector.extract_strided_slice %239 {offsets = [0, 0], sizes = [8, 256], strides = [1, 1]} : vector<8x384xf32> to vector<8x256xf32>
    %244 = vector.extract_strided_slice %242 {offsets = [0, 0], sizes = [8, 256], strides = [1, 1]} : vector<8x384xf32> to vector<8x256xf32>
    %245 = arith.addf %243, %244 : vector<8x256xf32>
    %246 = arith.negf %245 : vector<8x256xf32>
    %247 = math.exp %246 : vector<8x256xf32>
    %cst_55 = arith.constant 1.000000e+00 : f32
    %248 = vector.broadcast %cst_55 : f32 to vector<8x256xf32>
    %249 = arith.addf %248, %247 : vector<8x256xf32>
    %250 = arith.divf %248, %249 : vector<8x256xf32>
    %251 = vector.extract_strided_slice %250 {offsets = [0, 0], sizes = [8, 128], strides = [1, 1]} : vector<8x256xf32> to vector<8x128xf32>
    %252 = vector.extract_strided_slice %250 {offsets = [0, 128], sizes = [8, 128], strides = [1, 1]} : vector<8x256xf32> to vector<8x128xf32>
    %253 = vector.extract_strided_slice %239 {offsets = [0, 256], sizes = [8, 128], strides = [1, 1]} : vector<8x384xf32> to vector<8x128xf32>
    %254 = vector.extract_strided_slice %242 {offsets = [0, 256], sizes = [8, 128], strides = [1, 1]} : vector<8x384xf32> to vector<8x128xf32>
    %255 = arith.addf %254, %238 : vector<8x128xf32>
    %256 = arith.mulf %251, %255 : vector<8x128xf32>
    %257 = arith.addf %253, %256 : vector<8x128xf32>
    %258 = math.tanh %257 : vector<8x128xf32>
    %cst_56 = arith.constant 1.000000e+00 : f32
    %259 = vector.broadcast %cst_56 : f32 to vector<8x128xf32>
    %260 = arith.subf %259, %252 : vector<8x128xf32>
    %261 = arith.mulf %260, %258 : vector<8x128xf32>
    %262 = arith.mulf %252, %240 : vector<8x128xf32>
    %263 = arith.addf %261, %262 : vector<8x128xf32>
    %c0_57 = arith.constant 0 : index
    %c0_58 = arith.constant 0 : index
    %264 = vector.load %arg5[%c0_57, %c0_58] : memref<256x4xf32, #tpu.memory_space<vmem>>, vector<128x4xf32>
    %cst_59 = arith.constant dense<0.000000e+00> : vector<8x4xf32>
    %265 = tpu.matmul %235, %264, %cst_59 {dimension_numbers = #tpu.dot_dimension_numbers<[1], [0], [0], [1], [0, 0, 1, 1], [], []>} : vector<8x128xf32>, vector<128x4xf32>, vector<8x4xf32> -> vector<8x4xf32>
    %c128_60 = arith.constant 128 : index
    %c0_61 = arith.constant 0 : index
    %266 = vector.load %arg5[%c128_60, %c0_61] : memref<256x4xf32, #tpu.memory_space<vmem>>, vector<128x4xf32>
    %cst_62 = arith.constant dense<0.000000e+00> : vector<8x4xf32>
    %267 = tpu.matmul %263, %266, %cst_62 {dimension_numbers = #tpu.dot_dimension_numbers<[1], [0], [0], [1], [0, 0, 1, 1], [], []>} : vector<8x128xf32>, vector<128x4xf32>, vector<8x4xf32> -> vector<8x4xf32>
    %268 = arith.addf %265, %267 : vector<8x4xf32>
    %c3 = arith.constant 3 : index
    %c0_63 = arith.constant 0 : index
    %269 = vector.load %arg4[%c3, %c0_63] : memref<4x768xf32, #tpu.memory_space<vmem>>, vector<1x4xf32>
    %270 = vector.broadcast %269 : vector<1x4xf32> to vector<8x4xf32>
    %271 = arith.addf %268, %270 : vector<8x4xf32>
    %c0_64 = arith.constant 0 : index
    %c0_65 = arith.constant 0 : index
    %272 = vector.load %arg6[%c0_64, %c0_65] : memref<8x4xf32, #tpu.memory_space<vmem>>, vector<8x4xf32>
    tpu.vector_store %arg6[%c0_64, %c0_65], %271 {strides = array<i32>} : memref<8x4xf32, #tpu.memory_space<vmem>>, vector<8x4xf32>,
    return
  }
}

</mosaic_0001>

<llo_original>
// kernel: word_sent_model_forward.1
$region0: #{word_sent_model_forward.1}
  #allocation0 [shape = 'u32[]', space=smem, size = 0x4, offset = 0x4, fixed_abs, tag = 'smem constant byte address 0x4 - core index']
  #allocation1 [shape = 'u32[144,128]{1,0:T(1,128)}', space=vmem, size = 0x12000, scoped, tag = 'internal scratch']
  %s0 = inlined_call_operand.vmem [shape: f32[120,32], index: 0, kind: input, shape index: {}]
  %s1 = inlined_call_operand.vmem [shape: f32[64,128], index: 1, kind: input, shape index: {}]
  %s2 = inlined_call_operand.vmem [shape: f32[288,768], index: 2, kind: input, shape index: {}]
  %s3 = inlined_call_operand.vmem [shape: f32[512,384], index: 3, kind: input, shape index: {}]
  %s4 = inlined_call_operand.vmem [shape: f32[4,768], index: 4, kind: input, shape index: {}]
  %s5 = inlined_call_operand.vmem [shape: f32[256,4], index: 5, kind: input, shape index: {}]
  %s6 = inlined_call_operand.vmem [shape: f32[8,4], index: 6, kind: output, shape index: {}]
  %s7 = sld [smem:[#allocation0]]
  $region34: #{word_sent_model_forward.1} parent=0
    _
  %s9 = ssub.s32 1, %s7
  %s10 = scalar_select 0, %s9, %s7
  // Predicated region
  $region2: #{word_sent_model_forward.1} parent=0 // pred_check
    _
  $region3: #{word_sent_model_forward.1} parent=0 // pred_check_branch
    %12 = sbr.rel (0) target = $region5
  $region4: #{word_sent_model_forward.1} parent=0 // pred_region
    _
  $region5: #{word_sent_model_forward.1} parent=0 // pred_fallthru
    _
  // Predicated region
  $region6: #{word_sent_model_forward.1} parent=0 // pred_check
    _
  $region7: #{word_sent_model_forward.1} parent=0 // pred_check_branch
    %14 = sbr.rel (0) target = $region9
  $region8: #{word_sent_model_forward.1} parent=0 // pred_region
    _
  $region9: #{word_sent_model_forward.1} parent=0 // pred_fallthru
    _
  // Predicated region
  $region10: #{word_sent_model_forward.1} parent=0 // pred_check
    _
  $region11: #{word_sent_model_forward.1} parent=0 // pred_check_branch
    %16 = sbr.rel (0) target = $region13
  $region12: #{word_sent_model_forward.1} parent=0 // pred_region
    _
  $region13: #{word_sent_model_forward.1} parent=0 // pred_fallthru
    _
  // Predicated region
  $region14: #{word_sent_model_forward.1} parent=0 // pred_check
    _
  $region15: #{word_sent_model_forward.1} parent=0 // pred_check_branch
    %18 = sbr.rel (0) target = $region17
  $region16: #{word_sent_model_forward.1} parent=0 // pred_region
    _
  $region17: #{word_sent_model_forward.1} parent=0 // pred_fallthru
    _
  // Predicated region
  $region18: #{word_sent_model_forward.1} parent=0 // pred_check
    _
  $region19: #{word_sent_model_forward.1} parent=0 // pred_check_branch
    %20 = sbr.rel (0) target = $region21
  $region20: #{word_sent_model_forward.1} parent=0 // pred_region
    _
  $region21: #{word_sent_model_forward.1} parent=0 // pred_fallthru
    _
  // Predicated region
  $region22: #{word_sent_model_forward.1} parent=0 // pred_check
    _
  $region23: #{word_sent_model_forward.1} parent=0 // pred_check_branch
    %22 = sbr.rel (0) target = $region25
  $region24: #{word_sent_model_forward.1} parent=0 // pred_region
    _
  $region25: #{word_sent_model_forward.1} parent=0 // pred_fallthru
    _
  %v23 = vld [vmem:[%s0] sm:$0xff]
  %v24 = vld [vmem:[%s0 + $0x8] sm:$0xff]
  %v25 = vld [vmem:[%s0 + $0x10] sm:$0xff]
  %v26 = vld [vmem:[%s0 + $0x18] sm:$0xff]
  %v27 = vld [vmem:[%s0 + $0x20] sm:$0xff]
  %v28 = vld [vmem:[%s0 + $0x28] sm:$0xff]
  %v29 = vld [vmem:[%s0 + $0x30] sm:$0xff]
  %v30 = vld [vmem:[%s0 + $0x38] sm:$0xff]
  %v31 = vld [vmem:[%s0 + $0x40] sm:$0xff]
  %v32 = vld [vmem:[%s0 + $0x48] sm:$0xff]
  %v33 = vld [vmem:[%s0 + $0x50] sm:$0xff]
  %v34 = vld [vmem:[%s0 + $0x58] sm:$0xff]
  %v35 = vld [vmem:[%s0 + $0x60] sm:$0xff]
  %v36 = vld [vmem:[%s0 + $0x68] sm:$0xff]
  %v37 = vld [vmem:[%s0 + $0x70] sm:$0xff]
  %v38 = vld [vmem:[%s2] sm:$0xff]
  %v39 = vld [vmem:[%s2 + $0x8] sm:$0xff]
  %v40 = vld [vmem:[%s2 + $0x10] sm:$0xff]
  %v41 = vld [vmem:[%s2 + $0x18] sm:$0xff]
  %v42 = vld [vmem:[%s2 + $0x20] sm:$0xff]
  %v43 = vld [vmem:[%s2 + $0x28] sm:$0xff]
  %v44 = vld [vmem:[%s2 + $0x30] sm:$0xff]
  %v45 = vld [vmem:[%s2 + $0x38] sm:$0xff]
  %v46 = vld [vmem:[%s2 + $0x40] sm:$0xff]
  %v47 = vld [vmem:[%s2 + $0x48] sm:$0xff]
  %v48 = vld [vmem:[%s2 + $0x50] sm:$0xff]
  %v49 = vld [vmem:[%s2 + $0x58] sm:$0xff]
  %v50 = vld [vmem:[%s2 + $0x60] sm:$0xff]
  %v51 = vld [vmem:[%s2 + $0x68] sm:$0xff]
  %v52 = vld [vmem:[%s2 + $0x70] sm:$0xff]
  %v53 = vld [vmem:[%s2 + $0x78] sm:$0xff]
  %v54 = vld [vmem:[%s2 + $0x80] sm:$0xff]
  %v55 = vld [vmem:[%s2 + $0x88] sm:$0xff]
  %v56 = vld [vmem:[%s2 + $0x90] sm:$0xff]
  %v57 = vld [vmem:[%s2 + $0x98] sm:$0xff]
  %v58 = vld [vmem:[%s2 + $0xa0] sm:$0xff]
  %v59 = vld [vmem:[%s2 + $0xa8] sm:$0xff]
  %v60 = vld [vmem:[%s2 + $0xb0] sm:$0xff]
  %v61 = vld [vmem:[%s2 + $0xb8] sm:$0xff]
  %v62 = vld [vmem:[%s4] ss:$4 sm:$0x3f]
  %v64 = vlaneseq
  %v65 = vshrl.u32 %v64, 7
  %v66 = vsub.s32 0, %v65
  %v67 = vrot.slane %v62, %v66
  %v68 = vlaneseq
  %v69 = vshrl.u32 %v68, 7
  %v70 = vsub.s32 1, %v69
  %v71 = vrot.slane %v62, %v70
  %v72 = vlaneseq
  %v73 = vshrl.u32 %v72, 7
  %v74 = vsub.s32 2, %v73
  %v75 = vrot.slane %v62, %v74
  %v76 = vlaneseq
  %v77 = vshrl.u32 %v76, 7
  %v78 = vsub.s32 3, %v77
  %v79 = vrot.slane %v62, %v78
  %v80 = vlaneseq
  %v81 = vshrl.u32 %v80, 7
  %v82 = vsub.s32 4, %v81
  %v83 = vrot.slane %v62, %v82
  %v84 = vlaneseq
  %v85 = vshrl.u32 %v84, 7
  %v86 = vsub.s32 5, %v85
  %v87 = vrot.slane %v62, %v86
  %vm94 = vcmask 261120
  %v96 = vsel %vm94, %v23, 0
  %v99 = vsel %vm94, %v24, 0
  %v102 = vsel %vm94, %v25, 0
  %v105 = vsel %vm94, %v26, 0
  %v108 = vsel %vm94, %v27, 0
  %v111 = vsel %vm94, %v28, 0
  %v114 = vsel %vm94, %v29, 0
  %v117 = vsel %vm94, %v30, 0
  %v120 = vsel %vm94, %v31, 0
  %v123 = vsel %vm94, %v32, 0
  %v126 = vsel %vm94, %v33, 0
  %v129 = vsel %vm94, %v34, 0
  %v132 = vsel %vm94, %v35, 0
  %v135 = vsel %vm94, %v36, 0
  %v138 = vsel %vm94, %v37, 0
  %140 = vmatprep.subr.mxu0 %v39
  %141 = vmatpush1.msra.mxu0 %v38
  %142 = vmatprep.subr.mxu0 %v45
  %143 = vmatpush1.msra.mxu0 %v44
  %144 = vmatprep.subr.mxu0 %v51
  %145 = vmatpush1.msra.mxu0 %v50
  %146 = vmatprep.subr.mxu0 %v57
  %147 = vmatpush1.msra.mxu0 %v56
  %148 = vmatprep.subr.mxu0 0.0
  %149 = vmatpush1.msra.mxu0 0.0
  %150 = vmatprep.subr.mxu0 0.0
  %151 = vmatpush1.msra.mxu0 0.0
  %152 = vmatprep.subr.mxu0 0.0
  %153 = vmatpush1.msra.mxu0 0.0
  %154 = vmatprep.subr.mxu0 0.0
  %155 = vmatpush1.msra.mxu0 0.0
  %156 = vmatprep.subr.mxu0 0.0
  %157 = vmatpush1.msra.mxu0 0.0
  %158 = vmatprep.subr.mxu0 0.0
  %159 = vmatpush1.msra.mxu0 0.0
  %160 = vmatprep.subr.mxu0 0.0
  %161 = vmatpush1.msra.mxu0 0.0
  %162 = vmatprep.subr.mxu0 0.0
  %163 = vmatpush1.msra.mxu0 0.0
  %164 = vmatprep.subr.mxu0 0.0
  %165 = vmatpush1.msra.mxu0 0.0
  %166 = vmatprep.subr.mxu0 0.0
  %167 = vmatpush1.msra.mxu0 0.0
  %168 = vmatprep.subr.mxu0 0.0
  %169 = vmatpush1.msra.mxu0 0.0
  %170 = vmatprep.subr.mxu0 0.0
  %171 = vmatpush1.msra.mxu0 0.0
  %172 = vmatprep.subr.mxu0 0.0
  %173 = vmatpush1.msra.mxu0 0.0
  %174 = vmatprep.subr.mxu0 0.0
  %175 = vmatpush1.msra.mxu0 0.0
  %176 = vmatprep.subr.mxu0 0.0
  %177 = vmatpush1.msra.mxu0 0.0
  %178 = vmatprep.subr.mxu0 0.0
  %179 = vmatpush1.msra.mxu0 0.0
  %180 = vmatprep.subr.mxu0 0.0
  %181 = vmatpush1.msra.mxu0 0.0
  %182 = vmatprep.subr.mxu0 0.0
  %183 = vmatpush1.msra.mxu0 0.0
  %184 = vmatprep.subr.mxu0 0.0
  %185 = vmatpush1.msra.mxu0 0.0
  %186 = vmatprep.subr.mxu0 0.0
  %187 = vmatpush1.msra.mxu0 0.0
  %188 = vmatprep.subr.mxu0 0.0
  %189 = vmatpush1.msra.mxu0 0.0
  %190 = vmatprep.subr.mxu0 0.0
  %191 = vmatpush1.msra.mxu0 0.0
  %192 = vmatprep.subr.mxu0 0.0
  %193 = vmatpush1.msra.mxu0 0.0
  %194 = vmatprep.subr.mxu0 0.0
  %195 = vmatpush1.msra.mxu0 0.0
  %196 = vmatprep.subr.mxu0 0.0
  %197 = vmatpush1.msra.mxu0 0.0
  %198 = vmatprep.subr.mxu0 0.0
  %199 = vmatpush1.msra.mxu0 0.0
  %200 = vmatprep.subr.mxu0 0.0
  %201 = vmatpush1.msra.mxu0 0.0
  %202 = vmatprep.subr.mxu0 0.0
  %203 = vmatpush1.msra.mxu0 0.0
  %204 = vmatprep.mubr.f32.mxu0 0.0
  %205 = vmatmul.mubr.f32.gmra.mrb[0].mxu0 %v96
  %v206 = vpop.f32.mrb[0].mxu0
  %v207 = vadd.f32 %v67, %v206
  %v208 = vpop.f32.mrb[0].mxu0
  %v209 = vadd.f32 %v71, %v208
  %210 = vmatprep.mubr.f32.mxu0 0.0
  %211 = vmatmul.mubr.f32.gmra.mrb[0].mxu0 %v99
  %v212 = vpop.f32.mrb[0].mxu0
  %v213 = vadd.f32 %v67, %v212
  %v214 = vpop.f32.mrb[0].mxu0
  %v215 = vadd.f32 %v71, %v214
  %216 = vmatprep.mubr.f32.mxu0 0.0
  %217 = vmatmul.mubr.f32.gmra.mrb[0].mxu0 %v102
  %v218 = vpop.f32.mrb[0].mxu0
  %v219 = vadd.f32 %v67, %v218
  %v220 = vpop.f32.mrb[0].mxu0
  %v221 = vadd.f32 %v71, %v220
  %222 = vmatprep.mubr.f32.mxu0 0.0
  %223 = vmatmul.mubr.f32.gmra.mrb[0].mxu0 %v105
  %v224 = vpop.f32.mrb[0].mxu0
  %v225 = vadd.f32 %v67, %v224
  %v226 = vpop.f32.mrb[0].mxu0
  %v227 = vadd.f32 %v71, %v226
  %228 = vmatprep.mubr.f32.mxu0 0.0
  %229 = vmatmul.mubr.f32.gmra.mrb[0].mxu0 %v108
  %v230 = vpop.f32.mrb[0].mxu0
  %v231 = vadd.f32 %v67, %v230
  %v232 = vpop.f32.mrb[0].mxu0
  %v233 = vadd.f32 %v71, %v232
  %234 = vmatprep.mubr.f32.mxu0 0.0
  %235 = vmatmul.mubr.f32.gmra.mrb[0].mxu0 %v111
  %v236 = vpop.f32.mrb[0].mxu0
  %v237 = vadd.f32 %v67, %v236
  %v238 = vpop.f32.mrb[0].mxu0
  %v239 = vadd.f32 %v71, %v238
  %240 = vmatprep.mubr.f32.mxu0 0.0
  %241 = vmatmul.mubr.f32.gmra.mrb[0].mxu0 %v114
  %v242 = vpop.f32.mrb[0].mxu0
  %v243 = vadd.f32 %v67, %v242
  %v244 = vpop.f32.mrb[0].mxu0
  %v245 = vadd.f32 %v71, %v244
  %246 = vmatprep.mubr.f32.mxu0 0.0
  %247 = vmatmul.mubr.f32.gmra.mrb[0].mxu0 %v117
  %v248 = vpop.f32.mrb[0].mxu0
  %v249 = vadd.f32 %v67, %v248
  %v250 = vpop.f32.mrb[0].mxu0
  %v251 = vadd.f32 %v71, %v250
  %252 = vmatprep.mubr.f32.mxu0 0.0
  %253 = vmatmul.mubr.f32.gmra.mrb[0].mxu0 %v120
  %v254 = vpop.f32.mrb[0].mxu0
  %v255 = vadd.f32 %v67, %v254
  %v256 = vpop.f32.mrb[0].mxu0
  %v257 = vadd.f32 %v71, %v256
  %258 = vmatprep.mubr.f32.mxu0 0.0
  %259 = vmatmul.mubr.f32.gmra.mrb[0].mxu0 %v123
  %v260 = vpop.f32.mrb[0].mxu0
  %v261 = vadd.f32 %v67, %v260
  %v262 = vpop.f32.mrb[0].mxu0
  %v263 = vadd.f32 %v71, %v262
  %264 = vmatprep.mubr.f32.mxu0 0.0
  %265 = vmatmul.mubr.f32.gmra.mrb[0].mxu0 %v126
  %v266 = vpop.f32.mrb[0].mxu0
  %v267 = vadd.f32 %v67, %v266
  %v268 = vpop.f32.mrb[0].mxu0
  %v269 = vadd.f32 %v71, %v268
  %270 = vmatprep.mubr.f32.mxu0 0.0
  %271 = vmatmul.mubr.f32.gmra.mrb[0].mxu0 %v129
  %v272 = vpop.f32.mrb[0].mxu0
  %v273 = vadd.f32 %v67, %v272
  %v274 = vpop.f32.mrb[0].mxu0
  %v275 = vadd.f32 %v71, %v274
  %276 = vmatprep.mubr.f32.mxu0 0.0
  %277 = vmatmul.mubr.f32.gmra.mrb[0].mxu0 %v132
  %v278 = vpop.f32.mrb[0].mxu0
  %v279 = vadd.f32 %v67, %v278
  %v280 = vpop.f32.mrb[0].mxu0
  %v281 = vadd.f32 %v71, %v280
  %282 = vmatprep.mubr.f32.mxu0 0.0
  %283 = vmatmul.mubr.f32.gmra.mrb[0].mxu0 %v135
  %v284 = vpop.f32.mrb[0].mxu0
  %v285 = vadd.f32 %v67, %v284
  %v286 = vpop.f32.mrb[0].mxu0
  %v287 = vadd.f32 %v71, %v286
  %288 = vmatprep.mubr.f32.mxu0 0.0
  %289 = vmatmul.mubr.f32.gmra.mrb[0].mxu0 %v138
  %v290 = vpop.f32.mrb[0].mxu0
  %v291 = vadd.f32 %v67, %v290
  %v292 = vpop.f32.mrb[0].mxu0
  %v293 = vadd.f32 %v71, %v292
  %294 = vdwg.mxu0
  %295 = vmatprep.subr.mxu0 %v41
  %296 = vmatpush1.msra.mxu0 %v40
  %297 = vmatprep.subr.mxu0 %v47
  %298 = vmatpush1.msra.mxu0 %v46
  %299 = vmatprep.subr.mxu0 %v53
  %300 = vmatpush1.msra.mxu0 %v52
  %301 = vmatprep.subr.mxu0 %v59
  %302 = vmatpush1.msra.mxu0 %v58
  %303 = vmatprep.subr.mxu0 0.0
  %304 = vmatpush1.msra.mxu0 0.0
  %305 = vmatprep.subr.mxu0 0.0
  %306 = vmatpush1.msra.mxu0 0.0
  %307 = vmatprep.subr.mxu0 0.0
  %308 = vmatpush1.msra.mxu0 0.0
  %309 = vmatprep.subr.mxu0 0.0
  %310 = vmatpush1.msra.mxu0 0.0
  %311 = vmatprep.subr.mxu0 0.0
  %312 = vmatpush1.msra.mxu0 0.0
  %313 = vmatprep.subr.mxu0 0.0
  %314 = vmatpush1.msra.mxu0 0.0
  %315 = vmatprep.subr.mxu0 0.0
  %316 = vmatpush1.msra.mxu0 0.0
  %317 = vmatprep.subr.mxu0 0.0
  %318 = vmatpush1.msra.mxu0 0.0
  %319 = vmatprep.subr.mxu0 0.0
  %320 = vmatpush1.msra.mxu0 0.0
  %321 = vmatprep.subr.mxu0 0.0
  %322 = vmatpush1.msra.mxu0 0.0
  %323 = vmatprep.subr.mxu0 0.0
  %324 = vmatpush1.msra.mxu0 0.0
  %325 = vmatprep.subr.mxu0 0.0
  %326 = vmatpush1.msra.mxu0 0.0
  %327 = vmatprep.subr.mxu0 0.0
  %328 = vmatpush1.msra.mxu0 0.0
  %329 = vmatprep.subr.mxu0 0.0
  %330 = vmatpush1.msra.mxu0 0.0
  %331 = vmatprep.subr.mxu0 0.0
  %332 = vmatpush1.msra.mxu0 0.0
  %333 = vmatprep.subr.mxu0 0.0
  %334 = vmatpush1.msra.mxu0 0.0
  %335 = vmatprep.subr.mxu0 0.0
  %336 = vmatpush1.msra.mxu0 0.0
  %337 = vmatprep.subr.mxu0 0.0
  %338 = vmatpush1.msra.mxu0 0.0
  %339 = vmatprep.subr.mxu0 0.0
  %340 = vmatpush1.msra.mxu0 0.0
  %341 = vmatprep.subr.mxu0 0.0
  %342 = vmatpush1.msra.mxu0 0.0
  %343 = vmatprep.subr.mxu0 0.0
  %344 = vmatpush1.msra.mxu0 0.0
  %345 = vmatprep.subr.mxu0 0.0
  %346 = vmatpush1.msra.mxu0 0.0
  %347 = vmatprep.subr.mxu0 0.0
  %348 = vmatpush1.msra.mxu0 0.0
  %349 = vmatprep.subr.mxu0 0.0
  %350 = vmatpush1.msra.mxu0 0.0
  %351 = vmatprep.subr.mxu0 0.0
  %352 = vmatpush1.msra.mxu0 0.0
  %353 = vmatprep.subr.mxu0 0.0
  %354 = vmatpush1.msra.mxu0 0.0
  %355 = vmatprep.subr.mxu0 0.0
  %356 = vmatpush1.msra.mxu0 0.0
  %357 = vmatprep.subr.mxu0 0.0
  %358 = vmatpush1.msra.mxu0 0.0
  %359 = vmatprep.mubr.f32.mxu0 0.0
  %360 = vmatmul.mubr.f32.gmra.mrb[0].mxu0 %v96
  %v361 = vpop.f32.mrb[0].mxu0
  %v362 = vadd.f32 %v75, %v361
  %v363 = vpop.f32.mrb[0].mxu0
  %364 = vmatprep.mubr.f32.mxu0 0.0
  %365 = vmatmul.mubr.f32.gmra.mrb[0].mxu0 %v99
  %v366 = vpop.f32.mrb[0].mxu0
  %v367 = vadd.f32 %v75, %v366
  %v368 = vpop.f32.mrb[0].mxu0
  %369 = vmatprep.mubr.f32.mxu0 0.0
  %370 = vmatmul.mubr.f32.gmra.mrb[0].mxu0 %v102
  %v371 = vpop.f32.mrb[0].mxu0
  %v372 = vadd.f32 %v75, %v371
  %v373 = vpop.f32.mrb[0].mxu0
  %374 = vmatprep.mubr.f32.mxu0 0.0
  %375 = vmatmul.mubr.f32.gmra.mrb[0].mxu0 %v105
  %v376 = vpop.f32.mrb[0].mxu0
  %v377 = vadd.f32 %v75, %v376
  %v378 = vpop.f32.mrb[0].mxu0
  %379 = vmatprep.mubr.f32.mxu0 0.0
  %380 = vmatmul.mubr.f32.gmra.mrb[0].mxu0 %v108
  %v381 = vpop.f32.mrb[0].mxu0
  %v382 = vadd.f32 %v75, %v381
  %v383 = vpop.f32.mrb[0].mxu0
  %384 = vmatprep.mubr.f32.mxu0 0.0
  %385 = vmatmul.mubr.f32.gmra.mrb[0].mxu0 %v111
  %v386 = vpop.f32.mrb[0].mxu0
  %v387 = vadd.f32 %v75, %v386
  %v388 = vpop.f32.mrb[0].mxu0
  %389 = vmatprep.mubr.f32.mxu0 0.0
  %390 = vmatmul.mubr.f32.gmra.mrb[0].mxu0 %v114
  %v391 = vpop.f32.mrb[0].mxu0
  %v392 = vadd.f32 %v75, %v391
  %v393 = vpop.f32.mrb[0].mxu0
  %394 = vmatprep.mubr.f32.mxu0 0.0
  %395 = vmatmul.mubr.f32.gmra.mrb[0].mxu0 %v117
  %v396 = vpop.f32.mrb[0].mxu0
  %v397 = vadd.f32 %v75, %v396
  %v398 = vpop.f32.mrb[0].mxu0
  %399 = vmatprep.mubr.f32.mxu0 0.0
  %400 = vmatmul.mubr.f32.gmra.mrb[0].mxu0 %v120
  %v401 = vpop.f32.mrb[0].mxu0
  %v402 = vadd.f32 %v75, %v401
  %v403 = vpop.f32.mrb[0].mxu0
  %404 = vmatprep.mubr.f32.mxu0 0.0
  %405 = vmatmul.mubr.f32.gmra.mrb[0].mxu0 %v123
  %v406 = vpop.f32.mrb[0].mxu0
  %v407 = vadd.f32 %v75, %v406
  %v408 = vpop.f32.mrb[0].mxu0
  %409 = vmatprep.mubr.f32.mxu0 0.0
  %410 = vmatmul.mubr.f32.gmra.mrb[0].mxu0 %v126
  %v411 = vpop.f32.mrb[0].mxu0
  %v412 = vadd.f32 %v75, %v411
  %v413 = vpop.f32.mrb[0].mxu0
  %414 = vmatprep.mubr.f32.mxu0 0.0
  %415 = vmatmul.mubr.f32.gmra.mrb[0].mxu0 %v129
  %v416 = vpop.f32.mrb[0].mxu0
  %v417 = vadd.f32 %v75, %v416
  %v418 = vpop.f32.mrb[0].mxu0
  %419 = vmatprep.mubr.f32.mxu0 0.0
  %420 = vmatmul.mubr.f32.gmra.mrb[0].mxu0 %v132
  %v421 = vpop.f32.mrb[0].mxu0
  %v422 = vadd.f32 %v75, %v421
  %v423 = vpop.f32.mrb[0].mxu0
  %v424 = vadd.f32 %v79, %v423
  %425 = vmatprep.mubr.f32.mxu0 0.0
  %426 = vmatmul.mubr.f32.gmra.mrb[0].mxu0 %v135
  %v427 = vpop.f32.mrb[0].mxu0
  %v428 = vadd.f32 %v75, %v427
  %v429 = vpop.f32.mrb[0].mxu0
  %v430 = vadd.f32 %v79, %v429
  %431 = vmatprep.mubr.f32.mxu0 0.0
  %432 = vmatmul.mubr.f32.gmra.mrb[0].mxu0 %v138
  %v433 = vpop.f32.mrb[0].mxu0
  %v434 = vadd.f32 %v75, %v433
  %v435 = vpop.f32.mrb[0].mxu0
  %v436 = vadd.f32 %v79, %v435
  %437 = vdwg.mxu0
  %438 = vmatprep.subr.mxu0 %v43
  %439 = vmatpush1.msra.mxu0 %v42
  %440 = vmatprep.subr.mxu0 %v49
  %441 = vmatpush1.msra.mxu0 %v48
  %442 = vmatprep.subr.mxu0 %v55
  %443 = vmatpush1.msra.mxu0 %v54
  %444 = vmatprep.subr.mxu0 %v61
  %445 = vmatpush1.msra.mxu0 %v60
  %446 = vmatprep.subr.mxu0 0.0
  %447 = vmatpush1.msra.mxu0 0.0
  %448 = vmatprep.subr.mxu0 0.0
  %449 = vmatpush1.msra.mxu0 0.0
  %450 = vmatprep.subr.mxu0 0.0
  %451 = vmatpush1.msra.mxu0 0.0
  %452 = vmatprep.subr.mxu0 0.0
  %453 = vmatpush1.msra.mxu0 0.0
  %454 = vmatprep.subr.mxu0 0.0
  %455 = vmatpush1.msra.mxu0 0.0
  %456 = vmatprep.subr.mxu0 0.0
  %457 = vmatpush1.msra.mxu0 0.0
  %458 = vmatprep.subr.mxu0 0.0
  %459 = vmatpush1.msra.mxu0 0.0
  %460 = vmatprep.subr.mxu0 0.0
  %461 = vmatpush1.msra.mxu0 0.0
  %462 = vmatprep.subr.mxu0 0.0
  %463 = vmatpush1.msra.mxu0 0.0
  %464 = vmatprep.subr.mxu0 0.0
  %465 = vmatpush1.msra.mxu0 0.0
  %466 = vmatprep.subr.mxu0 0.0
  %467 = vmatpush1.msra.mxu0 0.0
  %468 = vmatprep.subr.mxu0 0.0
  %469 = vmatpush1.msra.mxu0 0.0
  %470 = vmatprep.subr.mxu0 0.0
  %471 = vmatpush1.msra.mxu0 0.0
  %472 = vmatprep.subr.mxu0 0.0
  %473 = vmatpush1.msra.mxu0 0.0
  %474 = vmatprep.subr.mxu0 0.0
  %475 = vmatpush1.msra.mxu0 0.0
  %476 = vmatprep.subr.mxu0 0.0
  %477 = vmatpush1.msra.mxu0 0.0
  %478 = vmatprep.subr.mxu0 0.0
  %479 = vmatpush1.msra.mxu0 0.0
  %480 = vmatprep.subr.mxu0 0.0
  %481 = vmatpush1.msra.mxu0 0.0
  %482 = vmatprep.subr.mxu0 0.0
  %483 = vmatpush1.msra.mxu0 0.0
  %484 = vmatprep.subr.mxu0 0.0
  %485 = vmatpush1.msra.mxu0 0.0
  %486 = vmatprep.subr.mxu0 0.0
  %487 = vmatpush1.msra.mxu0 0.0
  %488 = vmatprep.subr.mxu0 0.0
  %489 = vmatpush1.msra.mxu0 0.0
  %490 = vmatprep.subr.mxu0 0.0
  %491 = vmatpush1.msra.mxu0 0.0
  %492 = vmatprep.subr.mxu0 0.0
  %493 = vmatpush1.msra.mxu0 0.0
  %494 = vmatprep.subr.mxu0 0.0
  %495 = vmatpush1.msra.mxu0 0.0
  %496 = vmatprep.subr.mxu0 0.0
  %497 = vmatpush1.msra.mxu0 0.0
  %498 = vmatprep.subr.mxu0 0.0
  %499 = vmatpush1.msra.mxu0 0.0
  %500 = vmatprep.subr.mxu0 0.0
  %501 = vmatpush1.msra.mxu0 0.0
  %502 = vmatprep.mubr.f32.mxu0 0.0
  %503 = vmatmul.mubr.f32.gmra.mrb[0].mxu0 %v96
  %v504 = vpop.f32.mrb[0].mxu0
  %v505 = vpop.f32.mrb[0].mxu0
  %506 = vmatprep.mubr.f32.mxu0 0.0
  %507 = vmatmul.mubr.f32.gmra.mrb[0].mxu0 %v99
  %v508 = vpop.f32.mrb[0].mxu0
  %v509 = vpop.f32.mrb[0].mxu0
  %510 = vmatprep.mubr.f32.mxu0 0.0
  %511 = vmatmul.mubr.f32.gmra.mrb[0].mxu0 %v102
  %v512 = vpop.f32.mrb[0].mxu0
  %v513 = vpop.f32.mrb[0].mxu0
  %514 = vmatprep.mubr.f32.mxu0 0.0
  %515 = vmatmul.mubr.f32.gmra.mrb[0].mxu0 %v105
  %v516 = vpop.f32.mrb[0].mxu0
  %v517 = vpop.f32.mrb[0].mxu0
  %518 = vmatprep.mubr.f32.mxu0 0.0
  %519 = vmatmul.mubr.f32.gmra.mrb[0].mxu0 %v108
  %v520 = vpop.f32.mrb[0].mxu0
  %v521 = vpop.f32.mrb[0].mxu0
  %522 = vmatprep.mubr.f32.mxu0 0.0
  %523 = vmatmul.mubr.f32.gmra.mrb[0].mxu0 %v111
  %v524 = vpop.f32.mrb[0].mxu0
  %v525 = vpop.f32.mrb[0].mxu0
  %526 = vmatprep.mubr.f32.mxu0 0.0
  %527 = vmatmul.mubr.f32.gmra.mrb[0].mxu0 %v114
  %v528 = vpop.f32.mrb[0].mxu0
  %v529 = vpop.f32.mrb[0].mxu0
  %530 = vmatprep.mubr.f32.mxu0 0.0
  %531 = vmatmul.mubr.f32.gmra.mrb[0].mxu0 %v117
  %v532 = vpop.f32.mrb[0].mxu0
  %v533 = vpop.f32.mrb[0].mxu0
  %534 = vmatprep.mubr.f32.mxu0 0.0
  %535 = vmatmul.mubr.f32.gmra.mrb[0].mxu0 %v120
  %v536 = vpop.f32.mrb[0].mxu0
  %v537 = vpop.f32.mrb[0].mxu0
  %538 = vmatprep.mubr.f32.mxu0 0.0
  %539 = vmatmul.mubr.f32.gmra.mrb[0].mxu0 %v123
  %v540 = vpop.f32.mrb[0].mxu0
  %v541 = vpop.f32.mrb[0].mxu0
  %542 = vmatprep.mubr.f32.mxu0 0.0
  %543 = vmatmul.mubr.f32.gmra.mrb[0].mxu0 %v126
  %v544 = vpop.f32.mrb[0].mxu0
  %v545 = vpop.f32.mrb[0].mxu0
  %546 = vmatprep.mubr.f32.mxu0 0.0
  %547 = vmatmul.mubr.f32.gmra.mrb[0].mxu0 %v129
  %v548 = vpop.f32.mrb[0].mxu0
  %v549 = vpop.f32.mrb[0].mxu0
  %550 = vmatprep.mubr.f32.mxu0 0.0
  %551 = vmatmul.mubr.f32.gmra.mrb[0].mxu0 %v132
  %v552 = vpop.f32.mrb[0].mxu0
  %v553 = vadd.f32 %v83, %v552
  %v554 = vpop.f32.mrb[0].mxu0
  %v555 = vadd.f32 %v87, %v554
  %556 = vmatprep.mubr.f32.mxu0 0.0
  %557 = vmatmul.mubr.f32.gmra.mrb[0].mxu0 %v135
  %v558 = vpop.f32.mrb[0].mxu0
  %v559 = vadd.f32 %v83, %v558
  %v560 = vpop.f32.mrb[0].mxu0
  %v561 = vadd.f32 %v87, %v560
  %562 = vmatprep.mubr.f32.mxu0 0.0
  %563 = vmatmul.mubr.f32.gmra.mrb[0].mxu0 %v138
  %v564 = vpop.f32.mrb[0].mxu0
  %v565 = vadd.f32 %v83, %v564
  %v566 = vpop.f32.mrb[0].mxu0
  %v567 = vadd.f32 %v87, %v566
  %568 = vdwg.mxu0
  %v569 = vld [vmem:[%s3] sm:$0xff]
  %v570 = vld [vmem:[%s3 + $0x8] sm:$0xff]
  %v571 = vld [vmem:[%s3 + $0x10] sm:$0xff]
  %v572 = vld [vmem:[%s3 + $0x18] sm:$0xff]
  %v573 = vld [vmem:[%s3 + $0x20] sm:$0xff]
  %v574 = vld [vmem:[%s3 + $0x28] sm:$0xff]
  %v575 = vld [vmem:[%s3 + $0x30] sm:$0xff]
  %v576 = vld [vmem:[%s3 + $0x38] sm:$0xff]
  %v577 = vld [vmem:[%s3 + $0x40] sm:$0xff]
  %v578 = vld [vmem:[%s3 + $0x48] sm:$0xff]
  %v579 = vld [vmem:[%s3 + $0x50] sm:$0xff]
  %v580 = vld [vmem:[%s3 + $0x58] sm:$0xff]
  %v581 = vld [vmem:[%s3 + $0x60] sm:$0xff]
  %v582 = vld [vmem:[%s3 + $0x68] sm:$0xff]
  %v583 = vld [vmem:[%s3 + $0x70] sm:$0xff]
  %v584 = vld [vmem:[%s3 + $0x78] sm:$0xff]
  %v585 = vld [vmem:[%s3 + $0x80] sm:$0xff]
  %v586 = vld [vmem:[%s3 + $0x88] sm:$0xff]
  %v587 = vld [vmem:[%s3 + $0x90] sm:$0xff]
  %v588 = vld [vmem:[%s3 + $0x98] sm:$0xff]
  %v589 = vld [vmem:[%s3 + $0xa0] sm:$0xff]
  %v590 = vld [vmem:[%s3 + $0xa8] sm:$0xff]
  %v591 = vld [vmem:[%s3 + $0xb0] sm:$0xff]
  %v592 = vld [vmem:[%s3 + $0xb8] sm:$0xff]
  %v593 = vld [vmem:[%s3 + $0xc0] sm:$0xff]
  %v594 = vld [vmem:[%s3 + $0xc8] sm:$0xff]
  %v595 = vld [vmem:[%s3 + $0xd0] sm:$0xff]
  %v596 = vld [vmem:[%s3 + $0xd8] sm:$0xff]
  %v597 = vld [vmem:[%s3 + $0xe0] sm:$0xff]
  %v598 = vld [vmem:[%s3 + $0xe8] sm:$0xff]
  %v599 = vld [vmem:[%s3 + $0xf0] sm:$0xff]
  %v600 = vld [vmem:[%s3 + $0xf8] sm:$0xff]
  %v601 = vld [vmem:[%s3 + $0x100] sm:$0xff]
  %v602 = vld [vmem:[%s3 + $0x108] sm:$0xff]
  %v603 = vld [vmem:[%s3 + $0x110] sm:$0xff]
  %v604 = vld [vmem:[%s3 + $0x118] sm:$0xff]
  %v605 = vld [vmem:[%s3 + $0x120] sm:$0xff]
  %v606 = vld [vmem:[%s3 + $0x128] sm:$0xff]
  %v607 = vld [vmem:[%s3 + $0x130] sm:$0xff]
  %v608 = vld [vmem:[%s3 + $0x138] sm:$0xff]
  %v609 = vld [vmem:[%s3 + $0x140] sm:$0xff]
  %v610 = vld [vmem:[%s3 + $0x148] sm:$0xff]
  %v611 = vld [vmem:[%s3 + $0x150] sm:$0xff]
  %v612 = vld [vmem:[%s3 + $0x158] sm:$0xff]
  %v613 = vld [vmem:[%s3 + $0x160] sm:$0xff]
  %v614 = vld [vmem:[%s3 + $0x168] sm:$0xff]
  %v615 = vld [vmem:[%s3 + $0x170] sm:$0xff]
  %v616 = vld [vmem:[%s3 + $0x178] sm:$0xff]
  %v617 = vld [vmem:[%s4 + $0x2] sm:$0x1]
  %v618 = vlaneseq
  %v619 = vshrl.u32 %v618, 7
  %v620 = vsub.s32 0, %v619
  %v621 = vrot.slane %v617, %v620
  %v622 = vld [vmem:[%s1] sm:$0xff]
  %v623 = vld [vmem:[%s1 + $0x8] sm:$0xff]
  %v624 = vld [vmem:[%s1 + $0x10] sm:$0xff]
  %625 = vmatprep.subr.mxu0 %v570
  %626 = vmatpush1.msra.mxu0 %v569
  %627 = vmatprep.subr.mxu0 %v573
  %628 = vmatpush1.msra.mxu0 %v572
  %629 = vmatprep.subr.mxu0 %v576
  %630 = vmatpush1.msra.mxu0 %v575
  %631 = vmatprep.subr.mxu0 %v579
  %632 = vmatpush1.msra.mxu0 %v578
  %633 = vmatprep.subr.mxu0 %v582
  %634 = vmatpush1.msra.mxu0 %v581
  %635 = vmatprep.subr.mxu0 %v585
  %636 = vmatpush1.msra.mxu0 %v584
  %637 = vmatprep.subr.mxu0 %v588
  %638 = vmatpush1.msra.mxu0 %v587
  %639 = vmatprep.subr.mxu0 %v591
  %640 = vmatpush1.msra.mxu0 %v590
  %641 = vmatprep.subr.mxu0 %v594
  %642 = vmatpush1.msra.mxu0 %v593
  %643 = vmatprep.subr.mxu0 %v597
  %644 = vmatpush1.msra.mxu0 %v596
  %645 = vmatprep.subr.mxu0 %v600
  %646 = vmatpush1.msra.mxu0 %v599
  %647 = vmatprep.subr.mxu0 %v603
  %648 = vmatpush1.msra.mxu0 %v602
  %649 = vmatprep.subr.mxu0 %v606
  %650 = vmatpush1.msra.mxu0 %v605
  %651 = vmatprep.subr.mxu0 %v609
  %652 = vmatpush1.msra.mxu0 %v608
  %653 = vmatprep.subr.mxu0 %v612
  %654 = vmatpush1.msra.mxu0 %v611
  %655 = vmatprep.subr.mxu0 %v615
  %656 = vmatpush1.msra.mxu0 %v614
  %657 = vmatprep.subr.mxu0 0.0
  %658 = vmatpush1.msra.mxu0 0.0
  %659 = vmatprep.subr.mxu0 0.0
  %660 = vmatpush1.msra.mxu0 0.0
  %661 = vmatprep.subr.mxu0 0.0
  %662 = vmatpush1.msra.mxu0 0.0
  %663 = vmatprep.subr.mxu0 0.0
  %664 = vmatpush1.msra.mxu0 0.0
  %665 = vmatprep.subr.mxu0 0.0
  %666 = vmatpush1.msra.mxu0 0.0
  %667 = vmatprep.subr.mxu0 0.0
  %668 = vmatpush1.msra.mxu0 0.0
  %669 = vmatprep.subr.mxu0 0.0
  %670 = vmatpush1.msra.mxu0 0.0
  %671 = vmatprep.subr.mxu0 0.0
  %672 = vmatpush1.msra.mxu0 0.0
  %673 = vmatprep.subr.mxu0 0.0
  %674 = vmatpush1.msra.mxu0 0.0
  %675 = vmatprep.subr.mxu0 0.0
  %676 = vmatpush1.msra.mxu0 0.0
  %677 = vmatprep.subr.mxu0 0.0
  %678 = vmatpush1.msra.mxu0 0.0
  %679 = vmatprep.subr.mxu0 0.0
  %680 = vmatpush1.msra.mxu0 0.0
  %681 = vmatprep.subr.mxu0 0.0
  %682 = vmatpush1.msra.mxu0 0.0
  %683 = vmatprep.subr.mxu0 0.0
  %684 = vmatpush1.msra.mxu0 0.0
  %685 = vmatprep.subr.mxu0 0.0
  %686 = vmatpush1.msra.mxu0 0.0
  %687 = vmatprep.subr.mxu0 0.0
  %688 = vmatpush1.msra.mxu0 0.0
  %689 = vmatprep.mubr.f32.mxu0 0.0
  %690 = vmatmul.mubr.f32.gmra.mrb[0].mxu0 %v622
  %v691 = vpop.f32.mrb[0].mxu0
  %v692 = vadd.f32 0.0, %v691
  %v693 = vpop.f32.mrb[0].mxu0
  %v694 = vadd.f32 0.0, %v693
  %695 = vmatprep.mubr.f32.mxu0 0.0
  %696 = vmatmul.mubr.f32.gmra.mrb[0].mxu0 %v623
  %v697 = vpop.f32.mrb[0].mxu0
  %v698 = vadd.f32 0.0, %v697
  %v699 = vpop.f32.mrb[0].mxu0
  %v700 = vadd.f32 0.0, %v699
  %701 = vmatprep.mubr.f32.mxu0 0.0
  %702 = vmatmul.mubr.f32.gmra.mrb[0].mxu0 %v624
  %v703 = vpop.f32.mrb[0].mxu0
  %v704 = vadd.f32 0.0, %v703
  %v705 = vpop.f32.mrb[0].mxu0
  %v706 = vadd.f32 0.0, %v705
  %707 = vdwg.mxu0
  %708 = vmatprep.subr.mxu0 0.0
  %709 = vmatpush1.msra.mxu0 %v571
  %710 = vmatprep.subr.mxu0 0.0
  %711 = vmatpush1.msra.mxu0 %v574
  %712 = vmatprep.subr.mxu0 0.0
  %713 = vmatpush1.msra.mxu0 %v577
  %714 = vmatprep.subr.mxu0 0.0
  %715 = vmatpush1.msra.mxu0 %v580
  %716 = vmatprep.subr.mxu0 0.0
  %717 = vmatpush1.msra.mxu0 %v583
  %718 = vmatprep.subr.mxu0 0.0
  %719 = vmatpush1.msra.mxu0 %v586
  %720 = vmatprep.subr.mxu0 0.0
  %721 = vmatpush1.msra.mxu0 %v589
  %722 = vmatprep.subr.mxu0 0.0
  %723 = vmatpush1.msra.mxu0 %v592
  %724 = vmatprep.subr.mxu0 0.0
  %725 = vmatpush1.msra.mxu0 %v595
  %726 = vmatprep.subr.mxu0 0.0
  %727 = vmatpush1.msra.mxu0 %v598
  %728 = vmatprep.subr.mxu0 0.0
  %729 = vmatpush1.msra.mxu0 %v601
  %730 = vmatprep.subr.mxu0 0.0
  %731 = vmatpush1.msra.mxu0 %v604
  %732 = vmatprep.subr.mxu0 0.0
  %733 = vmatpush1.msra.mxu0 %v607
  %734 = vmatprep.subr.mxu0 0.0
  %735 = vmatpush1.msra.mxu0 %v610
  %736 = vmatprep.subr.mxu0 0.0
  %737 = vmatpush1.msra.mxu0 %v613
  %738 = vmatprep.subr.mxu0 0.0
  %739 = vmatpush1.msra.mxu0 %v616
  %740 = vmatprep.subr.mxu0 0.0
  %741 = vmatpush1.msra.mxu0 0.0
  %742 = vmatprep.subr.mxu0 0.0
  %743 = vmatpush1.msra.mxu0 0.0
  %744 = vmatprep.subr.mxu0 0.0
  %745 = vmatpush1.msra.mxu0 0.0
  %746 = vmatprep.subr.mxu0 0.0
  %747 = vmatpush1.msra.mxu0 0.0
  %748 = vmatprep.subr.mxu0 0.0
  %749 = vmatpush1.msra.mxu0 0.0
  %750 = vmatprep.subr.mxu0 0.0
  %751 = vmatpush1.msra.mxu0 0.0
  %752 = vmatprep.subr.mxu0 0.0
  %753 = vmatpush1.msra.mxu0 0.0
  %754 = vmatprep.subr.mxu0 0.0
  %755 = vmatpush1.msra.mxu0 0.0
  %756 = vmatprep.subr.mxu0 0.0
  %757 = vmatpush1.msra.mxu0 0.0
  %758 = vmatprep.subr.mxu0 0.0
  %759 = vmatpush1.msra.mxu0 0.0
  %760 = vmatprep.subr.mxu0 0.0
  %761 = vmatpush1.msra.mxu0 0.0
  %762 = vmatprep.subr.mxu0 0.0
  %763 = vmatpush1.msra.mxu0 0.0
  %764 = vmatprep.subr.mxu0 0.0
  %765 = vmatpush1.msra.mxu0 0.0
  %766 = vmatprep.subr.mxu0 0.0
  %767 = vmatpush1.msra.mxu0 0.0
  %768 = vmatprep.subr.mxu0 0.0
  %769 = vmatpush1.msra.mxu0 0.0
  %770 = vmatprep.subr.mxu0 0.0
  %771 = vmatpush1.msra.mxu0 0.0
  %772 = vmatprep.mubr.f32.mxu0 0.0
  %773 = vmatmul.mubr.f32.gmra.mrb[0].mxu0 %v622
  %v774 = vpop.f32.mrb[0].mxu0
  %v775 = vadd.f32 0.0, %v774
  %v776 = vpop.f32.mrb[0].mxu0
  %777 = vmatprep.mubr.f32.mxu0 0.0
  %778 = vmatmul.mubr.f32.gmra.mrb[0].mxu0 %v623
  %v779 = vpop.f32.mrb[0].mxu0
  %v780 = vadd.f32 0.0, %v779
  %v781 = vpop.f32.mrb[0].mxu0
  %782 = vmatprep.mubr.f32.mxu0 0.0
  %783 = vmatmul.mubr.f32.gmra.mrb[0].mxu0 %v624
  %v784 = vpop.f32.mrb[0].mxu0
  %v785 = vadd.f32 0.0, %v784
  %v786 = vpop.f32.mrb[0].mxu0
  %787 = vdwg.mxu0
  %v788 = vadd.f32 %v207, %v692
  %v789 = vadd.f32 %v209, %v694
  %v790 = vadd.f32 %v213, %v698
  %v791 = vadd.f32 %v215, %v700
  %v792 = vadd.f32 %v219, %v704
  %v793 = vadd.f32 %v221, %v706
  %v794 = vxor.u32 %v788, 2147483648
  %v795 = vxor.u32 %v789, 2147483648
  %v796 = vxor.u32 %v790, 2147483648
  %v797 = vxor.u32 %v791, 2147483648
  %v798 = vxor.u32 %v792, 2147483648
  %v799 = vxor.u32 %v793, 2147483648
  %v800 = vmul.f32 %v794, 1.442695
  %v801 = vpow.pop %v800
  %v802 = vmul.f32 %v795, 1.442695
  %v803 = vpow.pop %v802
  %v804 = vmul.f32 %v796, 1.442695
  %v805 = vpow.pop %v804
  %v806 = vmul.f32 %v797, 1.442695
  %v807 = vpow.pop %v806
  %v808 = vmul.f32 %v798, 1.442695
  %v809 = vpow.pop %v808
  %v810 = vmul.f32 %v799, 1.442695
  %v811 = vpow.pop %v810
  %v812 = vadd.f32 %v801, 1.0
  %v813 = vadd.f32 %v803, 1.0
  %v814 = vadd.f32 %v805, 1.0
  %v815 = vadd.f32 %v807, 1.0
  %v816 = vadd.f32 %v809, 1.0
  %v817 = vadd.f32 %v811, 1.0
  %v818 = vrcp.pop %v812
  %v819 = vmul.f32 1.0, %v818
  %v820 = vrcp.pop %v813
  %v821 = vmul.f32 1.0, %v820
  %v822 = vrcp.pop %v814
  %v823 = vmul.f32 1.0, %v822
  %v824 = vrcp.pop %v815
  %v825 = vmul.f32 1.0, %v824
  %v826 = vrcp.pop %v816
  %v827 = vmul.f32 1.0, %v826
  %v828 = vrcp.pop %v817
  %v829 = vmul.f32 1.0, %v828
  %v830 = vadd.f32 %v775, %v621
  %v831 = vadd.f32 %v780, %v621
  %v832 = vadd.f32 %v785, %v621
  %v833 = vmul.f32 %v819, %v830
  %v834 = vmul.f32 %v823, %v831
  %v835 = vmul.f32 %v827, %v832
  %v836 = vadd.f32 %v362, %v833
  %v837 = vadd.f32 %v367, %v834
  %v838 = vadd.f32 %v372, %v835
  %v839 = vtanh.pop %v836
  %v840 = vtanh.pop %v837
  %v841 = vtanh.pop %v838
  %v842 = vsub.f32 1.0, %v821
  %v843 = vsub.f32 1.0, %v825
  %v844 = vsub.f32 1.0, %v829
  %v845 = vmul.f32 %v842, %v839
  %v846 = vmul.f32 %v843, %v840
  %v847 = vmul.f32 %v844, %v841
  %v848 = vmul.f32 %v821, %v622
  %v849 = vmul.f32 %v825, %v623
  %v850 = vmul.f32 %v829, %v624
  %v851 = vadd.f32 %v845, %v848
  %v852 = vadd.f32 %v846, %v849
  %v853 = vadd.f32 %v847, %v850
  %854 = vmatprep.subr.mxu0 %v570
  %855 = vmatpush1.msra.mxu0 %v569
  %856 = vmatprep.subr.mxu0 %v573
  %857 = vmatpush1.msra.mxu0 %v572
  %858 = vmatprep.subr.mxu0 %v576
  %859 = vmatpush1.msra.mxu0 %v575
  %860 = vmatprep.subr.mxu0 %v579
  %861 = vmatpush1.msra.mxu0 %v578
  %862 = vmatprep.subr.mxu0 %v582
  %863 = vmatpush1.msra.mxu0 %v581
  %864 = vmatprep.subr.mxu0 %v585
  %865 = vmatpush1.msra.mxu0 %v584
  %866 = vmatprep.subr.mxu0 %v588
  %867 = vmatpush1.msra.mxu0 %v587
  %868 = vmatprep.subr.mxu0 %v591
  %869 = vmatpush1.msra.mxu0 %v590
  %870 = vmatprep.subr.mxu0 %v594
  %871 = vmatpush1.msra.mxu0 %v593
  %872 = vmatprep.subr.mxu0 %v597
  %873 = vmatpush1.msra.mxu0 %v596
  %874 = vmatprep.subr.mxu0 %v600
  %875 = vmatpush1.msra.mxu0 %v599
  %876 = vmatprep.subr.mxu0 %v603
  %877 = vmatpush1.msra.mxu0 %v602
  %878 = vmatprep.subr.mxu0 %v606
  %879 = vmatpush1.msra.mxu0 %v605
  %880 = vmatprep.subr.mxu0 %v609
  %881 = vmatpush1.msra.mxu0 %v608
  %882 = vmatprep.subr.mxu0 %v612
  %883 = vmatpush1.msra.mxu0 %v611
  %884 = vmatprep.subr.mxu0 %v615
  %885 = vmatpush1.msra.mxu0 %v614
  %886 = vmatprep.subr.mxu0 0.0
  %887 = vmatpush1.msra.mxu0 0.0
  %888 = vmatprep.subr.mxu0 0.0
  %889 = vmatpush1.msra.mxu0 0.0
  %890 = vmatprep.subr.mxu0 0.0
  %891 = vmatpush1.msra.mxu0 0.0
  %892 = vmatprep.subr.mxu0 0.0
  %893 = vmatpush1.msra.mxu0 0.0
  %894 = vmatprep.subr.mxu0 0.0
  %895 = vmatpush1.msra.mxu0 0.0
  %896 = vmatprep.subr.mxu0 0.0
  %897 = vmatpush1.msra.mxu0 0.0
  %898 = vmatprep.subr.mxu0 0.0
  %899 = vmatpush1.msra.mxu0 0.0
  %900 = vmatprep.subr.mxu0 0.0
  %901 = vmatpush1.msra.mxu0 0.0
  %902 = vmatprep.subr.mxu0 0.0
  %903 = vmatpush1.msra.mxu0 0.0
  %904 = vmatprep.subr.mxu0 0.0
  %905 = vmatpush1.msra.mxu0 0.0
  %906 = vmatprep.subr.mxu0 0.0
  %907 = vmatpush1.msra.mxu0 0.0
  %908 = vmatprep.subr.mxu0 0.0
  %909 = vmatpush1.msra.mxu0 0.0
  %910 = vmatprep.subr.mxu0 0.0
  %911 = vmatpush1.msra.mxu0 0.0
  %912 = vmatprep.subr.mxu0 0.0
  %913 = vmatpush1.msra.mxu0 0.0
  %914 = vmatprep.subr.mxu0 0.0
  %915 = vmatpush1.msra.mxu0 0.0
  %916 = vmatprep.subr.mxu0 0.0
  %917 = vmatpush1.msra.mxu0 0.0
  %918 = vmatprep.mubr.f32.mxu0 0.0
  %919 = vmatmul.mubr.f32.gmra.mrb[0].mxu0 %v851
  %v920 = vpop.f32.mrb[0].mxu0
  %v921 = vadd.f32 0.0, %v920
  %v922 = vpop.f32.mrb[0].mxu0
  %v923 = vadd.f32 0.0, %v922
  %924 = vmatprep.mubr.f32.mxu0 0.0
  %925 = vmatmul.mubr.f32.gmra.mrb[0].mxu0 %v852
  %v926 = vpop.f32.mrb[0].mxu0
  %v927 = vadd.f32 0.0, %v926
  %v928 = vpop.f32.mrb[0].mxu0
  %v929 = vadd.f32 0.0, %v928
  %930 = vmatprep.mubr.f32.mxu0 0.0
  %931 = vmatmul.mubr.f32.gmra.mrb[0].mxu0 %v853
  %v932 = vpop.f32.mrb[0].mxu0
  %v933 = vadd.f32 0.0, %v932
  %v934 = vpop.f32.mrb[0].mxu0
  %v935 = vadd.f32 0.0, %v934
  %936 = vdwg.mxu0
  %937 = vmatprep.subr.mxu0 0.0
  %938 = vmatpush1.msra.mxu0 %v571
  %939 = vmatprep.subr.mxu0 0.0
  %940 = vmatpush1.msra.mxu0 %v574
  %941 = vmatprep.subr.mxu0 0.0
  %942 = vmatpush1.msra.mxu0 %v577
  %943 = vmatprep.subr.mxu0 0.0
  %944 = vmatpush1.msra.mxu0 %v580
  %945 = vmatprep.subr.mxu0 0.0
  %946 = vmatpush1.msra.mxu0 %v583
  %947 = vmatprep.subr.mxu0 0.0
  %948 = vmatpush1.msra.mxu0 %v586
  %949 = vmatprep.subr.mxu0 0.0
  %950 = vmatpush1.msra.mxu0 %v589
  %951 = vmatprep.subr.mxu0 0.0
  %952 = vmatpush1.msra.mxu0 %v592
  %953 = vmatprep.subr.mxu0 0.0
  %954 = vmatpush1.msra.mxu0 %v595
  %955 = vmatprep.subr.mxu0 0.0
  %956 = vmatpush1.msra.mxu0 %v598
  %957 = vmatprep.subr.mxu0 0.0
  %958 = vmatpush1.msra.mxu0 %v601
  %959 = vmatprep.subr.mxu0 0.0
  %960 = vmatpush1.msra.mxu0 %v604
  %961 = vmatprep.subr.mxu0 0.0
  %962 = vmatpush1.msra.mxu0 %v607
  %963 = vmatprep.subr.mxu0 0.0
  %964 = vmatpush1.msra.mxu0 %v610
  %965 = vmatprep.subr.mxu0 0.0
  %966 = vmatpush1.msra.mxu0 %v613
  %967 = vmatprep.subr.mxu0 0.0
  %968 = vmatpush1.msra.mxu0 %v616
  %969 = vmatprep.subr.mxu0 0.0
  %970 = vmatpush1.msra.mxu0 0.0
  %971 = vmatprep.subr.mxu0 0.0
  %972 = vmatpush1.msra.mxu0 0.0
  %973 = vmatprep.subr.mxu0 0.0
  %974 = vmatpush1.msra.mxu0 0.0
  %975 = vmatprep.subr.mxu0 0.0
  %976 = vmatpush1.msra.mxu0 0.0
  %977 = vmatprep.subr.mxu0 0.0
  %978 = vmatpush1.msra.mxu0 0.0
  %979 = vmatprep.subr.mxu0 0.0
  %980 = vmatpush1.msra.mxu0 0.0
  %981 = vmatprep.subr.mxu0 0.0
  %982 = vmatpush1.msra.mxu0 0.0
  %983 = vmatprep.subr.mxu0 0.0
  %984 = vmatpush1.msra.mxu0 0.0
  %985 = vmatprep.subr.mxu0 0.0
  %986 = vmatpush1.msra.mxu0 0.0
  %987 = vmatprep.subr.mxu0 0.0
  %988 = vmatpush1.msra.mxu0 0.0
  %989 = vmatprep.subr.mxu0 0.0
  %990 = vmatpush1.msra.mxu0 0.0
  %991 = vmatprep.subr.mxu0 0.0
  %992 = vmatpush1.msra.mxu0 0.0
  %993 = vmatprep.subr.mxu0 0.0
  %994 = vmatpush1.msra.mxu0 0.0
  %995 = vmatprep.subr.mxu0 0.0
  %996 = vmatpush1.msra.mxu0 0.0
  %997 = vmatprep.subr.mxu0 0.0
  %998 = vmatpush1.msra.mxu0 0.0
  %999 = vmatprep.subr.mxu0 0.0
  %1000 = vmatpush1.msra.mxu0 0.0
  %1001 = vmatprep.mubr.f32.mxu0 0.0
  %1002 = vmatmul.mubr.f32.gmra.mrb[0].mxu0 %v851
  %v1003 = vpop.f32.mrb[0].mxu0
  %v1004 = vadd.f32 0.0, %v1003
  %v1005 = vpop.f32.mrb[0].mxu0
  %1006 = vmatprep.mubr.f32.mxu0 0.0
  %1007 = vmatmul.mubr.f32.gmra.mrb[0].mxu0 %v852
  %v1008 = vpop.f32.mrb[0].mxu0
  %v1009 = vadd.f32 0.0, %v1008
  %v1010 = vpop.f32.mrb[0].mxu0
  %1011 = vmatprep.mubr.f32.mxu0 0.0
  %1012 = vmatmul.mubr.f32.gmra.mrb[0].mxu0 %v853
  %v1013 = vpop.f32.mrb[0].mxu0
  %v1014 = vadd.f32 0.0, %v1013
  %v1015 = vpop.f32.mrb[0].mxu0
  %1016 = vdwg.mxu0
  %v1017 = vadd.f32 %v225, %v921
  %v1018 = vadd.f32 %v227, %v923
  %v1019 = vadd.f32 %v231, %v927
  %v1020 = vadd.f32 %v233, %v929
  %v1021 = vadd.f32 %v237, %v933
  %v1022 = vadd.f32 %v239, %v935
  %v1023 = vxor.u32 %v1017, 2147483648
  %v1024 = vxor.u32 %v1018, 2147483648
  %v1025 = vxor.u32 %v1019, 2147483648
  %v1026 = vxor.u32 %v1020, 2147483648
  %v1027 = vxor.u32 %v1021, 2147483648
  %v1028 = vxor.u32 %v1022, 2147483648
  %v1029 = vmul.f32 %v1023, 1.442695
  %v1030 = vpow.pop %v1029
  %v1031 = vmul.f32 %v1024, 1.442695
  %v1032 = vpow.pop %v1031
  %v1033 = vmul.f32 %v1025, 1.442695
  %v1034 = vpow.pop %v1033
  %v1035 = vmul.f32 %v1026, 1.442695
  %v1036 = vpow.pop %v1035
  %v1037 = vmul.f32 %v1027, 1.442695
  %v1038 = vpow.pop %v1037
  %v1039 = vmul.f32 %v1028, 1.442695
  %v1040 = vpow.pop %v1039
  %v1041 = vadd.f32 %v1030, 1.0
  %v1042 = vadd.f32 %v1032, 1.0
  %v1043 = vadd.f32 %v1034, 1.0
  %v1044 = vadd.f32 %v1036, 1.0
  %v1045 = vadd.f32 %v1038, 1.0
  %v1046 = vadd.f32 %v1040, 1.0
  %v1047 = vrcp.pop %v1041
  %v1048 = vmul.f32 1.0, %v1047
  %v1049 = vrcp.pop %v1042
  %v1050 = vmul.f32 1.0, %v1049
  %v1051 = vrcp.pop %v1043
  %v1052 = vmul.f32 1.0, %v1051
  %v1053 = vrcp.pop %v1044
  %v1054 = vmul.f32 1.0, %v1053
  %v1055 = vrcp.pop %v1045
  %v1056 = vmul.f32 1.0, %v1055
  %v1057 = vrcp.pop %v1046
  %v1058 = vmul.f32 1.0, %v1057
  %v1059 = vadd.f32 %v1004, %v621
  %v1060 = vadd.f32 %v1009, %v621
  %v1061 = vadd.f32 %v1014, %v621
  %v1062 = vmul.f32 %v1048, %v1059
  %v1063 = vmul.f32 %v1052, %v1060
  %v1064 = vmul.f32 %v1056, %v1061
  %v1065 = vadd.f32 %v377, %v1062
  %v1066 = vadd.f32 %v382, %v1063
  %v1067 = vadd.f32 %v387, %v1064
  %v1068 = vtanh.pop %v1065
  %v1069 = vtanh.pop %v1066
  %v1070 = vtanh.pop %v1067
  %v1071 = vsub.f32 1.0, %v1050
  %v1072 = vsub.f32 1.0, %v1054
  %v1073 = vsub.f32 1.0, %v1058
  %v1074 = vmul.f32 %v1071, %v1068
  %v1075 = vmul.f32 %v1072, %v1069
  %v1076 = vmul.f32 %v1073, %v1070
  %v1077 = vmul.f32 %v1050, %v851
  %v1078 = vmul.f32 %v1054, %v852
  %v1079 = vmul.f32 %v1058, %v853
  %v1080 = vadd.f32 %v1074, %v1077
  %v1081 = vadd.f32 %v1075, %v1078
  %v1082 = vadd.f32 %v1076, %v1079
  %1083 = vmatprep.subr.mxu0 %v570
  %1084 = vmatpush1.msra.mxu0 %v569
  %1085 = vmatprep.subr.mxu0 %v573
  %1086 = vmatpush1.msra.mxu0 %v572
  %1087 = vmatprep.subr.mxu0 %v576
  %1088 = vmatpush1.msra.mxu0 %v575
  %1089 = vmatprep.subr.mxu0 %v579
  %1090 = vmatpush1.msra.mxu0 %v578
  %1091 = vmatprep.subr.mxu0 %v582
  %1092 = vmatpush1.msra.mxu0 %v581
  %1093 = vmatprep.subr.mxu0 %v585
  %1094 = vmatpush1.msra.mxu0 %v584
  %1095 = vmatprep.subr.mxu0 %v588
  %1096 = vmatpush1.msra.mxu0 %v587
  %1097 = vmatprep.subr.mxu0 %v591
  %1098 = vmatpush1.msra.mxu0 %v590
  %1099 = vmatprep.subr.mxu0 %v594
  %1100 = vmatpush1.msra.mxu0 %v593
  %1101 = vmatprep.subr.mxu0 %v597
  %1102 = vmatpush1.msra.mxu0 %v596
  %1103 = vmatprep.subr.mxu0 %v600
  %1104 = vmatpush1.msra.mxu0 %v599
  %1105 = vmatprep.subr.mxu0 %v603
  %1106 = vmatpush1.msra.mxu0 %v602
  %1107 = vmatprep.subr.mxu0 %v606
  %1108 = vmatpush1.msra.mxu0 %v605
  %1109 = vmatprep.subr.mxu0 %v609
  %1110 = vmatpush1.msra.mxu0 %v608
  %1111 = vmatprep.subr.mxu0 %v612
  %1112 = vmatpush1.msra.mxu0 %v611
  %1113 = vmatprep.subr.mxu0 %v615
  %1114 = vmatpush1.msra.mxu0 %v614
  %1115 = vmatprep.subr.mxu0 0.0
  %1116 = vmatpush1.msra.mxu0 0.0
  %1117 = vmatprep.subr.mxu0 0.0
  %1118 = vmatpush1.msra.mxu0 0.0
  %1119 = vmatprep.subr.mxu0 0.0
  %1120 = vmatpush1.msra.mxu0 0.0
  %1121 = vmatprep.subr.mxu0 0.0
  %1122 = vmatpush1.msra.mxu0 0.0
  %1123 = vmatprep.subr.mxu0 0.0
  %1124 = vmatpush1.msra.mxu0 0.0
  %1125 = vmatprep.subr.mxu0 0.0
  %1126 = vmatpush1.msra.mxu0 0.0
  %1127 = vmatprep.subr.mxu0 0.0
  %1128 = vmatpush1.msra.mxu0 0.0
  %1129 = vmatprep.subr.mxu0 0.0
  %1130 = vmatpush1.msra.mxu0 0.0
  %1131 = vmatprep.subr.mxu0 0.0
  %1132 = vmatpush1.msra.mxu0 0.0
  %1133 = vmatprep.subr.mxu0 0.0
  %1134 = vmatpush1.msra.mxu0 0.0
  %1135 = vmatprep.subr.mxu0 0.0
  %1136 = vmatpush1.msra.mxu0 0.0
  %1137 = vmatprep.subr.mxu0 0.0
  %1138 = vmatpush1.msra.mxu0 0.0
  %1139 = vmatprep.subr.mxu0 0.0
  %1140 = vmatpush1.msra.mxu0 0.0
  %1141 = vmatprep.subr.mxu0 0.0
  %1142 = vmatpush1.msra.mxu0 0.0
  %1143 = vmatprep.subr.mxu0 0.0
  %1144 = vmatpush1.msra.mxu0 0.0
  %1145 = vmatprep.subr.mxu0 0.0
  %1146 = vmatpush1.msra.mxu0 0.0
  %1147 = vmatprep.mubr.f32.mxu0 0.0
  %1148 = vmatmul.mubr.f32.gmra.mrb[0].mxu0 %v1080
  %v1149 = vpop.f32.mrb[0].mxu0
  %v1150 = vadd.f32 0.0, %v1149
  %v1151 = vpop.f32.mrb[0].mxu0
  %v1152 = vadd.f32 0.0, %v1151
  %1153 = vmatprep.mubr.f32.mxu0 0.0
  %1154 = vmatmul.mubr.f32.gmra.mrb[0].mxu0 %v1081
  %v1155 = vpop.f32.mrb[0].mxu0
  %v1156 = vadd.f32 0.0, %v1155
  %v1157 = vpop.f32.mrb[0].mxu0
  %v1158 = vadd.f32 0.0, %v1157
  %1159 = vmatprep.mubr.f32.mxu0 0.0
  %1160 = vmatmul.mubr.f32.gmra.mrb[0].mxu0 %v1082
  %v1161 = vpop.f32.mrb[0].mxu0
  %v1162 = vadd.f32 0.0, %v1161
  %v1163 = vpop.f32.mrb[0].mxu0
  %v1164 = vadd.f32 0.0, %v1163
  %1165 = vdwg.mxu0
  %1166 = vmatprep.subr.mxu0 0.0
  %1167 = vmatpush1.msra.mxu0 %v571
  %1168 = vmatprep.subr.mxu0 0.0
  %1169 = vmatpush1.msra.mxu0 %v574
  %1170 = vmatprep.subr.mxu0 0.0
  %1171 = vmatpush1.msra.mxu0 %v577
  %1172 = vmatprep.subr.mxu0 0.0
  %1173 = vmatpush1.msra.mxu0 %v580
  %1174 = vmatprep.subr.mxu0 0.0
  %1175 = vmatpush1.msra.mxu0 %v583
  %1176 = vmatprep.subr.mxu0 0.0
  %1177 = vmatpush1.msra.mxu0 %v586
  %1178 = vmatprep.subr.mxu0 0.0
  %1179 = vmatpush1.msra.mxu0 %v589
  %1180 = vmatprep.subr.mxu0 0.0
  %1181 = vmatpush1.msra.mxu0 %v592
  %1182 = vmatprep.subr.mxu0 0.0
  %1183 = vmatpush1.msra.mxu0 %v595
  %1184 = vmatprep.subr.mxu0 0.0
  %1185 = vmatpush1.msra.mxu0 %v598
  %1186 = vmatprep.subr.mxu0 0.0
  %1187 = vmatpush1.msra.mxu0 %v601
  %1188 = vmatprep.subr.mxu0 0.0
  %1189 = vmatpush1.msra.mxu0 %v604
  %1190 = vmatprep.subr.mxu0 0.0
  %1191 = vmatpush1.msra.mxu0 %v607
  %1192 = vmatprep.subr.mxu0 0.0
  %1193 = vmatpush1.msra.mxu0 %v610
  %1194 = vmatprep.subr.mxu0 0.0
  %1195 = vmatpush1.msra.mxu0 %v613
  %1196 = vmatprep.subr.mxu0 0.0
  %1197 = vmatpush1.msra.mxu0 %v616
  %1198 = vmatprep.subr.mxu0 0.0
  %1199 = vmatpush1.msra.mxu0 0.0
  %1200 = vmatprep.subr.mxu0 0.0
  %1201 = vmatpush1.msra.mxu0 0.0
  %1202 = vmatprep.subr.mxu0 0.0
  %1203 = vmatpush1.msra.mxu0 0.0
  %1204 = vmatprep.subr.mxu0 0.0
  %1205 = vmatpush1.msra.mxu0 0.0
  %1206 = vmatprep.subr.mxu0 0.0
  %1207 = vmatpush1.msra.mxu0 0.0
  %1208 = vmatprep.subr.mxu0 0.0
  %1209 = vmatpush1.msra.mxu0 0.0
  %1210 = vmatprep.subr.mxu0 0.0
  %1211 = vmatpush1.msra.mxu0 0.0
  %1212 = vmatprep.subr.mxu0 0.0
  %1213 = vmatpush1.msra.mxu0 0.0
  %1214 = vmatprep.subr.mxu0 0.0
  %1215 = vmatpush1.msra.mxu0 0.0
  %1216 = vmatprep.subr.mxu0 0.0
  %1217 = vmatpush1.msra.mxu0 0.0
  %1218 = vmatprep.subr.mxu0 0.0
  %1219 = vmatpush1.msra.mxu0 0.0
  %1220 = vmatprep.subr.mxu0 0.0
  %1221 = vmatpush1.msra.mxu0 0.0
  %1222 = vmatprep.subr.mxu0 0.0
  %1223 = vmatpush1.msra.mxu0 0.0
  %1224 = vmatprep.subr.mxu0 0.0
  %1225 = vmatpush1.msra.mxu0 0.0
  %1226 = vmatprep.subr.mxu0 0.0
  %1227 = vmatpush1.msra.mxu0 0.0
  %1228 = vmatprep.subr.mxu0 0.0
  %1229 = vmatpush1.msra.mxu0 0.0
  %1230 = vmatprep.mubr.f32.mxu0 0.0
  %1231 = vmatmul.mubr.f32.gmra.mrb[0].mxu0 %v1080
  %v1232 = vpop.f32.mrb[0].mxu0
  %v1233 = vadd.f32 0.0, %v1232
  %v1234 = vpop.f32.mrb[0].mxu0
  %1235 = vmatprep.mubr.f32.mxu0 0.0
  %1236 = vmatmul.mubr.f32.gmra.mrb[0].mxu0 %v1081
  %v1237 = vpop.f32.mrb[0].mxu0
  %v1238 = vadd.f32 0.0, %v1237
  %v1239 = vpop.f32.mrb[0].mxu0
  %1240 = vmatprep.mubr.f32.mxu0 0.0
  %1241 = vmatmul.mubr.f32.gmra.mrb[0].mxu0 %v1082
  %v1242 = vpop.f32.mrb[0].mxu0
  %v1243 = vadd.f32 0.0, %v1242
  %v1244 = vpop.f32.mrb[0].mxu0
  %1245 = vdwg.mxu0
  %v1246 = vadd.f32 %v243, %v1150
  %v1247 = vadd.f32 %v245, %v1152
  %v1248 = vadd.f32 %v249, %v1156
  %v1249 = vadd.f32 %v251, %v1158
  %v1250 = vadd.f32 %v255, %v1162
  %v1251 = vadd.f32 %v257, %v1164
  %v1252 = vxor.u32 %v1246, 2147483648
  %v1253 = vxor.u32 %v1247, 2147483648
  %v1254 = vxor.u32 %v1248, 2147483648
  %v1255 = vxor.u32 %v1249, 2147483648
  %v1256 = vxor.u32 %v1250, 2147483648
  %v1257 = vxor.u32 %v1251, 2147483648
  %v1258 = vmul.f32 %v1252, 1.442695
  %v1259 = vpow.pop %v1258
  %v1260 = vmul.f32 %v1253, 1.442695
  %v1261 = vpow.pop %v1260
  %v1262 = vmul.f32 %v1254, 1.442695
  %v1263 = vpow.pop %v1262
  %v1264 = vmul.f32 %v1255, 1.442695
  %v1265 = vpow.pop %v1264
  %v1266 = vmul.f32 %v1256, 1.442695
  %v1267 = vpow.pop %v1266
  %v1268 = vmul.f32 %v1257, 1.442695
  %v1269 = vpow.pop %v1268
  %v1270 = vadd.f32 %v1259, 1.0
  %v1271 = vadd.f32 %v1261, 1.0
  %v1272 = vadd.f32 %v1263, 1.0
  %v1273 = vadd.f32 %v1265, 1.0
  %v1274 = vadd.f32 %v1267, 1.0
  %v1275 = vadd.f32 %v1269, 1.0
  %v1276 = vrcp.pop %v1270
  %v1277 = vmul.f32 1.0, %v1276
  %v1278 = vrcp.pop %v1271
  %v1279 = vmul.f32 1.0, %v1278
  %v1280 = vrcp.pop %v1272
  %v1281 = vmul.f32 1.0, %v1280
  %v1282 = vrcp.pop %v1273
  %v1283 = vmul.f32 1.0, %v1282
  %v1284 = vrcp.pop %v1274
  %v1285 = vmul.f32 1.0, %v1284
  %v1286 = vrcp.pop %v1275
  %v1287 = vmul.f32 1.0, %v1286
  %v1288 = vadd.f32 %v1233, %v621
  %v1289 = vadd.f32 %v1238, %v621
  %v1290 = vadd.f32 %v1243, %v621
  %v1291 = vmul.f32 %v1277, %v1288
  %v1292 = vmul.f32 %v1281, %v1289
  %v1293 = vmul.f32 %v1285, %v1290
  %v1294 = vadd.f32 %v392, %v1291
  %v1295 = vadd.f32 %v397, %v1292
  %v1296 = vadd.f32 %v402, %v1293
  %v1297 = vtanh.pop %v1294
  %v1298 = vtanh.pop %v1295
  %v1299 = vtanh.pop %v1296
  %v1300 = vsub.f32 1.0, %v1279
  %v1301 = vsub.f32 1.0, %v1283
  %v1302 = vsub.f32 1.0, %v1287
  %v1303 = vmul.f32 %v1300, %v1297
  %v1304 = vmul.f32 %v1301, %v1298
  %v1305 = vmul.f32 %v1302, %v1299
  %v1306 = vmul.f32 %v1279, %v1080
  %v1307 = vmul.f32 %v1283, %v1081
  %v1308 = vmul.f32 %v1287, %v1082
  %v1309 = vadd.f32 %v1303, %v1306
  %v1310 = vadd.f32 %v1304, %v1307
  %v1311 = vadd.f32 %v1305, %v1308
  %1312 = vmatprep.subr.mxu0 %v570
  %1313 = vmatpush1.msra.mxu0 %v569
  %1314 = vmatprep.subr.mxu0 %v573
  %1315 = vmatpush1.msra.mxu0 %v572
  %1316 = vmatprep.subr.mxu0 %v576
  %1317 = vmatpush1.msra.mxu0 %v575
  %1318 = vmatprep.subr.mxu0 %v579
  %1319 = vmatpush1.msra.mxu0 %v578
  %1320 = vmatprep.subr.mxu0 %v582
  %1321 = vmatpush1.msra.mxu0 %v581
  %1322 = vmatprep.subr.mxu0 %v585
  %1323 = vmatpush1.msra.mxu0 %v584
  %1324 = vmatprep.subr.mxu0 %v588
  %1325 = vmatpush1.msra.mxu0 %v587
  %1326 = vmatprep.subr.mxu0 %v591
  %1327 = vmatpush1.msra.mxu0 %v590
  %1328 = vmatprep.subr.mxu0 %v594
  %1329 = vmatpush1.msra.mxu0 %v593
  %1330 = vmatprep.subr.mxu0 %v597
  %1331 = vmatpush1.msra.mxu0 %v596
  %1332 = vmatprep.subr.mxu0 %v600
  %1333 = vmatpush1.msra.mxu0 %v599
  %1334 = vmatprep.subr.mxu0 %v603
  %1335 = vmatpush1.msra.mxu0 %v602
  %1336 = vmatprep.subr.mxu0 %v606
  %1337 = vmatpush1.msra.mxu0 %v605
  %1338 = vmatprep.subr.mxu0 %v609
  %1339 = vmatpush1.msra.mxu0 %v608
  %1340 = vmatprep.subr.mxu0 %v612
  %1341 = vmatpush1.msra.mxu0 %v611
  %1342 = vmatprep.subr.mxu0 %v615
  %1343 = vmatpush1.msra.mxu0 %v614
  %1344 = vmatprep.subr.mxu0 0.0
  %1345 = vmatpush1.msra.mxu0 0.0
  %1346 = vmatprep.subr.mxu0 0.0
  %1347 = vmatpush1.msra.mxu0 0.0
  %1348 = vmatprep.subr.mxu0 0.0
  %1349 = vmatpush1.msra.mxu0 0.0
  %1350 = vmatprep.subr.mxu0 0.0
  %1351 = vmatpush1.msra.mxu0 0.0
  %1352 = vmatprep.subr.mxu0 0.0
  %1353 = vmatpush1.msra.mxu0 0.0
  %1354 = vmatprep.subr.mxu0 0.0
  %1355 = vmatpush1.msra.mxu0 0.0
  %1356 = vmatprep.subr.mxu0 0.0
  %1357 = vmatpush1.msra.mxu0 0.0
  %1358 = vmatprep.subr.mxu0 0.0
  %1359 = vmatpush1.msra.mxu0 0.0
  %1360 = vmatprep.subr.mxu0 0.0
  %1361 = vmatpush1.msra.mxu0 0.0
  %1362 = vmatprep.subr.mxu0 0.0
  %1363 = vmatpush1.msra.mxu0 0.0
  %1364 = vmatprep.subr.mxu0 0.0
  %1365 = vmatpush1.msra.mxu0 0.0
  %1366 = vmatprep.subr.mxu0 0.0
  %1367 = vmatpush1.msra.mxu0 0.0
  %1368 = vmatprep.subr.mxu0 0.0
  %1369 = vmatpush1.msra.mxu0 0.0
  %1370 = vmatprep.subr.mxu0 0.0
  %1371 = vmatpush1.msra.mxu0 0.0
  %1372 = vmatprep.subr.mxu0 0.0
  %1373 = vmatpush1.msra.mxu0 0.0
  %1374 = vmatprep.subr.mxu0 0.0
  %1375 = vmatpush1.msra.mxu0 0.0
  %1376 = vmatprep.mubr.f32.mxu0 0.0
  %1377 = vmatmul.mubr.f32.gmra.mrb[0].mxu0 %v1309
  %v1378 = vpop.f32.mrb[0].mxu0
  %v1379 = vadd.f32 0.0, %v1378
  %v1380 = vpop.f32.mrb[0].mxu0
  %v1381 = vadd.f32 0.0, %v1380
  %1382 = vmatprep.mubr.f32.mxu0 0.0
  %1383 = vmatmul.mubr.f32.gmra.mrb[0].mxu0 %v1310
  %v1384 = vpop.f32.mrb[0].mxu0
  %v1385 = vadd.f32 0.0, %v1384
  %v1386 = vpop.f32.mrb[0].mxu0
  %v1387 = vadd.f32 0.0, %v1386
  %1388 = vmatprep.mubr.f32.mxu0 0.0
  %1389 = vmatmul.mubr.f32.gmra.mrb[0].mxu0 %v1311
  %v1390 = vpop.f32.mrb[0].mxu0
  %v1391 = vadd.f32 0.0, %v1390
  %v1392 = vpop.f32.mrb[0].mxu0
  %v1393 = vadd.f32 0.0, %v1392
  %1394 = vdwg.mxu0
  %1395 = vmatprep.subr.mxu0 0.0
  %1396 = vmatpush1.msra.mxu0 %v571
  %1397 = vmatprep.subr.mxu0 0.0
  %1398 = vmatpush1.msra.mxu0 %v574
  %1399 = vmatprep.subr.mxu0 0.0
  %1400 = vmatpush1.msra.mxu0 %v577
  %1401 = vmatprep.subr.mxu0 0.0
  %1402 = vmatpush1.msra.mxu0 %v580
  %1403 = vmatprep.subr.mxu0 0.0
  %1404 = vmatpush1.msra.mxu0 %v583
  %1405 = vmatprep.subr.mxu0 0.0
  %1406 = vmatpush1.msra.mxu0 %v586
  %1407 = vmatprep.subr.mxu0 0.0
  %1408 = vmatpush1.msra.mxu0 %v589
  %1409 = vmatprep.subr.mxu0 0.0
  %1410 = vmatpush1.msra.mxu0 %v592
  %1411 = vmatprep.subr.mxu0 0.0
  %1412 = vmatpush1.msra.mxu0 %v595
  %1413 = vmatprep.subr.mxu0 0.0
  %1414 = vmatpush1.msra.mxu0 %v598
  %1415 = vmatprep.subr.mxu0 0.0
  %1416 = vmatpush1.msra.mxu0 %v601
  %1417 = vmatprep.subr.mxu0 0.0
  %1418 = vmatpush1.msra.mxu0 %v604
  %1419 = vmatprep.subr.mxu0 0.0
  %1420 = vmatpush1.msra.mxu0 %v607
  %1421 = vmatprep.subr.mxu0 0.0
  %1422 = vmatpush1.msra.mxu0 %v610
  %1423 = vmatprep.subr.mxu0 0.0
  %1424 = vmatpush1.msra.mxu0 %v613
  %1425 = vmatprep.subr.mxu0 0.0
  %1426 = vmatpush1.msra.mxu0 %v616
  %1427 = vmatprep.subr.mxu0 0.0
  %1428 = vmatpush1.msra.mxu0 0.0
  %1429 = vmatprep.subr.mxu0 0.0
  %1430 = vmatpush1.msra.mxu0 0.0
  %1431 = vmatprep.subr.mxu0 0.0
  %1432 = vmatpush1.msra.mxu0 0.0
  %1433 = vmatprep.subr.mxu0 0.0
  %1434 = vmatpush1.msra.mxu0 0.0
  %1435 = vmatprep.subr.mxu0 0.0
  %1436 = vmatpush1.msra.mxu0 0.0
  %1437 = vmatprep.subr.mxu0 0.0
  %1438 = vmatpush1.msra.mxu0 0.0
  %1439 = vmatprep.subr.mxu0 0.0
  %1440 = vmatpush1.msra.mxu0 0.0
  %1441 = vmatprep.subr.mxu0 0.0
  %1442 = vmatpush1.msra.mxu0 0.0
  %1443 = vmatprep.subr.mxu0 0.0
  %1444 = vmatpush1.msra.mxu0 0.0
  %1445 = vmatprep.subr.mxu0 0.0
  %1446 = vmatpush1.msra.mxu0 0.0
  %1447 = vmatprep.subr.mxu0 0.0
  %1448 = vmatpush1.msra.mxu0 0.0
  %1449 = vmatprep.subr.mxu0 0.0
  %1450 = vmatpush1.msra.mxu0 0.0
  %1451 = vmatprep.subr.mxu0 0.0
  %1452 = vmatpush1.msra.mxu0 0.0
  %1453 = vmatprep.subr.mxu0 0.0
  %1454 = vmatpush1.msra.mxu0 0.0
  %1455 = vmatprep.subr.mxu0 0.0
  %1456 = vmatpush1.msra.mxu0 0.0
  %1457 = vmatprep.subr.mxu0 0.0
  %1458 = vmatpush1.msra.mxu0 0.0
  %1459 = vmatprep.mubr.f32.mxu0 0.0
  %1460 = vmatmul.mubr.f32.gmra.mrb[0].mxu0 %v1309
  %v1461 = vpop.f32.mrb[0].mxu0
  %v1462 = vadd.f32 0.0, %v1461
  %v1463 = vpop.f32.mrb[0].mxu0
  %1464 = vmatprep.mubr.f32.mxu0 0.0
  %1465 = vmatmul.mubr.f32.gmra.mrb[0].mxu0 %v1310
  %v1466 = vpop.f32.mrb[0].mxu0
  %v1467 = vadd.f32 0.0, %v1466
  %v1468 = vpop.f32.mrb[0].mxu0
  %1469 = vmatprep.mubr.f32.mxu0 0.0
  %1470 = vmatmul.mubr.f32.gmra.mrb[0].mxu0 %v1311
  %v1471 = vpop.f32.mrb[0].mxu0
  %v1472 = vadd.f32 0.0, %v1471
  %v1473 = vpop.f32.mrb[0].mxu0
  %1474 = vdwg.mxu0
  %v1475 = vadd.f32 %v261, %v1379
  %v1476 = vadd.f32 %v263, %v1381
  %v1477 = vadd.f32 %v267, %v1385
  %v1478 = vadd.f32 %v269, %v1387
  %v1479 = vadd.f32 %v273, %v1391
  %v1480 = vadd.f32 %v275, %v1393
  %v1481 = vxor.u32 %v1475, 2147483648
  %v1482 = vxor.u32 %v1476, 2147483648
  %v1483 = vxor.u32 %v1477, 2147483648
  %v1484 = vxor.u32 %v1478, 2147483648
  %v1485 = vxor.u32 %v1479, 2147483648
  %v1486 = vxor.u32 %v1480, 2147483648
  %v1487 = vmul.f32 %v1481, 1.442695
  %v1488 = vpow.pop %v1487
  %v1489 = vmul.f32 %v1482, 1.442695
  %v1490 = vpow.pop %v1489
  %v1491 = vmul.f32 %v1483, 1.442695
  %v1492 = vpow.pop %v1491
  %v1493 = vmul.f32 %v1484, 1.442695
  %v1494 = vpow.pop %v1493
  %v1495 = vmul.f32 %v1485, 1.442695
  %v1496 = vpow.pop %v1495
  %v1497 = vmul.f32 %v1486, 1.442695
  %v1498 = vpow.pop %v1497
  %v1499 = vadd.f32 %v1488, 1.0
  %v1500 = vadd.f32 %v1490, 1.0
  %v1501 = vadd.f32 %v1492, 1.0
  %v1502 = vadd.f32 %v1494, 1.0
  %v1503 = vadd.f32 %v1496, 1.0
  %v1504 = vadd.f32 %v1498, 1.0
  %v1505 = vrcp.pop %v1499
  %v1506 = vmul.f32 1.0, %v1505
  %v1507 = vrcp.pop %v1500
  %v1508 = vmul.f32 1.0, %v1507
  %v1509 = vrcp.pop %v1501
  %v1510 = vmul.f32 1.0, %v1509
  %v1511 = vrcp.pop %v1502
  %v1512 = vmul.f32 1.0, %v1511
  %v1513 = vrcp.pop %v1503
  %v1514 = vmul.f32 1.0, %v1513
  %v1515 = vrcp.pop %v1504
  %v1516 = vmul.f32 1.0, %v1515
  %v1517 = vadd.f32 %v1462, %v621
  %v1518 = vadd.f32 %v1467, %v621
  %v1519 = vadd.f32 %v1472, %v621
  %v1520 = vmul.f32 %v1506, %v1517
  %v1521 = vmul.f32 %v1510, %v1518
  %v1522 = vmul.f32 %v1514, %v1519
  %v1523 = vadd.f32 %v407, %v1520
  %v1524 = vadd.f32 %v412, %v1521
  %v1525 = vadd.f32 %v417, %v1522
  %v1526 = vtanh.pop %v1523
  %v1527 = vtanh.pop %v1524
  %v1528 = vtanh.pop %v1525
  %v1529 = vsub.f32 1.0, %v1508
  %v1530 = vsub.f32 1.0, %v1512
  %v1531 = vsub.f32 1.0, %v1516
  %v1532 = vmul.f32 %v1529, %v1526
  %v1533 = vmul.f32 %v1530, %v1527
  %v1534 = vmul.f32 %v1531, %v1528
  %v1535 = vmul.f32 %v1508, %v1309
  %v1536 = vmul.f32 %v1512, %v1310
  %v1537 = vmul.f32 %v1516, %v1311
  %v1538 = vadd.f32 %v1532, %v1535
  %v1539 = vadd.f32 %v1533, %v1536
  %v1540 = vadd.f32 %v1534, %v1537
  %1541 = vmatprep.subr.mxu0 %v570
  %1542 = vmatpush1.msra.mxu0 %v569
  %1543 = vmatprep.subr.mxu0 %v573
  %1544 = vmatpush1.msra.mxu0 %v572
  %1545 = vmatprep.subr.mxu0 %v576
  %1546 = vmatpush1.msra.mxu0 %v575
  %1547 = vmatprep.subr.mxu0 %v579
  %1548 = vmatpush1.msra.mxu0 %v578
  %1549 = vmatprep.subr.mxu0 %v582
  %1550 = vmatpush1.msra.mxu0 %v581
  %1551 = vmatprep.subr.mxu0 %v585
  %1552 = vmatpush1.msra.mxu0 %v584
  %1553 = vmatprep.subr.mxu0 %v588
  %1554 = vmatpush1.msra.mxu0 %v587
  %1555 = vmatprep.subr.mxu0 %v591
  %1556 = vmatpush1.msra.mxu0 %v590
  %1557 = vmatprep.subr.mxu0 %v594
  %1558 = vmatpush1.msra.mxu0 %v593
  %1559 = vmatprep.subr.mxu0 %v597
  %1560 = vmatpush1.msra.mxu0 %v596
  %1561 = vmatprep.subr.mxu0 %v600
  %1562 = vmatpush1.msra.mxu0 %v599
  %1563 = vmatprep.subr.mxu0 %v603
  %1564 = vmatpush1.msra.mxu0 %v602
  %1565 = vmatprep.subr.mxu0 %v606
  %1566 = vmatpush1.msra.mxu0 %v605
  %1567 = vmatprep.subr.mxu0 %v609
  %1568 = vmatpush1.msra.mxu0 %v608
  %1569 = vmatprep.subr.mxu0 %v612
  %1570 = vmatpush1.msra.mxu0 %v611
  %1571 = vmatprep.subr.mxu0 %v615
  %1572 = vmatpush1.msra.mxu0 %v614
  %1573 = vmatprep.subr.mxu0 0.0
  %1574 = vmatpush1.msra.mxu0 0.0
  %1575 = vmatprep.subr.mxu0 0.0
  %1576 = vmatpush1.msra.mxu0 0.0
  %1577 = vmatprep.subr.mxu0 0.0
  %1578 = vmatpush1.msra.mxu0 0.0
  %1579 = vmatprep.subr.mxu0 0.0
  %1580 = vmatpush1.msra.mxu0 0.0
  %1581 = vmatprep.subr.mxu0 0.0
  %1582 = vmatpush1.msra.mxu0 0.0
  %1583 = vmatprep.subr.mxu0 0.0
  %1584 = vmatpush1.msra.mxu0 0.0
  %1585 = vmatprep.subr.mxu0 0.0
  %1586 = vmatpush1.msra.mxu0 0.0
  %1587 = vmatprep.subr.mxu0 0.0
  %1588 = vmatpush1.msra.mxu0 0.0
  %1589 = vmatprep.subr.mxu0 0.0
  %1590 = vmatpush1.msra.mxu0 0.0
  %1591 = vmatprep.subr.mxu0 0.0
  %1592 = vmatpush1.msra.mxu0 0.0
  %1593 = vmatprep.subr.mxu0 0.0
  %1594 = vmatpush1.msra.mxu0 0.0
  %1595 = vmatprep.subr.mxu0 0.0
  %1596 = vmatpush1.msra.mxu0 0.0
  %1597 = vmatprep.subr.mxu0 0.0
  %1598 = vmatpush1.msra.mxu0 0.0
  %1599 = vmatprep.subr.mxu0 0.0
  %1600 = vmatpush1.msra.mxu0 0.0
  %1601 = vmatprep.subr.mxu0 0.0
  %1602 = vmatpush1.msra.mxu0 0.0
  %1603 = vmatprep.subr.mxu0 0.0
  %1604 = vmatpush1.msra.mxu0 0.0
  %1605 = vmatprep.mubr.f32.mxu0 0.0
  %1606 = vmatmul.mubr.f32.gmra.mrb[0].mxu0 %v1538
  %v1607 = vpop.f32.mrb[0].mxu0
  %v1608 = vadd.f32 0.0, %v1607
  %v1609 = vpop.f32.mrb[0].mxu0
  %v1610 = vadd.f32 0.0, %v1609
  %1611 = vmatprep.mubr.f32.mxu0 0.0
  %1612 = vmatmul.mubr.f32.gmra.mrb[0].mxu0 %v1539
  %v1613 = vpop.f32.mrb[0].mxu0
  %v1614 = vadd.f32 0.0, %v1613
  %v1615 = vpop.f32.mrb[0].mxu0
  %v1616 = vadd.f32 0.0, %v1615
  %1617 = vmatprep.mubr.f32.mxu0 0.0
  %1618 = vmatmul.mubr.f32.gmra.mrb[0].mxu0 %v1540
  %v1619 = vpop.f32.mrb[0].mxu0
  %v1620 = vadd.f32 0.0, %v1619
  %v1621 = vpop.f32.mrb[0].mxu0
  %v1622 = vadd.f32 0.0, %v1621
  %1623 = vdwg.mxu0
  %1624 = vmatprep.subr.mxu0 0.0
  %1625 = vmatpush1.msra.mxu0 %v571
  %1626 = vmatprep.subr.mxu0 0.0
  %1627 = vmatpush1.msra.mxu0 %v574
  %1628 = vmatprep.subr.mxu0 0.0
  %1629 = vmatpush1.msra.mxu0 %v577
  %1630 = vmatprep.subr.mxu0 0.0
  %1631 = vmatpush1.msra.mxu0 %v580
  %1632 = vmatprep.subr.mxu0 0.0
  %1633 = vmatpush1.msra.mxu0 %v583
  %1634 = vmatprep.subr.mxu0 0.0
  %1635 = vmatpush1.msra.mxu0 %v586
  %1636 = vmatprep.subr.mxu0 0.0
  %1637 = vmatpush1.msra.mxu0 %v589
  %1638 = vmatprep.subr.mxu0 0.0
  %1639 = vmatpush1.msra.mxu0 %v592
  %1640 = vmatprep.subr.mxu0 0.0
  %1641 = vmatpush1.msra.mxu0 %v595
  %1642 = vmatprep.subr.mxu0 0.0
  %1643 = vmatpush1.msra.mxu0 %v598
  %1644 = vmatprep.subr.mxu0 0.0
  %1645 = vmatpush1.msra.mxu0 %v601
  %1646 = vmatprep.subr.mxu0 0.0
  %1647 = vmatpush1.msra.mxu0 %v604
  %1648 = vmatprep.subr.mxu0 0.0
  %1649 = vmatpush1.msra.mxu0 %v607
  %1650 = vmatprep.subr.mxu0 0.0
  %1651 = vmatpush1.msra.mxu0 %v610
  %1652 = vmatprep.subr.mxu0 0.0
  %1653 = vmatpush1.msra.mxu0 %v613
  %1654 = vmatprep.subr.mxu0 0.0
  %1655 = vmatpush1.msra.mxu0 %v616
  %1656 = vmatprep.subr.mxu0 0.0
  %1657 = vmatpush1.msra.mxu0 0.0
  %1658 = vmatprep.subr.mxu0 0.0
  %1659 = vmatpush1.msra.mxu0 0.0
  %1660 = vmatprep.subr.mxu0 0.0
  %1661 = vmatpush1.msra.mxu0 0.0
  %1662 = vmatprep.subr.mxu0 0.0
  %1663 = vmatpush1.msra.mxu0 0.0
  %1664 = vmatprep.subr.mxu0 0.0
  %1665 = vmatpush1.msra.mxu0 0.0
  %1666 = vmatprep.subr.mxu0 0.0
  %1667 = vmatpush1.msra.mxu0 0.0
  %1668 = vmatprep.subr.mxu0 0.0
  %1669 = vmatpush1.msra.mxu0 0.0
  %1670 = vmatprep.subr.mxu0 0.0
  %1671 = vmatpush1.msra.mxu0 0.0
  %1672 = vmatprep.subr.mxu0 0.0
  %1673 = vmatpush1.msra.mxu0 0.0
  %1674 = vmatprep.subr.mxu0 0.0
  %1675 = vmatpush1.msra.mxu0 0.0
  %1676 = vmatprep.subr.mxu0 0.0
  %1677 = vmatpush1.msra.mxu0 0.0
  %1678 = vmatprep.subr.mxu0 0.0
  %1679 = vmatpush1.msra.mxu0 0.0
  %1680 = vmatprep.subr.mxu0 0.0
  %1681 = vmatpush1.msra.mxu0 0.0
  %1682 = vmatprep.subr.mxu0 0.0
  %1683 = vmatpush1.msra.mxu0 0.0
  %1684 = vmatprep.subr.mxu0 0.0
  %1685 = vmatpush1.msra.mxu0 0.0
  %1686 = vmatprep.subr.mxu0 0.0
  %1687 = vmatpush1.msra.mxu0 0.0
  %1688 = vmatprep.mubr.f32.mxu0 0.0
  %1689 = vmatmul.mubr.f32.gmra.mrb[0].mxu0 %v1538
  %v1690 = vpop.f32.mrb[0].mxu0
  %v1691 = vadd.f32 0.0, %v1690
  %v1692 = vpop.f32.mrb[0].mxu0
  %1693 = vmatprep.mubr.f32.mxu0 0.0
  %1694 = vmatmul.mubr.f32.gmra.mrb[0].mxu0 %v1539
  %v1695 = vpop.f32.mrb[0].mxu0
  %v1696 = vadd.f32 0.0, %v1695
  %v1697 = vpop.f32.mrb[0].mxu0
  %1698 = vmatprep.mubr.f32.mxu0 0.0
  %1699 = vmatmul.mubr.f32.gmra.mrb[0].mxu0 %v1540
  %v1700 = vpop.f32.mrb[0].mxu0
  %v1701 = vadd.f32 0.0, %v1700
  %v1702 = vpop.f32.mrb[0].mxu0
  %1703 = vdwg.mxu0
  %v1704 = vadd.f32 %v279, %v1608
  %v1705 = vadd.f32 %v281, %v1610
  %v1706 = vadd.f32 %v285, %v1614
  %v1707 = vadd.f32 %v287, %v1616
  %v1708 = vadd.f32 %v291, %v1620
  %v1709 = vadd.f32 %v293, %v1622
  %v1710 = vxor.u32 %v1704, 2147483648
  %v1711 = vxor.u32 %v1705, 2147483648
  %v1712 = vxor.u32 %v1706, 2147483648
  %v1713 = vxor.u32 %v1707, 2147483648
  %v1714 = vxor.u32 %v1708, 2147483648
  %v1715 = vxor.u32 %v1709, 2147483648
  %v1716 = vmul.f32 %v1710, 1.442695
  %v1717 = vpow.pop %v1716
  %v1718 = vmul.f32 %v1711, 1.442695
  %v1719 = vpow.pop %v1718
  %v1720 = vmul.f32 %v1712, 1.442695
  %v1721 = vpow.pop %v1720
  %v1722 = vmul.f32 %v1713, 1.442695
  %v1723 = vpow.pop %v1722
  %v1724 = vmul.f32 %v1714, 1.442695
  %v1725 = vpow.pop %v1724
  %v1726 = vmul.f32 %v1715, 1.442695
  %v1727 = vpow.pop %v1726
  %v1728 = vadd.f32 %v1717, 1.0
  %v1729 = vadd.f32 %v1719, 1.0
  %v1730 = vadd.f32 %v1721, 1.0
  %v1731 = vadd.f32 %v1723, 1.0
  %v1732 = vadd.f32 %v1725, 1.0
  %v1733 = vadd.f32 %v1727, 1.0
  %v1734 = vrcp.pop %v1728
  %v1735 = vmul.f32 1.0, %v1734
  %v1736 = vrcp.pop %v1729
  %v1737 = vmul.f32 1.0, %v1736
  %v1738 = vrcp.pop %v1730
  %v1739 = vmul.f32 1.0, %v1738
  %v1740 = vrcp.pop %v1731
  %v1741 = vmul.f32 1.0, %v1740
  %v1742 = vrcp.pop %v1732
  %v1743 = vmul.f32 1.0, %v1742
  %v1744 = vrcp.pop %v1733
  %v1745 = vmul.f32 1.0, %v1744
  %v1746 = vadd.f32 %v1691, %v621
  %v1747 = vadd.f32 %v1696, %v621
  %v1748 = vadd.f32 %v1701, %v621
  %v1749 = vmul.f32 %v1735, %v1746
  %v1750 = vmul.f32 %v1739, %v1747
  %v1751 = vmul.f32 %v1743, %v1748
  %v1752 = vadd.f32 %v422, %v1749
  %v1753 = vadd.f32 %v428, %v1750
  %v1754 = vadd.f32 %v434, %v1751
  %v1755 = vtanh.pop %v1752
  %v1756 = vtanh.pop %v1753
  %v1757 = vtanh.pop %v1754
  %v1758 = vsub.f32 1.0, %v1737
  %v1759 = vsub.f32 1.0, %v1741
  %v1760 = vsub.f32 1.0, %v1745
  %v1761 = vmul.f32 %v1758, %v1755
  %v1762 = vmul.f32 %v1759, %v1756
  %v1763 = vmul.f32 %v1760, %v1757
  %v1764 = vmul.f32 %v1737, %v1538
  %v1765 = vmul.f32 %v1741, %v1539
  %v1766 = vmul.f32 %v1745, %v1540
  %v1767 = vadd.f32 %v1761, %v1764
  %v1768 = vadd.f32 %v1762, %v1765
  %v1769 = vadd.f32 %v1763, %v1766
  %v1770 = vld [vmem:[%s4 + $0x6] sm:$0x1]
  %v1771 = vlaneseq
  %v1772 = vshrl.u32 %v1771, 7
  %v1773 = vsub.s32 0, %v1772
  %v1774 = vrot.slane %v1770, %v1773
  %v1775 = vld [vmem:[%s1 + $0x18] sm:$0xff]
  %v1776 = vld [vmem:[%s1 + $0x20] sm:$0xff]
  %v1777 = vld [vmem:[%s1 + $0x28] sm:$0xff]
  %v1778 = vld [vmem:[%s3 + $0x180] sm:$0xff]
  %v1779 = vld [vmem:[%s3 + $0x188] sm:$0xff]
  %v1780 = vld [vmem:[%s3 + $0x190] sm:$0xff]
  %v1781 = vld [vmem:[%s3 + $0x198] sm:$0xff]
  %v1782 = vld [vmem:[%s3 + $0x1a0] sm:$0xff]
  %v1783 = vld [vmem:[%s3 + $0x1a8] sm:$0xff]
  %v1784 = vld [vmem:[%s3 + $0x1b0] sm:$0xff]
  %v1785 = vld [vmem:[%s3 + $0x1b8] sm:$0xff]
  %v1786 = vld [vmem:[%s3 + $0x1c0] sm:$0xff]
  %v1787 = vld [vmem:[%s3 + $0x1c8] sm:$0xff]
  %v1788 = vld [vmem:[%s3 + $0x1d0] sm:$0xff]
  %v1789 = vld [vmem:[%s3 + $0x1d8] sm:$0xff]
  %v1790 = vld [vmem:[%s3 + $0x1e0] sm:$0xff]
  %v1791 = vld [vmem:[%s3 + $0x1e8] sm:$0xff]
  %v1792 = vld [vmem:[%s3 + $0x1f0] sm:$0xff]
  %v1793 = vld [vmem:[%s3 + $0x1f8] sm:$0xff]
  %v1794 = vld [vmem:[%s3 + $0x200] sm:$0xff]
  %v1795 = vld [vmem:[%s3 + $0x208] sm:$0xff]
  %v1796 = vld [vmem:[%s3 + $0x210] sm:$0xff]
  %v1797 = vld [vmem:[%s3 + $0x218] sm:$0xff]
  %v1798 = vld [vmem:[%s3 + $0x220] sm:$0xff]
  %v1799 = vld [vmem:[%s3 + $0x228] sm:$0xff]
  %v1800 = vld [vmem:[%s3 + $0x230] sm:$0xff]
  %v1801 = vld [vmem:[%s3 + $0x238] sm:$0xff]
  %v1802 = vld [vmem:[%s3 + $0x240] sm:$0xff]
  %v1803 = vld [vmem:[%s3 + $0x248] sm:$0xff]
  %v1804 = vld [vmem:[%s3 + $0x250] sm:$0xff]
  %v1805 = vld [vmem:[%s3 + $0x258] sm:$0xff]
  %v1806 = vld [vmem:[%s3 + $0x260] sm:$0xff]
  %v1807 = vld [vmem:[%s3 + $0x268] sm:$0xff]
  %v1808 = vld [vmem:[%s3 + $0x270] sm:$0xff]
  %v1809 = vld [vmem:[%s3 + $0x278] sm:$0xff]
  %v1810 = vld [vmem:[%s3 + $0x280] sm:$0xff]
  %v1811 = vld [vmem:[%s3 + $0x288] sm:$0xff]
  %v1812 = vld [vmem:[%s3 + $0x290] sm:$0xff]
  %v1813 = vld [vmem:[%s3 + $0x298] sm:$0xff]
  %v1814 = vld [vmem:[%s3 + $0x2a0] sm:$0xff]
  %v1815 = vld [vmem:[%s3 + $0x2a8] sm:$0xff]
  %v1816 = vld [vmem:[%s3 + $0x2b0] sm:$0xff]
  %v1817 = vld [vmem:[%s3 + $0x2b8] sm:$0xff]
  %v1818 = vld [vmem:[%s3 + $0x2c0] sm:$0xff]
  %v1819 = vld [vmem:[%s3 + $0x2c8] sm:$0xff]
  %v1820 = vld [vmem:[%s3 + $0x2d0] sm:$0xff]
  %v1821 = vld [vmem:[%s3 + $0x2d8] sm:$0xff]
  %v1822 = vld [vmem:[%s3 + $0x2e0] sm:$0xff]
  %v1823 = vld [vmem:[%s3 + $0x2e8] sm:$0xff]
  %v1824 = vld [vmem:[%s3 + $0x2f0] sm:$0xff]
  %v1825 = vld [vmem:[%s3 + $0x2f8] sm:$0xff]
  %1826 = vmatprep.subr.mxu0 %v1779
  %1827 = vmatpush1.msra.mxu0 %v1778
  %1828 = vmatprep.subr.mxu0 %v1782
  %1829 = vmatpush1.msra.mxu0 %v1781
  %1830 = vmatprep.subr.mxu0 %v1785
  %1831 = vmatpush1.msra.mxu0 %v1784
  %1832 = vmatprep.subr.mxu0 %v1788
  %1833 = vmatpush1.msra.mxu0 %v1787
  %1834 = vmatprep.subr.mxu0 %v1791
  %1835 = vmatpush1.msra.mxu0 %v1790
  %1836 = vmatprep.subr.mxu0 %v1794
  %1837 = vmatpush1.msra.mxu0 %v1793
  %1838 = vmatprep.subr.mxu0 %v1797
  %1839 = vmatpush1.msra.mxu0 %v1796
  %1840 = vmatprep.subr.mxu0 %v1800
  %1841 = vmatpush1.msra.mxu0 %v1799
  %1842 = vmatprep.subr.mxu0 %v1803
  %1843 = vmatpush1.msra.mxu0 %v1802
  %1844 = vmatprep.subr.mxu0 %v1806
  %1845 = vmatpush1.msra.mxu0 %v1805
  %1846 = vmatprep.subr.mxu0 %v1809
  %1847 = vmatpush1.msra.mxu0 %v1808
  %1848 = vmatprep.subr.mxu0 %v1812
  %1849 = vmatpush1.msra.mxu0 %v1811
  %1850 = vmatprep.subr.mxu0 %v1815
  %1851 = vmatpush1.msra.mxu0 %v1814
  %1852 = vmatprep.subr.mxu0 %v1818
  %1853 = vmatpush1.msra.mxu0 %v1817
  %1854 = vmatprep.subr.mxu0 %v1821
  %1855 = vmatpush1.msra.mxu0 %v1820
  %1856 = vmatprep.subr.mxu0 %v1824
  %1857 = vmatpush1.msra.mxu0 %v1823
  %1858 = vmatprep.subr.mxu0 0.0
  %1859 = vmatpush1.msra.mxu0 0.0
  %1860 = vmatprep.subr.mxu0 0.0
  %1861 = vmatpush1.msra.mxu0 0.0
  %1862 = vmatprep.subr.mxu0 0.0
  %1863 = vmatpush1.msra.mxu0 0.0
  %1864 = vmatprep.subr.mxu0 0.0
  %1865 = vmatpush1.msra.mxu0 0.0
  %1866 = vmatprep.subr.mxu0 0.0
  %1867 = vmatpush1.msra.mxu0 0.0
  %1868 = vmatprep.subr.mxu0 0.0
  %1869 = vmatpush1.msra.mxu0 0.0
  %1870 = vmatprep.subr.mxu0 0.0
  %1871 = vmatpush1.msra.mxu0 0.0
  %1872 = vmatprep.subr.mxu0 0.0
  %1873 = vmatpush1.msra.mxu0 0.0
  %1874 = vmatprep.subr.mxu0 0.0
  %1875 = vmatpush1.msra.mxu0 0.0
  %1876 = vmatprep.subr.mxu0 0.0
  %1877 = vmatpush1.msra.mxu0 0.0
  %1878 = vmatprep.subr.mxu0 0.0
  %1879 = vmatpush1.msra.mxu0 0.0
  %1880 = vmatprep.subr.mxu0 0.0
  %1881 = vmatpush1.msra.mxu0 0.0
  %1882 = vmatprep.subr.mxu0 0.0
  %1883 = vmatpush1.msra.mxu0 0.0
  %1884 = vmatprep.subr.mxu0 0.0
  %1885 = vmatpush1.msra.mxu0 0.0
  %1886 = vmatprep.subr.mxu0 0.0
  %1887 = vmatpush1.msra.mxu0 0.0
  %1888 = vmatprep.subr.mxu0 0.0
  %1889 = vmatpush1.msra.mxu0 0.0
  %1890 = vmatprep.mubr.f32.mxu0 0.0
  %1891 = vmatmul.mubr.f32.gmra.mrb[0].mxu0 %v1775
  %v1892 = vpop.f32.mrb[0].mxu0
  %v1893 = vadd.f32 0.0, %v1892
  %v1894 = vpop.f32.mrb[0].mxu0
  %v1895 = vadd.f32 0.0, %v1894
  %1896 = vmatprep.mubr.f32.mxu0 0.0
  %1897 = vmatmul.mubr.f32.gmra.mrb[0].mxu0 %v1776
  %v1898 = vpop.f32.mrb[0].mxu0
  %v1899 = vadd.f32 0.0, %v1898
  %v1900 = vpop.f32.mrb[0].mxu0
  %v1901 = vadd.f32 0.0, %v1900
  %1902 = vmatprep.mubr.f32.mxu0 0.0
  %1903 = vmatmul.mubr.f32.gmra.mrb[0].mxu0 %v1777
  %v1904 = vpop.f32.mrb[0].mxu0
  %v1905 = vadd.f32 0.0, %v1904
  %v1906 = vpop.f32.mrb[0].mxu0
  %v1907 = vadd.f32 0.0, %v1906
  %1908 = vdwg.mxu0
  %1909 = vmatprep.subr.mxu0 0.0
  %1910 = vmatpush1.msra.mxu0 %v1780
  %1911 = vmatprep.subr.mxu0 0.0
  %1912 = vmatpush1.msra.mxu0 %v1783
  %1913 = vmatprep.subr.mxu0 0.0
  %1914 = vmatpush1.msra.mxu0 %v1786
  %1915 = vmatprep.subr.mxu0 0.0
  %1916 = vmatpush1.msra.mxu0 %v1789
  %1917 = vmatprep.subr.mxu0 0.0
  %1918 = vmatpush1.msra.mxu0 %v1792
  %1919 = vmatprep.subr.mxu0 0.0
  %1920 = vmatpush1.msra.mxu0 %v1795
  %1921 = vmatprep.subr.mxu0 0.0
  %1922 = vmatpush1.msra.mxu0 %v1798
  %1923 = vmatprep.subr.mxu0 0.0
  %1924 = vmatpush1.msra.mxu0 %v1801
  %1925 = vmatprep.subr.mxu0 0.0
  %1926 = vmatpush1.msra.mxu0 %v1804
  %1927 = vmatprep.subr.mxu0 0.0
  %1928 = vmatpush1.msra.mxu0 %v1807
  %1929 = vmatprep.subr.mxu0 0.0
  %1930 = vmatpush1.msra.mxu0 %v1810
  %1931 = vmatprep.subr.mxu0 0.0
  %1932 = vmatpush1.msra.mxu0 %v1813
  %1933 = vmatprep.subr.mxu0 0.0
  %1934 = vmatpush1.msra.mxu0 %v1816
  %1935 = vmatprep.subr.mxu0 0.0
  %1936 = vmatpush1.msra.mxu0 %v1819
  %1937 = vmatprep.subr.mxu0 0.0
  %1938 = vmatpush1.msra.mxu0 %v1822
  %1939 = vmatprep.subr.mxu0 0.0
  %1940 = vmatpush1.msra.mxu0 %v1825
  %1941 = vmatprep.subr.mxu0 0.0
  %1942 = vmatpush1.msra.mxu0 0.0
  %1943 = vmatprep.subr.mxu0 0.0
  %1944 = vmatpush1.msra.mxu0 0.0
  %1945 = vmatprep.subr.mxu0 0.0
  %1946 = vmatpush1.msra.mxu0 0.0
  %1947 = vmatprep.subr.mxu0 0.0
  %1948 = vmatpush1.msra.mxu0 0.0
  %1949 = vmatprep.subr.mxu0 0.0
  %1950 = vmatpush1.msra.mxu0 0.0
  %1951 = vmatprep.subr.mxu0 0.0
  %1952 = vmatpush1.msra.mxu0 0.0
  %1953 = vmatprep.subr.mxu0 0.0
  %1954 = vmatpush1.msra.mxu0 0.0
  %1955 = vmatprep.subr.mxu0 0.0
  %1956 = vmatpush1.msra.mxu0 0.0
  %1957 = vmatprep.subr.mxu0 0.0
  %1958 = vmatpush1.msra.mxu0 0.0
  %1959 = vmatprep.subr.mxu0 0.0
  %1960 = vmatpush1.msra.mxu0 0.0
  %1961 = vmatprep.subr.mxu0 0.0
  %1962 = vmatpush1.msra.mxu0 0.0
  %1963 = vmatprep.subr.mxu0 0.0
  %1964 = vmatpush1.msra.mxu0 0.0
  %1965 = vmatprep.subr.mxu0 0.0
  %1966 = vmatpush1.msra.mxu0 0.0
  %1967 = vmatprep.subr.mxu0 0.0
  %1968 = vmatpush1.msra.mxu0 0.0
  %1969 = vmatprep.subr.mxu0 0.0
  %1970 = vmatpush1.msra.mxu0 0.0
  %1971 = vmatprep.subr.mxu0 0.0
  %1972 = vmatpush1.msra.mxu0 0.0
  %1973 = vmatprep.mubr.f32.mxu0 0.0
  %1974 = vmatmul.mubr.f32.gmra.mrb[0].mxu0 %v1775
  %v1975 = vpop.f32.mrb[0].mxu0
  %v1976 = vadd.f32 0.0, %v1975
  %v1977 = vpop.f32.mrb[0].mxu0
  %1978 = vmatprep.mubr.f32.mxu0 0.0
  %1979 = vmatmul.mubr.f32.gmra.mrb[0].mxu0 %v1776
  %v1980 = vpop.f32.mrb[0].mxu0
  %v1981 = vadd.f32 0.0, %v1980
  %v1982 = vpop.f32.mrb[0].mxu0
  %1983 = vmatprep.mubr.f32.mxu0 0.0
  %1984 = vmatmul.mubr.f32.gmra.mrb[0].mxu0 %v1777
  %v1985 = vpop.f32.mrb[0].mxu0
  %v1986 = vadd.f32 0.0, %v1985
  %v1987 = vpop.f32.mrb[0].mxu0
  %1988 = vdwg.mxu0
  %v1989 = vadd.f32 %v424, %v1893
  %v1990 = vadd.f32 %v553, %v1895
  %v1991 = vadd.f32 %v430, %v1899
  %v1992 = vadd.f32 %v559, %v1901
  %v1993 = vadd.f32 %v436, %v1905
  %v1994 = vadd.f32 %v565, %v1907
  %v1995 = vxor.u32 %v1989, 2147483648
  %v1996 = vxor.u32 %v1990, 2147483648
  %v1997 = vxor.u32 %v1991, 2147483648
  %v1998 = vxor.u32 %v1992, 2147483648
  %v1999 = vxor.u32 %v1993, 2147483648
  %v2000 = vxor.u32 %v1994, 2147483648
  %v2001 = vmul.f32 %v1995, 1.442695
  %v2002 = vpow.pop %v2001
  %v2003 = vmul.f32 %v1996, 1.442695
  %v2004 = vpow.pop %v2003
  %v2005 = vmul.f32 %v1997, 1.442695
  %v2006 = vpow.pop %v2005
  %v2007 = vmul.f32 %v1998, 1.442695
  %v2008 = vpow.pop %v2007
  %v2009 = vmul.f32 %v1999, 1.442695
  %v2010 = vpow.pop %v2009
  %v2011 = vmul.f32 %v2000, 1.442695
  %v2012 = vpow.pop %v2011
  %v2013 = vadd.f32 %v2002, 1.0
  %v2014 = vadd.f32 %v2004, 1.0
  %v2015 = vadd.f32 %v2006, 1.0
  %v2016 = vadd.f32 %v2008, 1.0
  %v2017 = vadd.f32 %v2010, 1.0
  %v2018 = vadd.f32 %v2012, 1.0
  %v2019 = vrcp.pop %v2013
  %v2020 = vmul.f32 1.0, %v2019
  %v2021 = vrcp.pop %v2014
  %v2022 = vmul.f32 1.0, %v2021
  %v2023 = vrcp.pop %v2015
  %v2024 = vmul.f32 1.0, %v2023
  %v2025 = vrcp.pop %v2016
  %v2026 = vmul.f32 1.0, %v2025
  %v2027 = vrcp.pop %v2017
  %v2028 = vmul.f32 1.0, %v2027
  %v2029 = vrcp.pop %v2018
  %v2030 = vmul.f32 1.0, %v2029
  %v2031 = vadd.f32 %v1976, %v1774
  %v2032 = vadd.f32 %v1981, %v1774
  %v2033 = vadd.f32 %v1986, %v1774
  %v2034 = vmul.f32 %v2020, %v2031
  %v2035 = vmul.f32 %v2024, %v2032
  %v2036 = vmul.f32 %v2028, %v2033
  %v2037 = vadd.f32 %v555, %v2034
  %v2038 = vadd.f32 %v561, %v2035
  %v2039 = vadd.f32 %v567, %v2036
  %v2040 = vtanh.pop %v2037
  %v2041 = vtanh.pop %v2038
  %v2042 = vtanh.pop %v2039
  %v2043 = vsub.f32 1.0, %v2022
  %v2044 = vsub.f32 1.0, %v2026
  %v2045 = vsub.f32 1.0, %v2030
  %v2046 = vmul.f32 %v2043, %v2040
  %v2047 = vmul.f32 %v2044, %v2041
  %v2048 = vmul.f32 %v2045, %v2042
  %v2049 = vmul.f32 %v2022, %v1775
  %v2050 = vmul.f32 %v2026, %v1776
  %v2051 = vmul.f32 %v2030, %v1777
  %v2052 = vadd.f32 %v2046, %v2049
  %v2053 = vadd.f32 %v2047, %v2050
  %v2054 = vadd.f32 %v2048, %v2051
  %v2055 = vld [vmem:[%s2 + $0xc0] sm:$0xff]
  %v2056 = vld [vmem:[%s2 + $0xc8] sm:$0xff]
  %v2057 = vld [vmem:[%s2 + $0xd0] sm:$0xff]
  %v2058 = vld [vmem:[%s2 + $0xd8] sm:$0xff]
  %v2059 = vld [vmem:[%s2 + $0xe0] sm:$0xff]
  %v2060 = vld [vmem:[%s2 + $0xe8] sm:$0xff]
  %v2061 = vld [vmem:[%s2 + $0xf0] sm:$0xff]
  %v2062 = vld [vmem:[%s2 + $0xf8] sm:$0xff]
  %v2063 = vld [vmem:[%s2 + $0x100] sm:$0xff]
  %v2064 = vld [vmem:[%s2 + $0x108] sm:$0xff]
  %v2065 = vld [vmem:[%s2 + $0x110] sm:$0xff]
  %v2066 = vld [vmem:[%s2 + $0x118] sm:$0xff]
  %v2067 = vld [vmem:[%s2 + $0x120] sm:$0xff]
  %v2068 = vld [vmem:[%s2 + $0x128] sm:$0xff]
  %v2069 = vld [vmem:[%s2 + $0x130] sm:$0xff]
  %v2070 = vld [vmem:[%s2 + $0x138] sm:$0xff]
  %v2071 = vld [vmem:[%s2 + $0x140] sm:$0xff]
  %v2072 = vld [vmem:[%s2 + $0x148] sm:$0xff]
  %v2073 = vld [vmem:[%s2 + $0x150] sm:$0xff]
  %v2074 = vld [vmem:[%s2 + $0x158] sm:$0xff]
  %v2075 = vld [vmem:[%s2 + $0x160] sm:$0xff]
  %v2076 = vld [vmem:[%s2 + $0x168] sm:$0xff]
  %v2077 = vld [vmem:[%s2 + $0x170] sm:$0xff]
  %v2078 = vld [vmem:[%s2 + $0x178] sm:$0xff]
  %v2079 = vld [vmem:[%s2 + $0x180] sm:$0xff]
  %v2080 = vld [vmem:[%s2 + $0x188] sm:$0xff]
  %v2081 = vld [vmem:[%s2 + $0x190] sm:$0xff]
  %v2082 = vld [vmem:[%s2 + $0x198] sm:$0xff]
  %v2083 = vld [vmem:[%s2 + $0x1a0] sm:$0xff]
  %v2084 = vld [vmem:[%s2 + $0x1a8] sm:$0xff]
  %v2085 = vld [vmem:[%s2 + $0x1b0] sm:$0xff]
  %v2086 = vld [vmem:[%s2 + $0x1b8] sm:$0xff]
  %v2087 = vld [vmem:[%s2 + $0x1c0] sm:$0xff]
  %v2088 = vld [vmem:[%s2 + $0x1c8] sm:$0xff]
  %v2089 = vld [vmem:[%s2 + $0x1d0] sm:$0xff]
  %v2090 = vld [vmem:[%s2 + $0x1d8] sm:$0xff]
  %v2091 = vld [vmem:[%s2 + $0x1e0] sm:$0xff]
  %v2092 = vld [vmem:[%s2 + $0x1e8] sm:$0xff]
  %v2093 = vld [vmem:[%s2 + $0x1f0] sm:$0xff]
  %v2094 = vld [vmem:[%s2 + $0x1f8] sm:$0xff]
  %v2095 = vld [vmem:[%s2 + $0x200] sm:$0xff]
  %v2096 = vld [vmem:[%s2 + $0x208] sm:$0xff]
  %v2097 = vld [vmem:[%s2 + $0x210] sm:$0xff]
  %v2098 = vld [vmem:[%s2 + $0x218] sm:$0xff]
  %v2099 = vld [vmem:[%s2 + $0x220] sm:$0xff]
  %v2100 = vld [vmem:[%s2 + $0x228] sm:$0xff]
  %v2101 = vld [vmem:[%s2 + $0x230] sm:$0xff]
  %v2102 = vld [vmem:[%s2 + $0x238] sm:$0xff]
  %v2103 = vld [vmem:[%s2 + $0x240] sm:$0xff]
  %v2104 = vld [vmem:[%s2 + $0x248] sm:$0xff]
  %v2105 = vld [vmem:[%s2 + $0x250] sm:$0xff]
  %v2106 = vld [vmem:[%s2 + $0x258] sm:$0xff]
  %v2107 = vld [vmem:[%s2 + $0x260] sm:$0xff]
  %v2108 = vld [vmem:[%s2 + $0x268] sm:$0xff]
  %v2109 = vld [vmem:[%s2 + $0x270] sm:$0xff]
  %v2110 = vld [vmem:[%s2 + $0x278] sm:$0xff]
  %v2111 = vld [vmem:[%s2 + $0x280] sm:$0xff]
  %v2112 = vld [vmem:[%s2 + $0x288] sm:$0xff]
  %v2113 = vld [vmem:[%s2 + $0x290] sm:$0xff]
  %v2114 = vld [vmem:[%s2 + $0x298] sm:$0xff]
  %v2115 = vld [vmem:[%s2 + $0x2a0] sm:$0xff]
  %v2116 = vld [vmem:[%s2 + $0x2a8] sm:$0xff]
  %v2117 = vld [vmem:[%s2 + $0x2b0] sm:$0xff]
  %v2118 = vld [vmem:[%s2 + $0x2b8] sm:$0xff]
  %v2119 = vld [vmem:[%s2 + $0x2c0] sm:$0xff]
  %v2120 = vld [vmem:[%s2 + $0x2c8] sm:$0xff]
  %v2121 = vld [vmem:[%s2 + $0x2d0] sm:$0xff]
  %v2122 = vld [vmem:[%s2 + $0x2d8] sm:$0xff]
  %v2123 = vld [vmem:[%s2 + $0x2e0] sm:$0xff]
  %v2124 = vld [vmem:[%s2 + $0x2e8] sm:$0xff]
  %v2125 = vld [vmem:[%s2 + $0x2f0] sm:$0xff]
  %v2126 = vld [vmem:[%s2 + $0x2f8] sm:$0xff]
  %v2127 = vld [vmem:[%s2 + $0x300] sm:$0xff]
  %v2128 = vld [vmem:[%s2 + $0x308] sm:$0xff]
  %v2129 = vld [vmem:[%s2 + $0x310] sm:$0xff]
  %v2130 = vld [vmem:[%s2 + $0x318] sm:$0xff]
  %v2131 = vld [vmem:[%s2 + $0x320] sm:$0xff]
  %v2132 = vld [vmem:[%s2 + $0x328] sm:$0xff]
  %v2133 = vld [vmem:[%s2 + $0x330] sm:$0xff]
  %v2134 = vld [vmem:[%s2 + $0x338] sm:$0xff]
  %v2135 = vld [vmem:[%s2 + $0x340] sm:$0xff]
  %v2136 = vld [vmem:[%s2 + $0x348] sm:$0xff]
  %v2137 = vld [vmem:[%s2 + $0x350] sm:$0xff]
  %v2138 = vld [vmem:[%s2 + $0x358] sm:$0xff]
  %v2139 = vld [vmem:[%s2 + $0x360] sm:$0xff]
  %v2140 = vld [vmem:[%s2 + $0x368] sm:$0xff]
  %v2141 = vld [vmem:[%s2 + $0x370] sm:$0xff]
  %v2142 = vld [vmem:[%s2 + $0x378] sm:$0xff]
  %v2143 = vld [vmem:[%s2 + $0x380] sm:$0xff]
  %v2144 = vld [vmem:[%s2 + $0x388] sm:$0xff]
  %v2145 = vld [vmem:[%s2 + $0x390] sm:$0xff]
  %v2146 = vld [vmem:[%s2 + $0x398] sm:$0xff]
  %v2147 = vld [vmem:[%s2 + $0x3a0] sm:$0xff]
  %v2148 = vld [vmem:[%s2 + $0x3a8] sm:$0xff]
  %v2149 = vld [vmem:[%s2 + $0x3b0] sm:$0xff]
  %v2150 = vld [vmem:[%s2 + $0x3b8] sm:$0xff]
  %v2151 = vld [vmem:[%s2 + $0x3c0] sm:$0xff]
  %v2152 = vld [vmem:[%s2 + $0x3c8] sm:$0xff]
  %v2153 = vld [vmem:[%s2 + $0x3d0] sm:$0xff]
  %v2154 = vld [vmem:[%s2 + $0x3d8] sm:$0xff]
  %v2155 = vld [vmem:[%s2 + $0x3e0] sm:$0xff]
  %v2156 = vld [vmem:[%s2 + $0x3e8] sm:$0xff]
  %v2157 = vld [vmem:[%s2 + $0x3f0] sm:$0xff]
  %v2158 = vld [vmem:[%s2 + $0x3f8] sm:$0xff]
  %v2159 = vld [vmem:[%s2 + $0x400] sm:$0xff]
  %v2160 = vld [vmem:[%s2 + $0x408] sm:$0xff]
  %v2161 = vld [vmem:[%s2 + $0x410] sm:$0xff]
  %v2162 = vld [vmem:[%s2 + $0x418] sm:$0xff]
  %v2163 = vld [vmem:[%s2 + $0x420] sm:$0xff]
  %v2164 = vld [vmem:[%s2 + $0x428] sm:$0xff]
  %v2165 = vld [vmem:[%s2 + $0x430] sm:$0xff]
  %v2166 = vld [vmem:[%s2 + $0x438] sm:$0xff]
  %v2167 = vld [vmem:[%s2 + $0x440] sm:$0xff]
  %v2168 = vld [vmem:[%s2 + $0x448] sm:$0xff]
  %v2169 = vld [vmem:[%s2 + $0x450] sm:$0xff]
  %v2170 = vld [vmem:[%s2 + $0x458] sm:$0xff]
  %v2171 = vld [vmem:[%s2 + $0x460] sm:$0xff]
  %v2172 = vld [vmem:[%s2 + $0x468] sm:$0xff]
  %v2173 = vld [vmem:[%s2 + $0x470] sm:$0xff]
  %v2174 = vld [vmem:[%s2 + $0x478] sm:$0xff]
  %v2175 = vld [vmem:[%s2 + $0x480] sm:$0xff]
  %v2176 = vld [vmem:[%s2 + $0x488] sm:$0xff]
  %v2177 = vld [vmem:[%s2 + $0x490] sm:$0xff]
  %v2178 = vld [vmem:[%s2 + $0x498] sm:$0xff]
  %v2179 = vld [vmem:[%s2 + $0x4a0] sm:$0xff]
  %v2180 = vld [vmem:[%s2 + $0x4a8] sm:$0xff]
  %v2181 = vld [vmem:[%s2 + $0x4b0] sm:$0xff]
  %v2182 = vld [vmem:[%s2 + $0x4b8] sm:$0xff]
  %v2183 = vld [vmem:[%s2 + $0x4c0] sm:$0xff]
  %v2184 = vld [vmem:[%s2 + $0x4c8] sm:$0xff]
  %v2185 = vld [vmem:[%s2 + $0x4d0] sm:$0xff]
  %v2186 = vld [vmem:[%s2 + $0x4d8] sm:$0xff]
  %v2187 = vld [vmem:[%s2 + $0x4e0] sm:$0xff]
  %v2188 = vld [vmem:[%s2 + $0x4e8] sm:$0xff]
  %v2189 = vld [vmem:[%s2 + $0x4f0] sm:$0xff]
  %v2190 = vld [vmem:[%s2 + $0x4f8] sm:$0xff]
  %v2191 = vld [vmem:[%s2 + $0x500] sm:$0xff]
  %v2192 = vld [vmem:[%s2 + $0x508] sm:$0xff]
  %v2193 = vld [vmem:[%s2 + $0x510] sm:$0xff]
  %v2194 = vld [vmem:[%s2 + $0x518] sm:$0xff]
  %v2195 = vld [vmem:[%s2 + $0x520] sm:$0xff]
  %v2196 = vld [vmem:[%s2 + $0x528] sm:$0xff]
  %v2197 = vld [vmem:[%s2 + $0x530] sm:$0xff]
  %v2198 = vld [vmem:[%s2 + $0x538] sm:$0xff]
  %v2199 = vld [vmem:[%s2 + $0x540] sm:$0xff]
  %v2200 = vld [vmem:[%s2 + $0x548] sm:$0xff]
  %v2201 = vld [vmem:[%s2 + $0x550] sm:$0xff]
  %v2202 = vld [vmem:[%s2 + $0x558] sm:$0xff]
  %v2203 = vld [vmem:[%s2 + $0x560] sm:$0xff]
  %v2204 = vld [vmem:[%s2 + $0x568] sm:$0xff]
  %v2205 = vld [vmem:[%s2 + $0x570] sm:$0xff]
  %v2206 = vld [vmem:[%s2 + $0x578] sm:$0xff]
  %v2207 = vld [vmem:[%s2 + $0x580] sm:$0xff]
  %v2208 = vld [vmem:[%s2 + $0x588] sm:$0xff]
  %v2209 = vld [vmem:[%s2 + $0x590] sm:$0xff]
  %v2210 = vld [vmem:[%s2 + $0x598] sm:$0xff]
  %v2211 = vld [vmem:[%s2 + $0x5a0] sm:$0xff]
  %v2212 = vld [vmem:[%s2 + $0x5a8] sm:$0xff]
  %v2213 = vld [vmem:[%s2 + $0x5b0] sm:$0xff]
  %v2214 = vld [vmem:[%s2 + $0x5b8] sm:$0xff]
  %v2215 = vld [vmem:[%s2 + $0x5c0] sm:$0xff]
  %v2216 = vld [vmem:[%s2 + $0x5c8] sm:$0xff]
  %v2217 = vld [vmem:[%s2 + $0x5d0] sm:$0xff]
  %v2218 = vld [vmem:[%s2 + $0x5d8] sm:$0xff]
  %v2219 = vld [vmem:[%s2 + $0x5e0] sm:$0xff]
  %v2220 = vld [vmem:[%s2 + $0x5e8] sm:$0xff]
  %v2221 = vld [vmem:[%s2 + $0x5f0] sm:$0xff]
  %v2222 = vld [vmem:[%s2 + $0x5f8] sm:$0xff]
  %v2223 = vld [vmem:[%s2 + $0x600] sm:$0xff]
  %v2224 = vld [vmem:[%s2 + $0x608] sm:$0xff]
  %v2225 = vld [vmem:[%s2 + $0x610] sm:$0xff]
  %v2226 = vld [vmem:[%s2 + $0x618] sm:$0xff]
  %v2227 = vld [vmem:[%s2 + $0x620] sm:$0xff]
  %v2228 = vld [vmem:[%s2 + $0x628] sm:$0xff]
  %v2229 = vld [vmem:[%s2 + $0x630] sm:$0xff]
  %v2230 = vld [vmem:[%s2 + $0x638] sm:$0xff]
  %v2231 = vld [vmem:[%s2 + $0x640] sm:$0xff]
  %v2232 = vld [vmem:[%s2 + $0x648] sm:$0xff]
  %v2233 = vld [vmem:[%s2 + $0x650] sm:$0xff]
  %v2234 = vld [vmem:[%s2 + $0x658] sm:$0xff]
  %v2235 = vld [vmem:[%s2 + $0x660] sm:$0xff]
  %v2236 = vld [vmem:[%s2 + $0x668] sm:$0xff]
  %v2237 = vld [vmem:[%s2 + $0x670] sm:$0xff]
  %v2238 = vld [vmem:[%s2 + $0x678] sm:$0xff]
  %v2239 = vld [vmem:[%s2 + $0x680] sm:$0xff]
  %v2240 = vld [vmem:[%s2 + $0x688] sm:$0xff]
  %v2241 = vld [vmem:[%s2 + $0x690] sm:$0xff]
  %v2242 = vld [vmem:[%s2 + $0x698] sm:$0xff]
  %v2243 = vld [vmem:[%s2 + $0x6a0] sm:$0xff]
  %v2244 = vld [vmem:[%s2 + $0x6a8] sm:$0xff]
  %v2245 = vld [vmem:[%s2 + $0x6b0] sm:$0xff]
  %v2246 = vld [vmem:[%s2 + $0x6b8] sm:$0xff]
  %2247 = vmatprep.subr.mxu0 %v2152
  %2248 = vmatpush1.msra.mxu0 %v2151
  %2249 = vmatprep.subr.mxu0 %v2158
  %2250 = vmatpush1.msra.mxu0 %v2157
  %2251 = vmatprep.subr.mxu0 %v2164
  %2252 = vmatpush1.msra.mxu0 %v2163
  %2253 = vmatprep.subr.mxu0 %v2170
  %2254 = vmatpush1.msra.mxu0 %v2169
  %2255 = vmatprep.subr.mxu0 %v2176
  %2256 = vmatpush1.msra.mxu0 %v2175
  %2257 = vmatprep.subr.mxu0 %v2182
  %2258 = vmatpush1.msra.mxu0 %v2181
  %2259 = vmatprep.subr.mxu0 %v2188
  %2260 = vmatpush1.msra.mxu0 %v2187
  %2261 = vmatprep.subr.mxu0 %v2194
  %2262 = vmatpush1.msra.mxu0 %v2193
  %2263 = vmatprep.subr.mxu0 %v2200
  %2264 = vmatpush1.msra.mxu0 %v2199
  %2265 = vmatprep.subr.mxu0 %v2206
  %2266 = vmatpush1.msra.mxu0 %v2205
  %2267 = vmatprep.subr.mxu0 %v2212
  %2268 = vmatpush1.msra.mxu0 %v2211
  %2269 = vmatprep.subr.mxu0 %v2218
  %2270 = vmatpush1.msra.mxu0 %v2217
  %2271 = vmatprep.subr.mxu0 %v2224
  %2272 = vmatpush1.msra.mxu0 %v2223
  %2273 = vmatprep.subr.mxu0 %v2230
  %2274 = vmatpush1.msra.mxu0 %v2229
  %2275 = vmatprep.subr.mxu0 %v2236
  %2276 = vmatpush1.msra.mxu0 %v2235
  %2277 = vmatprep.subr.mxu0 %v2242
  %2278 = vmatpush1.msra.mxu0 %v2241
  %2279 = vmatprep.subr.mxu0 0.0
  %2280 = vmatpush1.msra.mxu0 0.0
  %2281 = vmatprep.subr.mxu0 0.0
  %2282 = vmatpush1.msra.mxu0 0.0
  %2283 = vmatprep.subr.mxu0 0.0
  %2284 = vmatpush1.msra.mxu0 0.0
  %2285 = vmatprep.subr.mxu0 0.0
  %2286 = vmatpush1.msra.mxu0 0.0
  %2287 = vmatprep.subr.mxu0 0.0
  %2288 = vmatpush1.msra.mxu0 0.0
  %2289 = vmatprep.subr.mxu0 0.0
  %2290 = vmatpush1.msra.mxu0 0.0
  %2291 = vmatprep.subr.mxu0 0.0
  %2292 = vmatpush1.msra.mxu0 0.0
  %2293 = vmatprep.subr.mxu0 0.0
  %2294 = vmatpush1.msra.mxu0 0.0
  %2295 = vmatprep.subr.mxu0 0.0
  %2296 = vmatpush1.msra.mxu0 0.0
  %2297 = vmatprep.subr.mxu0 0.0
  %2298 = vmatpush1.msra.mxu0 0.0
  %2299 = vmatprep.subr.mxu0 0.0
  %2300 = vmatpush1.msra.mxu0 0.0
  %2301 = vmatprep.subr.mxu0 0.0
  %2302 = vmatpush1.msra.mxu0 0.0
  %2303 = vmatprep.subr.mxu0 0.0
  %2304 = vmatpush1.msra.mxu0 0.0
  %2305 = vmatprep.subr.mxu0 0.0
  %2306 = vmatpush1.msra.mxu0 0.0
  %2307 = vmatprep.subr.mxu0 0.0
  %2308 = vmatpush1.msra.mxu0 0.0
  %2309 = vmatprep.subr.mxu0 0.0
  %2310 = vmatpush1.msra.mxu0 0.0
  %2311 = vmatprep.mubr.f32.mxu0 0.0
  %2312 = vmatmul.mubr.f32.gmra.mrb[0].mxu0 %v2052
  %v2313 = vpop.f32.mrb[0].mxu0
  %v2314 = vadd.f32 0.0, %v2313
  %v2315 = vpop.f32.mrb[0].mxu0
  %v2316 = vadd.f32 0.0, %v2315
  %2317 = vmatprep.mubr.f32.mxu0 0.0
  %2318 = vmatmul.mubr.f32.gmra.mrb[0].mxu0 %v2053
  %v2319 = vpop.f32.mrb[0].mxu0
  %v2320 = vadd.f32 0.0, %v2319
  %v2321 = vpop.f32.mrb[0].mxu0
  %v2322 = vadd.f32 0.0, %v2321
  %2323 = vmatprep.mubr.f32.mxu0 0.0
  %2324 = vmatmul.mubr.f32.gmra.mrb[0].mxu0 %v2054
  %v2325 = vpop.f32.mrb[0].mxu0
  %v2326 = vadd.f32 0.0, %v2325
  %v2327 = vpop.f32.mrb[0].mxu0
  %v2328 = vadd.f32 0.0, %v2327
  %2329 = vdwg.mxu0
  %2330 = vmatprep.subr.mxu0 %v2154
  %2331 = vmatpush1.msra.mxu0 %v2153
  %2332 = vmatprep.subr.mxu0 %v2160
  %2333 = vmatpush1.msra.mxu0 %v2159
  %2334 = vmatprep.subr.mxu0 %v2166
  %2335 = vmatpush1.msra.mxu0 %v2165
  %2336 = vmatprep.subr.mxu0 %v2172
  %2337 = vmatpush1.msra.mxu0 %v2171
  %2338 = vmatprep.subr.mxu0 %v2178
  %2339 = vmatpush1.msra.mxu0 %v2177
  %2340 = vmatprep.subr.mxu0 %v2184
  %2341 = vmatpush1.msra.mxu0 %v2183
  %2342 = vmatprep.subr.mxu0 %v2190
  %2343 = vmatpush1.msra.mxu0 %v2189
  %2344 = vmatprep.subr.mxu0 %v2196
  %2345 = vmatpush1.msra.mxu0 %v2195
  %2346 = vmatprep.subr.mxu0 %v2202
  %2347 = vmatpush1.msra.mxu0 %v2201
  %2348 = vmatprep.subr.mxu0 %v2208
  %2349 = vmatpush1.msra.mxu0 %v2207
  %2350 = vmatprep.subr.mxu0 %v2214
  %2351 = vmatpush1.msra.mxu0 %v2213
  %2352 = vmatprep.subr.mxu0 %v2220
  %2353 = vmatpush1.msra.mxu0 %v2219
  %2354 = vmatprep.subr.mxu0 %v2226
  %2355 = vmatpush1.msra.mxu0 %v2225
  %2356 = vmatprep.subr.mxu0 %v2232
  %2357 = vmatpush1.msra.mxu0 %v2231
  %2358 = vmatprep.subr.mxu0 %v2238
  %2359 = vmatpush1.msra.mxu0 %v2237
  %2360 = vmatprep.subr.mxu0 %v2244
  %2361 = vmatpush1.msra.mxu0 %v2243
  %2362 = vmatprep.subr.mxu0 0.0
  %2363 = vmatpush1.msra.mxu0 0.0
  %2364 = vmatprep.subr.mxu0 0.0
  %2365 = vmatpush1.msra.mxu0 0.0
  %2366 = vmatprep.subr.mxu0 0.0
  %2367 = vmatpush1.msra.mxu0 0.0
  %2368 = vmatprep.subr.mxu0 0.0
  %2369 = vmatpush1.msra.mxu0 0.0
  %2370 = vmatprep.subr.mxu0 0.0
  %2371 = vmatpush1.msra.mxu0 0.0
  %2372 = vmatprep.subr.mxu0 0.0
  %2373 = vmatpush1.msra.mxu0 0.0
  %2374 = vmatprep.subr.mxu0 0.0
  %2375 = vmatpush1.msra.mxu0 0.0
  %2376 = vmatprep.subr.mxu0 0.0
  %2377 = vmatpush1.msra.mxu0 0.0
  %2378 = vmatprep.subr.mxu0 0.0
  %2379 = vmatpush1.msra.mxu0 0.0
  %2380 = vmatprep.subr.mxu0 0.0
  %2381 = vmatpush1.msra.mxu0 0.0
  %2382 = vmatprep.subr.mxu0 0.0
  %2383 = vmatpush1.msra.mxu0 0.0
  %2384 = vmatprep.subr.mxu0 0.0
  %2385 = vmatpush1.msra.mxu0 0.0
  %2386 = vmatprep.subr.mxu0 0.0
  %2387 = vmatpush1.msra.mxu0 0.0
  %2388 = vmatprep.subr.mxu0 0.0
  %2389 = vmatpush1.msra.mxu0 0.0
  %2390 = vmatprep.subr.mxu0 0.0
  %2391 = vmatpush1.msra.mxu0 0.0
  %2392 = vmatprep.subr.mxu0 0.0
  %2393 = vmatpush1.msra.mxu0 0.0
  %2394 = vmatprep.mubr.f32.mxu0 0.0
  %2395 = vmatmul.mubr.f32.gmra.mrb[0].mxu0 %v2052
  %v2396 = vpop.f32.mrb[0].mxu0
  %v2397 = vadd.f32 0.0, %v2396
  %v2398 = vpop.f32.mrb[0].mxu0
  %2399 = vmatprep.mubr.f32.mxu0 0.0
  %2400 = vmatmul.mubr.f32.gmra.mrb[0].mxu0 %v2053
  %v2401 = vpop.f32.mrb[0].mxu0
  %v2402 = vadd.f32 0.0, %v2401
  %v2403 = vpop.f32.mrb[0].mxu0
  %2404 = vmatprep.mubr.f32.mxu0 0.0
  %2405 = vmatmul.mubr.f32.gmra.mrb[0].mxu0 %v2054
  %v2406 = vpop.f32.mrb[0].mxu0
  %v2407 = vadd.f32 0.0, %v2406
  %v2408 = vpop.f32.mrb[0].mxu0
  %v2409 = vadd.f32 0.0, %v2408
  %2410 = vdwg.mxu0
  %2411 = vmatprep.subr.mxu0 %v2156
  %2412 = vmatpush1.msra.mxu0 %v2155
  %2413 = vmatprep.subr.mxu0 %v2162
  %2414 = vmatpush1.msra.mxu0 %v2161
  %2415 = vmatprep.subr.mxu0 %v2168
  %2416 = vmatpush1.msra.mxu0 %v2167
  %2417 = vmatprep.subr.mxu0 %v2174
  %2418 = vmatpush1.msra.mxu0 %v2173
  %2419 = vmatprep.subr.mxu0 %v2180
  %2420 = vmatpush1.msra.mxu0 %v2179
  %2421 = vmatprep.subr.mxu0 %v2186
  %2422 = vmatpush1.msra.mxu0 %v2185
  %2423 = vmatprep.subr.mxu0 %v2192
  %2424 = vmatpush1.msra.mxu0 %v2191
  %2425 = vmatprep.subr.mxu0 %v2198
  %2426 = vmatpush1.msra.mxu0 %v2197
  %2427 = vmatprep.subr.mxu0 %v2204
  %2428 = vmatpush1.msra.mxu0 %v2203
  %2429 = vmatprep.subr.mxu0 %v2210
  %2430 = vmatpush1.msra.mxu0 %v2209
  %2431 = vmatprep.subr.mxu0 %v2216
  %2432 = vmatpush1.msra.mxu0 %v2215
  %2433 = vmatprep.subr.mxu0 %v2222
  %2434 = vmatpush1.msra.mxu0 %v2221
  %2435 = vmatprep.subr.mxu0 %v2228
  %2436 = vmatpush1.msra.mxu0 %v2227
  %2437 = vmatprep.subr.mxu0 %v2234
  %2438 = vmatpush1.msra.mxu0 %v2233
  %2439 = vmatprep.subr.mxu0 %v2240
  %2440 = vmatpush1.msra.mxu0 %v2239
  %2441 = vmatprep.subr.mxu0 %v2246
  %2442 = vmatpush1.msra.mxu0 %v2245
  %2443 = vmatprep.subr.mxu0 0.0
  %2444 = vmatpush1.msra.mxu0 0.0
  %2445 = vmatprep.subr.mxu0 0.0
  %2446 = vmatpush1.msra.mxu0 0.0
  %2447 = vmatprep.subr.mxu0 0.0
  %2448 = vmatpush1.msra.mxu0 0.0
  %2449 = vmatprep.subr.mxu0 0.0
  %2450 = vmatpush1.msra.mxu0 0.0
  %2451 = vmatprep.subr.mxu0 0.0
  %2452 = vmatpush1.msra.mxu0 0.0
  %2453 = vmatprep.subr.mxu0 0.0
  %2454 = vmatpush1.msra.mxu0 0.0
  %2455 = vmatprep.subr.mxu0 0.0
  %2456 = vmatpush1.msra.mxu0 0.0
  %2457 = vmatprep.subr.mxu0 0.0
  %2458 = vmatpush1.msra.mxu0 0.0
  %2459 = vmatprep.subr.mxu0 0.0
  %2460 = vmatpush1.msra.mxu0 0.0
  %2461 = vmatprep.subr.mxu0 0.0
  %2462 = vmatpush1.msra.mxu0 0.0
  %2463 = vmatprep.subr.mxu0 0.0
  %2464 = vmatpush1.msra.mxu0 0.0
  %2465 = vmatprep.subr.mxu0 0.0
  %2466 = vmatpush1.msra.mxu0 0.0
  %2467 = vmatprep.subr.mxu0 0.0
  %2468 = vmatpush1.msra.mxu0 0.0
  %2469 = vmatprep.subr.mxu0 0.0
  %2470 = vmatpush1.msra.mxu0 0.0
  %2471 = vmatprep.subr.mxu0 0.0
  %2472 = vmatpush1.msra.mxu0 0.0
  %2473 = vmatprep.subr.mxu0 0.0
  %2474 = vmatpush1.msra.mxu0 0.0
  %2475 = vmatprep.mubr.f32.mxu0 0.0
  %2476 = vmatmul.mubr.f32.gmra.mrb[0].mxu0 %v2052
  %v2477 = vpop.f32.mrb[0].mxu0
  %v2478 = vpop.f32.mrb[0].mxu0
  %2479 = vmatprep.mubr.f32.mxu0 0.0
  %2480 = vmatmul.mubr.f32.gmra.mrb[0].mxu0 %v2053
  %v2481 = vpop.f32.mrb[0].mxu0
  %v2482 = vpop.f32.mrb[0].mxu0
  %2483 = vmatprep.mubr.f32.mxu0 0.0
  %2484 = vmatmul.mubr.f32.gmra.mrb[0].mxu0 %v2054
  %v2485 = vpop.f32.mrb[0].mxu0
  %v2486 = vadd.f32 0.0, %v2485
  %v2487 = vpop.f32.mrb[0].mxu0
  %v2488 = vadd.f32 0.0, %v2487
  %2489 = vdwg.mxu0
  %2490 = vmatprep.subr.mxu0 %v2056
  %2491 = vmatpush1.msra.mxu0 %v2055
  %2492 = vmatprep.subr.mxu0 %v2062
  %2493 = vmatpush1.msra.mxu0 %v2061
  %2494 = vmatprep.subr.mxu0 %v2068
  %2495 = vmatpush1.msra.mxu0 %v2067
  %2496 = vmatprep.subr.mxu0 %v2074
  %2497 = vmatpush1.msra.mxu0 %v2073
  %2498 = vmatprep.subr.mxu0 %v2080
  %2499 = vmatpush1.msra.mxu0 %v2079
  %2500 = vmatprep.subr.mxu0 %v2086
  %2501 = vmatpush1.msra.mxu0 %v2085
  %2502 = vmatprep.subr.mxu0 %v2092
  %2503 = vmatpush1.msra.mxu0 %v2091
  %2504 = vmatprep.subr.mxu0 %v2098
  %2505 = vmatpush1.msra.mxu0 %v2097
  %2506 = vmatprep.subr.mxu0 %v2104
  %2507 = vmatpush1.msra.mxu0 %v2103
  %2508 = vmatprep.subr.mxu0 %v2110
  %2509 = vmatpush1.msra.mxu0 %v2109
  %2510 = vmatprep.subr.mxu0 %v2116
  %2511 = vmatpush1.msra.mxu0 %v2115
  %2512 = vmatprep.subr.mxu0 %v2122
  %2513 = vmatpush1.msra.mxu0 %v2121
  %2514 = vmatprep.subr.mxu0 %v2128
  %2515 = vmatpush1.msra.mxu0 %v2127
  %2516 = vmatprep.subr.mxu0 %v2134
  %2517 = vmatpush1.msra.mxu0 %v2133
  %2518 = vmatprep.subr.mxu0 %v2140
  %2519 = vmatpush1.msra.mxu0 %v2139
  %2520 = vmatprep.subr.mxu0 %v2146
  %2521 = vmatpush1.msra.mxu0 %v2145
  %2522 = vmatprep.subr.mxu0 0.0
  %2523 = vmatpush1.msra.mxu0 0.0
  %2524 = vmatprep.subr.mxu0 0.0
  %2525 = vmatpush1.msra.mxu0 0.0
  %2526 = vmatprep.subr.mxu0 0.0
  %2527 = vmatpush1.msra.mxu0 0.0
  %2528 = vmatprep.subr.mxu0 0.0
  %2529 = vmatpush1.msra.mxu0 0.0
  %2530 = vmatprep.subr.mxu0 0.0
  %2531 = vmatpush1.msra.mxu0 0.0
  %2532 = vmatprep.subr.mxu0 0.0
  %2533 = vmatpush1.msra.mxu0 0.0
  %2534 = vmatprep.subr.mxu0 0.0
  %2535 = vmatpush1.msra.mxu0 0.0
  %2536 = vmatprep.subr.mxu0 0.0
  %2537 = vmatpush1.msra.mxu0 0.0
  %2538 = vmatprep.subr.mxu0 0.0
  %2539 = vmatpush1.msra.mxu0 0.0
  %2540 = vmatprep.subr.mxu0 0.0
  %2541 = vmatpush1.msra.mxu0 0.0
  %2542 = vmatprep.subr.mxu0 0.0
  %2543 = vmatpush1.msra.mxu0 0.0
  %2544 = vmatprep.subr.mxu0 0.0
  %2545 = vmatpush1.msra.mxu0 0.0
  %2546 = vmatprep.subr.mxu0 0.0
  %2547 = vmatpush1.msra.mxu0 0.0
  %2548 = vmatprep.subr.mxu0 0.0
  %2549 = vmatpush1.msra.mxu0 0.0
  %2550 = vmatprep.subr.mxu0 0.0
  %2551 = vmatpush1.msra.mxu0 0.0
  %2552 = vmatprep.subr.mxu0 0.0
  %2553 = vmatpush1.msra.mxu0 0.0
  %2554 = vmatprep.mubr.f32.mxu0 0.0
  %2555 = vmatmul.mubr.f32.gmra.mrb[0].mxu0 %v1767
  %v2556 = vpop.f32.mrb[0].mxu0
  %v2557 = vadd.f32 %v2314, %v2556
  %v2558 = vpop.f32.mrb[0].mxu0
  %v2559 = vadd.f32 %v2316, %v2558
  %2560 = vmatprep.mubr.f32.mxu0 0.0
  %2561 = vmatmul.mubr.f32.gmra.mrb[0].mxu0 %v1768
  %v2562 = vpop.f32.mrb[0].mxu0
  %v2563 = vadd.f32 %v2320, %v2562
  %v2564 = vpop.f32.mrb[0].mxu0
  %v2565 = vadd.f32 %v2322, %v2564
  %2566 = vmatprep.mubr.f32.mxu0 0.0
  %2567 = vmatmul.mubr.f32.gmra.mrb[0].mxu0 %v1769
  %v2568 = vpop.f32.mrb[0].mxu0
  %v2569 = vadd.f32 %v2326, %v2568
  %v2570 = vpop.f32.mrb[0].mxu0
  %v2571 = vadd.f32 %v2328, %v2570
  %2572 = vdwg.mxu0
  %2573 = vmatprep.subr.mxu0 %v2058
  %2574 = vmatpush1.msra.mxu0 %v2057
  %2575 = vmatprep.subr.mxu0 %v2064
  %2576 = vmatpush1.msra.mxu0 %v2063
  %2577 = vmatprep.subr.mxu0 %v2070
  %2578 = vmatpush1.msra.mxu0 %v2069
  %2579 = vmatprep.subr.mxu0 %v2076
  %2580 = vmatpush1.msra.mxu0 %v2075
  %2581 = vmatprep.subr.mxu0 %v2082
  %2582 = vmatpush1.msra.mxu0 %v2081
  %2583 = vmatprep.subr.mxu0 %v2088
  %2584 = vmatpush1.msra.mxu0 %v2087
  %2585 = vmatprep.subr.mxu0 %v2094
  %2586 = vmatpush1.msra.mxu0 %v2093
  %2587 = vmatprep.subr.mxu0 %v2100
  %2588 = vmatpush1.msra.mxu0 %v2099
  %2589 = vmatprep.subr.mxu0 %v2106
  %2590 = vmatpush1.msra.mxu0 %v2105
  %2591 = vmatprep.subr.mxu0 %v2112
  %2592 = vmatpush1.msra.mxu0 %v2111
  %2593 = vmatprep.subr.mxu0 %v2118
  %2594 = vmatpush1.msra.mxu0 %v2117
  %2595 = vmatprep.subr.mxu0 %v2124
  %2596 = vmatpush1.msra.mxu0 %v2123
  %2597 = vmatprep.subr.mxu0 %v2130
  %2598 = vmatpush1.msra.mxu0 %v2129
  %2599 = vmatprep.subr.mxu0 %v2136
  %2600 = vmatpush1.msra.mxu0 %v2135
  %2601 = vmatprep.subr.mxu0 %v2142
  %2602 = vmatpush1.msra.mxu0 %v2141
  %2603 = vmatprep.subr.mxu0 %v2148
  %2604 = vmatpush1.msra.mxu0 %v2147
  %2605 = vmatprep.subr.mxu0 0.0
  %2606 = vmatpush1.msra.mxu0 0.0
  %2607 = vmatprep.subr.mxu0 0.0
  %2608 = vmatpush1.msra.mxu0 0.0
  %2609 = vmatprep.subr.mxu0 0.0
  %2610 = vmatpush1.msra.mxu0 0.0
  %2611 = vmatprep.subr.mxu0 0.0
  %2612 = vmatpush1.msra.mxu0 0.0
  %2613 = vmatprep.subr.mxu0 0.0
  %2614 = vmatpush1.msra.mxu0 0.0
  %2615 = vmatprep.subr.mxu0 0.0
  %2616 = vmatpush1.msra.mxu0 0.0
  %2617 = vmatprep.subr.mxu0 0.0
  %2618 = vmatpush1.msra.mxu0 0.0
  %2619 = vmatprep.subr.mxu0 0.0
  %2620 = vmatpush1.msra.mxu0 0.0
  %2621 = vmatprep.subr.mxu0 0.0
  %2622 = vmatpush1.msra.mxu0 0.0
  %2623 = vmatprep.subr.mxu0 0.0
  %2624 = vmatpush1.msra.mxu0 0.0
  %2625 = vmatprep.subr.mxu0 0.0
  %2626 = vmatpush1.msra.mxu0 0.0
  %2627 = vmatprep.subr.mxu0 0.0
  %2628 = vmatpush1.msra.mxu0 0.0
  %2629 = vmatprep.subr.mxu0 0.0
  %2630 = vmatpush1.msra.mxu0 0.0
  %2631 = vmatprep.subr.mxu0 0.0
  %2632 = vmatpush1.msra.mxu0 0.0
  %2633 = vmatprep.subr.mxu0 0.0
  %2634 = vmatpush1.msra.mxu0 0.0
  %2635 = vmatprep.subr.mxu0 0.0
  %2636 = vmatpush1.msra.mxu0 0.0
  %2637 = vmatprep.mubr.f32.mxu0 0.0
  %2638 = vmatmul.mubr.f32.gmra.mrb[0].mxu0 %v1767
  %v2639 = vpop.f32.mrb[0].mxu0
  %v2640 = vadd.f32 %v2397, %v2639
  %v2641 = vpop.f32.mrb[0].mxu0
  %2642 = vmatprep.mubr.f32.mxu0 0.0
  %2643 = vmatmul.mubr.f32.gmra.mrb[0].mxu0 %v1768
  %v2644 = vpop.f32.mrb[0].mxu0
  %v2645 = vadd.f32 %v2402, %v2644
  %v2646 = vpop.f32.mrb[0].mxu0
  %2647 = vmatprep.mubr.f32.mxu0 0.0
  %2648 = vmatmul.mubr.f32.gmra.mrb[0].mxu0 %v1769
  %v2649 = vpop.f32.mrb[0].mxu0
  %v2650 = vadd.f32 %v2407, %v2649
  %v2651 = vpop.f32.mrb[0].mxu0
  %v2652 = vadd.f32 %v2409, %v2651
  %2653 = vdwg.mxu0
  %2654 = vmatprep.subr.mxu0 %v2060
  %2655 = vmatpush1.msra.mxu0 %v2059
  %2656 = vmatprep.subr.mxu0 %v2066
  %2657 = vmatpush1.msra.mxu0 %v2065
  %2658 = vmatprep.subr.mxu0 %v2072
  %2659 = vmatpush1.msra.mxu0 %v2071
  %2660 = vmatprep.subr.mxu0 %v2078
  %2661 = vmatpush1.msra.mxu0 %v2077
  %2662 = vmatprep.subr.mxu0 %v2084
  %2663 = vmatpush1.msra.mxu0 %v2083
  %2664 = vmatprep.subr.mxu0 %v2090
  %2665 = vmatpush1.msra.mxu0 %v2089
  %2666 = vmatprep.subr.mxu0 %v2096
  %2667 = vmatpush1.msra.mxu0 %v2095
  %2668 = vmatprep.subr.mxu0 %v2102
  %2669 = vmatpush1.msra.mxu0 %v2101
  %2670 = vmatprep.subr.mxu0 %v2108
  %2671 = vmatpush1.msra.mxu0 %v2107
  %2672 = vmatprep.subr.mxu0 %v2114
  %2673 = vmatpush1.msra.mxu0 %v2113
  %2674 = vmatprep.subr.mxu0 %v2120
  %2675 = vmatpush1.msra.mxu0 %v2119
  %2676 = vmatprep.subr.mxu0 %v2126
  %2677 = vmatpush1.msra.mxu0 %v2125
  %2678 = vmatprep.subr.mxu0 %v2132
  %2679 = vmatpush1.msra.mxu0 %v2131
  %2680 = vmatprep.subr.mxu0 %v2138
  %2681 = vmatpush1.msra.mxu0 %v2137
  %2682 = vmatprep.subr.mxu0 %v2144
  %2683 = vmatpush1.msra.mxu0 %v2143
  %2684 = vmatprep.subr.mxu0 %v2150
  %2685 = vmatpush1.msra.mxu0 %v2149
  %2686 = vmatprep.subr.mxu0 0.0
  %2687 = vmatpush1.msra.mxu0 0.0
  %2688 = vmatprep.subr.mxu0 0.0
  %2689 = vmatpush1.msra.mxu0 0.0
  %2690 = vmatprep.subr.mxu0 0.0
  %2691 = vmatpush1.msra.mxu0 0.0
  %2692 = vmatprep.subr.mxu0 0.0
  %2693 = vmatpush1.msra.mxu0 0.0
  %2694 = vmatprep.subr.mxu0 0.0
  %2695 = vmatpush1.msra.mxu0 0.0
  %2696 = vmatprep.subr.mxu0 0.0
  %2697 = vmatpush1.msra.mxu0 0.0
  %2698 = vmatprep.subr.mxu0 0.0
  %2699 = vmatpush1.msra.mxu0 0.0
  %2700 = vmatprep.subr.mxu0 0.0
  %2701 = vmatpush1.msra.mxu0 0.0
  %2702 = vmatprep.subr.mxu0 0.0
  %2703 = vmatpush1.msra.mxu0 0.0
  %2704 = vmatprep.subr.mxu0 0.0
  %2705 = vmatpush1.msra.mxu0 0.0
  %2706 = vmatprep.subr.mxu0 0.0
  %2707 = vmatpush1.msra.mxu0 0.0
  %2708 = vmatprep.subr.mxu0 0.0
  %2709 = vmatpush1.msra.mxu0 0.0
  %2710 = vmatprep.subr.mxu0 0.0
  %2711 = vmatpush1.msra.mxu0 0.0
  %2712 = vmatprep.subr.mxu0 0.0
  %2713 = vmatpush1.msra.mxu0 0.0
  %2714 = vmatprep.subr.mxu0 0.0
  %2715 = vmatpush1.msra.mxu0 0.0
  %2716 = vmatprep.subr.mxu0 0.0
  %2717 = vmatpush1.msra.mxu0 0.0
  %2718 = vmatprep.mubr.f32.mxu0 0.0
  %2719 = vmatmul.mubr.f32.gmra.mrb[0].mxu0 %v1767
  %v2720 = vpop.f32.mrb[0].mxu0
  %v2721 = vpop.f32.mrb[0].mxu0
  %2722 = vmatprep.mubr.f32.mxu0 0.0
  %2723 = vmatmul.mubr.f32.gmra.mrb[0].mxu0 %v1768
  %v2724 = vpop.f32.mrb[0].mxu0
  %v2725 = vpop.f32.mrb[0].mxu0
  %2726 = vmatprep.mubr.f32.mxu0 0.0
  %2727 = vmatmul.mubr.f32.gmra.mrb[0].mxu0 %v1769
  %v2728 = vpop.f32.mrb[0].mxu0
  %v2729 = vadd.f32 %v2486, %v2728
  %v2730 = vpop.f32.mrb[0].mxu0
  %v2731 = vadd.f32 %v2488, %v2730
  %2732 = vdwg.mxu0
  %s2733 = scalar_lea.vmem %s4, 1
  %v2734 = vld [vmem:[%s2733] ss:$4 sm:$0x3f]
  %v2736 = vlaneseq
  %v2737 = vshrl.u32 %v2736, 7
  %v2738 = vsub.s32 0, %v2737
  %v2739 = vrot.slane %v2734, %v2738
  %v2740 = vlaneseq
  %v2741 = vshrl.u32 %v2740, 7
  %v2742 = vsub.s32 1, %v2741
  %v2743 = vrot.slane %v2734, %v2742
  %v2744 = vlaneseq
  %v2745 = vshrl.u32 %v2744, 7
  %v2746 = vsub.s32 2, %v2745
  %v2747 = vrot.slane %v2734, %v2746
  %v2748 = vlaneseq
  %v2749 = vshrl.u32 %v2748, 7
  %v2750 = vsub.s32 3, %v2749
  %v2751 = vrot.slane %v2734, %v2750
  %v2752 = vlaneseq
  %v2753 = vshrl.u32 %v2752, 7
  %v2754 = vsub.s32 4, %v2753
  %v2755 = vrot.slane %v2734, %v2754
  %v2756 = vlaneseq
  %v2757 = vshrl.u32 %v2756, 7
  %v2758 = vsub.s32 5, %v2757
  %v2759 = vrot.slane %v2734, %v2758
  %v2766 = vadd.f32 %v2557, %v2739
  %v2767 = vadd.f32 %v2559, %v2743
  %v2768 = vadd.f32 %v2640, %v2747
  %v2769 = vadd.f32 %v2563, %v2739
  %v2770 = vadd.f32 %v2565, %v2743
  %v2771 = vadd.f32 %v2645, %v2747
  %v2772 = vadd.f32 %v2569, %v2739
  %v2773 = vadd.f32 %v2571, %v2743
  %v2774 = vadd.f32 %v2650, %v2747
  %v2775 = vadd.f32 %v2652, %v2751
  %v2776 = vadd.f32 %v2729, %v2755
  %v2777 = vadd.f32 %v2731, %v2759
  %v2778 = vld [vmem:[%s3 + $0x300] sm:$0xff]
  %v2779 = vld [vmem:[%s3 + $0x308] sm:$0xff]
  %v2780 = vld [vmem:[%s3 + $0x310] sm:$0xff]
  %v2781 = vld [vmem:[%s3 + $0x318] sm:$0xff]
  %v2782 = vld [vmem:[%s3 + $0x320] sm:$0xff]
  %v2783 = vld [vmem:[%s3 + $0x328] sm:$0xff]
  %v2784 = vld [vmem:[%s3 + $0x330] sm:$0xff]
  %v2785 = vld [vmem:[%s3 + $0x338] sm:$0xff]
  %v2786 = vld [vmem:[%s3 + $0x340] sm:$0xff]
  %v2787 = vld [vmem:[%s3 + $0x348] sm:$0xff]
  %v2788 = vld [vmem:[%s3 + $0x350] sm:$0xff]
  %v2789 = vld [vmem:[%s3 + $0x358] sm:$0xff]
  %v2790 = vld [vmem:[%s3 + $0x360] sm:$0xff]
  %v2791 = vld [vmem:[%s3 + $0x368] sm:$0xff]
  %v2792 = vld [vmem:[%s3 + $0x370] sm:$0xff]
  %v2793 = vld [vmem:[%s3 + $0x378] sm:$0xff]
  %v2794 = vld [vmem:[%s3 + $0x380] sm:$0xff]
  %v2795 = vld [vmem:[%s3 + $0x388] sm:$0xff]
  %v2796 = vld [vmem:[%s3 + $0x390] sm:$0xff]
  %v2797 = vld [vmem:[%s3 + $0x398] sm:$0xff]
  %v2798 = vld [vmem:[%s3 + $0x3a0] sm:$0xff]
  %v2799 = vld [vmem:[%s3 + $0x3a8] sm:$0xff]
  %v2800 = vld [vmem:[%s3 + $0x3b0] sm:$0xff]
  %v2801 = vld [vmem:[%s3 + $0x3b8] sm:$0xff]
  %v2802 = vld [vmem:[%s3 + $0x3c0] sm:$0xff]
  %v2803 = vld [vmem:[%s3 + $0x3c8] sm:$0xff]
  %v2804 = vld [vmem:[%s3 + $0x3d0] sm:$0xff]
  %v2805 = vld [vmem:[%s3 + $0x3d8] sm:$0xff]
  %v2806 = vld [vmem:[%s3 + $0x3e0] sm:$0xff]
  %v2807 = vld [vmem:[%s3 + $0x3e8] sm:$0xff]
  %v2808 = vld [vmem:[%s3 + $0x3f0] sm:$0xff]
  %v2809 = vld [vmem:[%s3 + $0x3f8] sm:$0xff]
  %v2810 = vld [vmem:[%s3 + $0x400] sm:$0xff]
  %v2811 = vld [vmem:[%s3 + $0x408] sm:$0xff]
  %v2812 = vld [vmem:[%s3 + $0x410] sm:$0xff]
  %v2813 = vld [vmem:[%s3 + $0x418] sm:$0xff]
  %v2814 = vld [vmem:[%s3 + $0x420] sm:$0xff]
  %v2815 = vld [vmem:[%s3 + $0x428] sm:$0xff]
  %v2816 = vld [vmem:[%s3 + $0x430] sm:$0xff]
  %v2817 = vld [vmem:[%s3 + $0x438] sm:$0xff]
  %v2818 = vld [vmem:[%s3 + $0x440] sm:$0xff]
  %v2819 = vld [vmem:[%s3 + $0x448] sm:$0xff]
  %v2820 = vld [vmem:[%s3 + $0x450] sm:$0xff]
  %v2821 = vld [vmem:[%s3 + $0x458] sm:$0xff]
  %v2822 = vld [vmem:[%s3 + $0x460] sm:$0xff]
  %v2823 = vld [vmem:[%s3 + $0x468] sm:$0xff]
  %v2824 = vld [vmem:[%s3 + $0x470] sm:$0xff]
  %v2825 = vld [vmem:[%s3 + $0x478] sm:$0xff]
  %v2826 = vld [vmem:[%s4 + $0xa] sm:$0x1]
  %v2827 = vlaneseq
  %v2828 = vshrl.u32 %v2827, 7
  %v2829 = vsub.s32 0, %v2828
  %v2830 = vrot.slane %v2826, %v2829
  %v2831 = vld [vmem:[%s1 + $0x30] sm:$0xff]
  %2832 = vmatprep.subr.mxu0 %v2779
  %2833 = vmatpush1.msra.mxu0 %v2778
  %2834 = vmatprep.subr.mxu0 %v2782
  %2835 = vmatpush1.msra.mxu0 %v2781
  %2836 = vmatprep.subr.mxu0 %v2785
  %2837 = vmatpush1.msra.mxu0 %v2784
  %2838 = vmatprep.subr.mxu0 %v2788
  %2839 = vmatpush1.msra.mxu0 %v2787
  %2840 = vmatprep.subr.mxu0 %v2791
  %2841 = vmatpush1.msra.mxu0 %v2790
  %2842 = vmatprep.subr.mxu0 %v2794
  %2843 = vmatpush1.msra.mxu0 %v2793
  %2844 = vmatprep.subr.mxu0 %v2797
  %2845 = vmatpush1.msra.mxu0 %v2796
  %2846 = vmatprep.subr.mxu0 %v2800
  %2847 = vmatpush1.msra.mxu0 %v2799
  %2848 = vmatprep.subr.mxu0 %v2803
  %2849 = vmatpush1.msra.mxu0 %v2802
  %2850 = vmatprep.subr.mxu0 %v2806
  %2851 = vmatpush1.msra.mxu0 %v2805
  %2852 = vmatprep.subr.mxu0 %v2809
  %2853 = vmatpush1.msra.mxu0 %v2808
  %2854 = vmatprep.subr.mxu0 %v2812
  %2855 = vmatpush1.msra.mxu0 %v2811
  %2856 = vmatprep.subr.mxu0 %v2815
  %2857 = vmatpush1.msra.mxu0 %v2814
  %2858 = vmatprep.subr.mxu0 %v2818
  %2859 = vmatpush1.msra.mxu0 %v2817
  %2860 = vmatprep.subr.mxu0 %v2821
  %2861 = vmatpush1.msra.mxu0 %v2820
  %2862 = vmatprep.subr.mxu0 %v2824
  %2863 = vmatpush1.msra.mxu0 %v2823
  %2864 = vmatprep.subr.mxu0 0.0
  %2865 = vmatpush1.msra.mxu0 0.0
  %2866 = vmatprep.subr.mxu0 0.0
  %2867 = vmatpush1.msra.mxu0 0.0
  %2868 = vmatprep.subr.mxu0 0.0
  %2869 = vmatpush1.msra.mxu0 0.0
  %2870 = vmatprep.subr.mxu0 0.0
  %2871 = vmatpush1.msra.mxu0 0.0
  %2872 = vmatprep.subr.mxu0 0.0
  %2873 = vmatpush1.msra.mxu0 0.0
  %2874 = vmatprep.subr.mxu0 0.0
  %2875 = vmatpush1.msra.mxu0 0.0
  %2876 = vmatprep.subr.mxu0 0.0
  %2877 = vmatpush1.msra.mxu0 0.0
  %2878 = vmatprep.subr.mxu0 0.0
  %2879 = vmatpush1.msra.mxu0 0.0
  %2880 = vmatprep.subr.mxu0 0.0
  %2881 = vmatpush1.msra.mxu0 0.0
  %2882 = vmatprep.subr.mxu0 0.0
  %2883 = vmatpush1.msra.mxu0 0.0
  %2884 = vmatprep.subr.mxu0 0.0
  %2885 = vmatpush1.msra.mxu0 0.0
  %2886 = vmatprep.subr.mxu0 0.0
  %2887 = vmatpush1.msra.mxu0 0.0
  %2888 = vmatprep.subr.mxu0 0.0
  %2889 = vmatpush1.msra.mxu0 0.0
  %2890 = vmatprep.subr.mxu0 0.0
  %2891 = vmatpush1.msra.mxu0 0.0
  %2892 = vmatprep.subr.mxu0 0.0
  %2893 = vmatpush1.msra.mxu0 0.0
  %2894 = vmatprep.subr.mxu0 0.0
  %2895 = vmatpush1.msra.mxu0 0.0
  %2896 = vmatprep.mubr.f32.mxu0 0.0
  %2897 = vmatmul.mubr.f32.gmra.mrb[0].mxu0 %v2831
  %v2898 = vpop.f32.mrb[0].mxu0
  %v2899 = vadd.f32 0.0, %v2898
  %v2900 = vpop.f32.mrb[0].mxu0
  %v2901 = vadd.f32 0.0, %v2900
  %2902 = vdwg.mxu0
  %2903 = vmatprep.subr.mxu0 0.0
  %2904 = vmatpush1.msra.mxu0 %v2780
  %2905 = vmatprep.subr.mxu0 0.0
  %2906 = vmatpush1.msra.mxu0 %v2783
  %2907 = vmatprep.subr.mxu0 0.0
  %2908 = vmatpush1.msra.mxu0 %v2786
  %2909 = vmatprep.subr.mxu0 0.0
  %2910 = vmatpush1.msra.mxu0 %v2789
  %2911 = vmatprep.subr.mxu0 0.0
  %2912 = vmatpush1.msra.mxu0 %v2792
  %2913 = vmatprep.subr.mxu0 0.0
  %2914 = vmatpush1.msra.mxu0 %v2795
  %2915 = vmatprep.subr.mxu0 0.0
  %2916 = vmatpush1.msra.mxu0 %v2798
  %2917 = vmatprep.subr.mxu0 0.0
  %2918 = vmatpush1.msra.mxu0 %v2801
  %2919 = vmatprep.subr.mxu0 0.0
  %2920 = vmatpush1.msra.mxu0 %v2804
  %2921 = vmatprep.subr.mxu0 0.0
  %2922 = vmatpush1.msra.mxu0 %v2807
  %2923 = vmatprep.subr.mxu0 0.0
  %2924 = vmatpush1.msra.mxu0 %v2810
  %2925 = vmatprep.subr.mxu0 0.0
  %2926 = vmatpush1.msra.mxu0 %v2813
  %2927 = vmatprep.subr.mxu0 0.0
  %2928 = vmatpush1.msra.mxu0 %v2816
  %2929 = vmatprep.subr.mxu0 0.0
  %2930 = vmatpush1.msra.mxu0 %v2819
  %2931 = vmatprep.subr.mxu0 0.0
  %2932 = vmatpush1.msra.mxu0 %v2822
  %2933 = vmatprep.subr.mxu0 0.0
  %2934 = vmatpush1.msra.mxu0 %v2825
  %2935 = vmatprep.subr.mxu0 0.0
  %2936 = vmatpush1.msra.mxu0 0.0
  %2937 = vmatprep.subr.mxu0 0.0
  %2938 = vmatpush1.msra.mxu0 0.0
  %2939 = vmatprep.subr.mxu0 0.0
  %2940 = vmatpush1.msra.mxu0 0.0
  %2941 = vmatprep.subr.mxu0 0.0
  %2942 = vmatpush1.msra.mxu0 0.0
  %2943 = vmatprep.subr.mxu0 0.0
  %2944 = vmatpush1.msra.mxu0 0.0
  %2945 = vmatprep.subr.mxu0 0.0
  %2946 = vmatpush1.msra.mxu0 0.0
  %2947 = vmatprep.subr.mxu0 0.0
  %2948 = vmatpush1.msra.mxu0 0.0
  %2949 = vmatprep.subr.mxu0 0.0
  %2950 = vmatpush1.msra.mxu0 0.0
  %2951 = vmatprep.subr.mxu0 0.0
  %2952 = vmatpush1.msra.mxu0 0.0
  %2953 = vmatprep.subr.mxu0 0.0
  %2954 = vmatpush1.msra.mxu0 0.0
  %2955 = vmatprep.subr.mxu0 0.0
  %2956 = vmatpush1.msra.mxu0 0.0
  %2957 = vmatprep.subr.mxu0 0.0
  %2958 = vmatpush1.msra.mxu0 0.0
  %2959 = vmatprep.subr.mxu0 0.0
  %2960 = vmatpush1.msra.mxu0 0.0
  %2961 = vmatprep.subr.mxu0 0.0
  %2962 = vmatpush1.msra.mxu0 0.0
  %2963 = vmatprep.subr.mxu0 0.0
  %2964 = vmatpush1.msra.mxu0 0.0
  %2965 = vmatprep.subr.mxu0 0.0
  %2966 = vmatpush1.msra.mxu0 0.0
  %2967 = vmatprep.mubr.f32.mxu0 0.0
  %2968 = vmatmul.mubr.f32.gmra.mrb[0].mxu0 %v2831
  %v2969 = vpop.f32.mrb[0].mxu0
  %v2970 = vadd.f32 0.0, %v2969
  %v2971 = vpop.f32.mrb[0].mxu0
  %2972 = vdwg.mxu0
  %v2973 = vadd.f32 %v2766, %v2899
  %v2974 = vadd.f32 %v2767, %v2901
  %v2975 = vxor.u32 %v2973, 2147483648
  %v2976 = vxor.u32 %v2974, 2147483648
  %v2977 = vmul.f32 %v2975, 1.442695
  %v2978 = vpow.pop %v2977
  %v2979 = vmul.f32 %v2976, 1.442695
  %v2980 = vpow.pop %v2979
  %v2981 = vadd.f32 %v2978, 1.0
  %v2982 = vadd.f32 %v2980, 1.0
  %v2983 = vrcp.pop %v2981
  %v2984 = vmul.f32 1.0, %v2983
  %v2985 = vrcp.pop %v2982
  %v2986 = vmul.f32 1.0, %v2985
  %v2987 = vadd.f32 %v2970, %v2830
  %v2988 = vmul.f32 %v2984, %v2987
  %v2989 = vadd.f32 %v2768, %v2988
  %v2990 = vtanh.pop %v2989
  %v2991 = vsub.f32 1.0, %v2986
  %v2992 = vmul.f32 %v2991, %v2990
  %v2993 = vmul.f32 %v2986, %v2831
  %v2994 = vadd.f32 %v2992, %v2993
  %2995 = vmatprep.subr.mxu0 %v2779
  %2996 = vmatpush1.msra.mxu0 %v2778
  %2997 = vmatprep.subr.mxu0 %v2782
  %2998 = vmatpush1.msra.mxu0 %v2781
  %2999 = vmatprep.subr.mxu0 %v2785
  %3000 = vmatpush1.msra.mxu0 %v2784
  %3001 = vmatprep.subr.mxu0 %v2788
  %3002 = vmatpush1.msra.mxu0 %v2787
  %3003 = vmatprep.subr.mxu0 %v2791
  %3004 = vmatpush1.msra.mxu0 %v2790
  %3005 = vmatprep.subr.mxu0 %v2794
  %3006 = vmatpush1.msra.mxu0 %v2793
  %3007 = vmatprep.subr.mxu0 %v2797
  %3008 = vmatpush1.msra.mxu0 %v2796
  %3009 = vmatprep.subr.mxu0 %v2800
  %3010 = vmatpush1.msra.mxu0 %v2799
  %3011 = vmatprep.subr.mxu0 %v2803
  %3012 = vmatpush1.msra.mxu0 %v2802
  %3013 = vmatprep.subr.mxu0 %v2806
  %3014 = vmatpush1.msra.mxu0 %v2805
  %3015 = vmatprep.subr.mxu0 %v2809
  %3016 = vmatpush1.msra.mxu0 %v2808
  %3017 = vmatprep.subr.mxu0 %v2812
  %3018 = vmatpush1.msra.mxu0 %v2811
  %3019 = vmatprep.subr.mxu0 %v2815
  %3020 = vmatpush1.msra.mxu0 %v2814
  %3021 = vmatprep.subr.mxu0 %v2818
  %3022 = vmatpush1.msra.mxu0 %v2817
  %3023 = vmatprep.subr.mxu0 %v2821
  %3024 = vmatpush1.msra.mxu0 %v2820
  %3025 = vmatprep.subr.mxu0 %v2824
  %3026 = vmatpush1.msra.mxu0 %v2823
  %3027 = vmatprep.subr.mxu0 0.0
  %3028 = vmatpush1.msra.mxu0 0.0
  %3029 = vmatprep.subr.mxu0 0.0
  %3030 = vmatpush1.msra.mxu0 0.0
  %3031 = vmatprep.subr.mxu0 0.0
  %3032 = vmatpush1.msra.mxu0 0.0
  %3033 = vmatprep.subr.mxu0 0.0
  %3034 = vmatpush1.msra.mxu0 0.0
  %3035 = vmatprep.subr.mxu0 0.0
  %3036 = vmatpush1.msra.mxu0 0.0
  %3037 = vmatprep.subr.mxu0 0.0
  %3038 = vmatpush1.msra.mxu0 0.0
  %3039 = vmatprep.subr.mxu0 0.0
  %3040 = vmatpush1.msra.mxu0 0.0
  %3041 = vmatprep.subr.mxu0 0.0
  %3042 = vmatpush1.msra.mxu0 0.0
  %3043 = vmatprep.subr.mxu0 0.0
  %3044 = vmatpush1.msra.mxu0 0.0
  %3045 = vmatprep.subr.mxu0 0.0
  %3046 = vmatpush1.msra.mxu0 0.0
  %3047 = vmatprep.subr.mxu0 0.0
  %3048 = vmatpush1.msra.mxu0 0.0
  %3049 = vmatprep.subr.mxu0 0.0
  %3050 = vmatpush1.msra.mxu0 0.0
  %3051 = vmatprep.subr.mxu0 0.0
  %3052 = vmatpush1.msra.mxu0 0.0
  %3053 = vmatprep.subr.mxu0 0.0
  %3054 = vmatpush1.msra.mxu0 0.0
  %3055 = vmatprep.subr.mxu0 0.0
  %3056 = vmatpush1.msra.mxu0 0.0
  %3057 = vmatprep.subr.mxu0 0.0
  %3058 = vmatpush1.msra.mxu0 0.0
  %3059 = vmatprep.mubr.f32.mxu0 0.0
  %3060 = vmatmul.mubr.f32.gmra.mrb[0].mxu0 %v2994
  %v3061 = vpop.f32.mrb[0].mxu0
  %v3062 = vadd.f32 0.0, %v3061
  %v3063 = vpop.f32.mrb[0].mxu0
  %v3064 = vadd.f32 0.0, %v3063
  %3065 = vdwg.mxu0
  %3066 = vmatprep.subr.mxu0 0.0
  %3067 = vmatpush1.msra.mxu0 %v2780
  %3068 = vmatprep.subr.mxu0 0.0
  %3069 = vmatpush1.msra.mxu0 %v2783
  %3070 = vmatprep.subr.mxu0 0.0
  %3071 = vmatpush1.msra.mxu0 %v2786
  %3072 = vmatprep.subr.mxu0 0.0
  %3073 = vmatpush1.msra.mxu0 %v2789
  %3074 = vmatprep.subr.mxu0 0.0
  %3075 = vmatpush1.msra.mxu0 %v2792
  %3076 = vmatprep.subr.mxu0 0.0
  %3077 = vmatpush1.msra.mxu0 %v2795
  %3078 = vmatprep.subr.mxu0 0.0
  %3079 = vmatpush1.msra.mxu0 %v2798
  %3080 = vmatprep.subr.mxu0 0.0
  %3081 = vmatpush1.msra.mxu0 %v2801
  %3082 = vmatprep.subr.mxu0 0.0
  %3083 = vmatpush1.msra.mxu0 %v2804
  %3084 = vmatprep.subr.mxu0 0.0
  %3085 = vmatpush1.msra.mxu0 %v2807
  %3086 = vmatprep.subr.mxu0 0.0
  %3087 = vmatpush1.msra.mxu0 %v2810
  %3088 = vmatprep.subr.mxu0 0.0
  %3089 = vmatpush1.msra.mxu0 %v2813
  %3090 = vmatprep.subr.mxu0 0.0
  %3091 = vmatpush1.msra.mxu0 %v2816
  %3092 = vmatprep.subr.mxu0 0.0
  %3093 = vmatpush1.msra.mxu0 %v2819
  %3094 = vmatprep.subr.mxu0 0.0
  %3095 = vmatpush1.msra.mxu0 %v2822
  %3096 = vmatprep.subr.mxu0 0.0
  %3097 = vmatpush1.msra.mxu0 %v2825
  %3098 = vmatprep.subr.mxu0 0.0
  %3099 = vmatpush1.msra.mxu0 0.0
  %3100 = vmatprep.subr.mxu0 0.0
  %3101 = vmatpush1.msra.mxu0 0.0
  %3102 = vmatprep.subr.mxu0 0.0
  %3103 = vmatpush1.msra.mxu0 0.0
  %3104 = vmatprep.subr.mxu0 0.0
  %3105 = vmatpush1.msra.mxu0 0.0
  %3106 = vmatprep.subr.mxu0 0.0
  %3107 = vmatpush1.msra.mxu0 0.0
  %3108 = vmatprep.subr.mxu0 0.0
  %3109 = vmatpush1.msra.mxu0 0.0
  %3110 = vmatprep.subr.mxu0 0.0
  %3111 = vmatpush1.msra.mxu0 0.0
  %3112 = vmatprep.subr.mxu0 0.0
  %3113 = vmatpush1.msra.mxu0 0.0
  %3114 = vmatprep.subr.mxu0 0.0
  %3115 = vmatpush1.msra.mxu0 0.0
  %3116 = vmatprep.subr.mxu0 0.0
  %3117 = vmatpush1.msra.mxu0 0.0
  %3118 = vmatprep.subr.mxu0 0.0
  %3119 = vmatpush1.msra.mxu0 0.0
  %3120 = vmatprep.subr.mxu0 0.0
  %3121 = vmatpush1.msra.mxu0 0.0
  %3122 = vmatprep.subr.mxu0 0.0
  %3123 = vmatpush1.msra.mxu0 0.0
  %3124 = vmatprep.subr.mxu0 0.0
  %3125 = vmatpush1.msra.mxu0 0.0
  %3126 = vmatprep.subr.mxu0 0.0
  %3127 = vmatpush1.msra.mxu0 0.0
  %3128 = vmatprep.subr.mxu0 0.0
  %3129 = vmatpush1.msra.mxu0 0.0
  %3130 = vmatprep.mubr.f32.mxu0 0.0
  %3131 = vmatmul.mubr.f32.gmra.mrb[0].mxu0 %v2994
  %v3132 = vpop.f32.mrb[0].mxu0
  %v3133 = vadd.f32 0.0, %v3132
  %v3134 = vpop.f32.mrb[0].mxu0
  %3135 = vdwg.mxu0
  %v3136 = vadd.f32 %v2769, %v3062
  %v3137 = vadd.f32 %v2770, %v3064
  %v3138 = vxor.u32 %v3136, 2147483648
  %v3139 = vxor.u32 %v3137, 2147483648
  %v3140 = vmul.f32 %v3138, 1.442695
  %v3141 = vpow.pop %v3140
  %v3142 = vmul.f32 %v3139, 1.442695
  %v3143 = vpow.pop %v3142
  %v3144 = vadd.f32 %v3141, 1.0
  %v3145 = vadd.f32 %v3143, 1.0
  %v3146 = vrcp.pop %v3144
  %v3147 = vmul.f32 1.0, %v3146
  %v3148 = vrcp.pop %v3145
  %v3149 = vmul.f32 1.0, %v3148
  %v3150 = vadd.f32 %v3133, %v2830
  %v3151 = vmul.f32 %v3147, %v3150
  %v3152 = vadd.f32 %v2771, %v3151
  %v3153 = vtanh.pop %v3152
  %v3154 = vsub.f32 1.0, %v3149
  %v3155 = vmul.f32 %v3154, %v3153
  %v3156 = vmul.f32 %v3149, %v2994
  %v3157 = vadd.f32 %v3155, %v3156
  %3158 = vmatprep.subr.mxu0 %v2779
  %3159 = vmatpush1.msra.mxu0 %v2778
  %3160 = vmatprep.subr.mxu0 %v2782
  %3161 = vmatpush1.msra.mxu0 %v2781
  %3162 = vmatprep.subr.mxu0 %v2785
  %3163 = vmatpush1.msra.mxu0 %v2784
  %3164 = vmatprep.subr.mxu0 %v2788
  %3165 = vmatpush1.msra.mxu0 %v2787
  %3166 = vmatprep.subr.mxu0 %v2791
  %3167 = vmatpush1.msra.mxu0 %v2790
  %3168 = vmatprep.subr.mxu0 %v2794
  %3169 = vmatpush1.msra.mxu0 %v2793
  %3170 = vmatprep.subr.mxu0 %v2797
  %3171 = vmatpush1.msra.mxu0 %v2796
  %3172 = vmatprep.subr.mxu0 %v2800
  %3173 = vmatpush1.msra.mxu0 %v2799
  %3174 = vmatprep.subr.mxu0 %v2803
  %3175 = vmatpush1.msra.mxu0 %v2802
  %3176 = vmatprep.subr.mxu0 %v2806
  %3177 = vmatpush1.msra.mxu0 %v2805
  %3178 = vmatprep.subr.mxu0 %v2809
  %3179 = vmatpush1.msra.mxu0 %v2808
  %3180 = vmatprep.subr.mxu0 %v2812
  %3181 = vmatpush1.msra.mxu0 %v2811
  %3182 = vmatprep.subr.mxu0 %v2815
  %3183 = vmatpush1.msra.mxu0 %v2814
  %3184 = vmatprep.subr.mxu0 %v2818
  %3185 = vmatpush1.msra.mxu0 %v2817
  %3186 = vmatprep.subr.mxu0 %v2821
  %3187 = vmatpush1.msra.mxu0 %v2820
  %3188 = vmatprep.subr.mxu0 %v2824
  %3189 = vmatpush1.msra.mxu0 %v2823
  %3190 = vmatprep.subr.mxu0 0.0
  %3191 = vmatpush1.msra.mxu0 0.0
  %3192 = vmatprep.subr.mxu0 0.0
  %3193 = vmatpush1.msra.mxu0 0.0
  %3194 = vmatprep.subr.mxu0 0.0
  %3195 = vmatpush1.msra.mxu0 0.0
  %3196 = vmatprep.subr.mxu0 0.0
  %3197 = vmatpush1.msra.mxu0 0.0
  %3198 = vmatprep.subr.mxu0 0.0
  %3199 = vmatpush1.msra.mxu0 0.0
  %3200 = vmatprep.subr.mxu0 0.0
  %3201 = vmatpush1.msra.mxu0 0.0
  %3202 = vmatprep.subr.mxu0 0.0
  %3203 = vmatpush1.msra.mxu0 0.0
  %3204 = vmatprep.subr.mxu0 0.0
  %3205 = vmatpush1.msra.mxu0 0.0
  %3206 = vmatprep.subr.mxu0 0.0
  %3207 = vmatpush1.msra.mxu0 0.0
  %3208 = vmatprep.subr.mxu0 0.0
  %3209 = vmatpush1.msra.mxu0 0.0
  %3210 = vmatprep.subr.mxu0 0.0
  %3211 = vmatpush1.msra.mxu0 0.0
  %3212 = vmatprep.subr.mxu0 0.0
  %3213 = vmatpush1.msra.mxu0 0.0
  %3214 = vmatprep.subr.mxu0 0.0
  %3215 = vmatpush1.msra.mxu0 0.0
  %3216 = vmatprep.subr.mxu0 0.0
  %3217 = vmatpush1.msra.mxu0 0.0
  %3218 = vmatprep.subr.mxu0 0.0
  %3219 = vmatpush1.msra.mxu0 0.0
  %3220 = vmatprep.subr.mxu0 0.0
  %3221 = vmatpush1.msra.mxu0 0.0
  %3222 = vmatprep.mubr.f32.mxu0 0.0
  %3223 = vmatmul.mubr.f32.gmra.mrb[0].mxu0 %v3157
  %v3224 = vpop.f32.mrb[0].mxu0
  %v3225 = vadd.f32 0.0, %v3224
  %v3226 = vpop.f32.mrb[0].mxu0
  %v3227 = vadd.f32 0.0, %v3226
  %3228 = vdwg.mxu0
  %3229 = vmatprep.subr.mxu0 0.0
  %3230 = vmatpush1.msra.mxu0 %v2780
  %3231 = vmatprep.subr.mxu0 0.0
  %3232 = vmatpush1.msra.mxu0 %v2783
  %3233 = vmatprep.subr.mxu0 0.0
  %3234 = vmatpush1.msra.mxu0 %v2786
  %3235 = vmatprep.subr.mxu0 0.0
  %3236 = vmatpush1.msra.mxu0 %v2789
  %3237 = vmatprep.subr.mxu0 0.0
  %3238 = vmatpush1.msra.mxu0 %v2792
  %3239 = vmatprep.subr.mxu0 0.0
  %3240 = vmatpush1.msra.mxu0 %v2795
  %3241 = vmatprep.subr.mxu0 0.0
  %3242 = vmatpush1.msra.mxu0 %v2798
  %3243 = vmatprep.subr.mxu0 0.0
  %3244 = vmatpush1.msra.mxu0 %v2801
  %3245 = vmatprep.subr.mxu0 0.0
  %3246 = vmatpush1.msra.mxu0 %v2804
  %3247 = vmatprep.subr.mxu0 0.0
  %3248 = vmatpush1.msra.mxu0 %v2807
  %3249 = vmatprep.subr.mxu0 0.0
  %3250 = vmatpush1.msra.mxu0 %v2810
  %3251 = vmatprep.subr.mxu0 0.0
  %3252 = vmatpush1.msra.mxu0 %v2813
  %3253 = vmatprep.subr.mxu0 0.0
  %3254 = vmatpush1.msra.mxu0 %v2816
  %3255 = vmatprep.subr.mxu0 0.0
  %3256 = vmatpush1.msra.mxu0 %v2819
  %3257 = vmatprep.subr.mxu0 0.0
  %3258 = vmatpush1.msra.mxu0 %v2822
  %3259 = vmatprep.subr.mxu0 0.0
  %3260 = vmatpush1.msra.mxu0 %v2825
  %3261 = vmatprep.subr.mxu0 0.0
  %3262 = vmatpush1.msra.mxu0 0.0
  %3263 = vmatprep.subr.mxu0 0.0
  %3264 = vmatpush1.msra.mxu0 0.0
  %3265 = vmatprep.subr.mxu0 0.0
  %3266 = vmatpush1.msra.mxu0 0.0
  %3267 = vmatprep.subr.mxu0 0.0
  %3268 = vmatpush1.msra.mxu0 0.0
  %3269 = vmatprep.subr.mxu0 0.0
  %3270 = vmatpush1.msra.mxu0 0.0
  %3271 = vmatprep.subr.mxu0 0.0
  %3272 = vmatpush1.msra.mxu0 0.0
  %3273 = vmatprep.subr.mxu0 0.0
  %3274 = vmatpush1.msra.mxu0 0.0
  %3275 = vmatprep.subr.mxu0 0.0
  %3276 = vmatpush1.msra.mxu0 0.0
  %3277 = vmatprep.subr.mxu0 0.0
  %3278 = vmatpush1.msra.mxu0 0.0
  %3279 = vmatprep.subr.mxu0 0.0
  %3280 = vmatpush1.msra.mxu0 0.0
  %3281 = vmatprep.subr.mxu0 0.0
  %3282 = vmatpush1.msra.mxu0 0.0
  %3283 = vmatprep.subr.mxu0 0.0
  %3284 = vmatpush1.msra.mxu0 0.0
  %3285 = vmatprep.subr.mxu0 0.0
  %3286 = vmatpush1.msra.mxu0 0.0
  %3287 = vmatprep.subr.mxu0 0.0
  %3288 = vmatpush1.msra.mxu0 0.0
  %3289 = vmatprep.subr.mxu0 0.0
  %3290 = vmatpush1.msra.mxu0 0.0
  %3291 = vmatprep.subr.mxu0 0.0
  %3292 = vmatpush1.msra.mxu0 0.0
  %3293 = vmatprep.mubr.f32.mxu0 0.0
  %3294 = vmatmul.mubr.f32.gmra.mrb[0].mxu0 %v3157
  %v3295 = vpop.f32.mrb[0].mxu0
  %v3296 = vadd.f32 0.0, %v3295
  %v3297 = vpop.f32.mrb[0].mxu0
  %3298 = vdwg.mxu0
  %v3299 = vadd.f32 %v2772, %v3225
  %v3300 = vadd.f32 %v2773, %v3227
  %v3301 = vxor.u32 %v3299, 2147483648
  %v3302 = vxor.u32 %v3300, 2147483648
  %v3303 = vmul.f32 %v3301, 1.442695
  %v3304 = vpow.pop %v3303
  %v3305 = vmul.f32 %v3302, 1.442695
  %v3306 = vpow.pop %v3305
  %v3307 = vadd.f32 %v3304, 1.0
  %v3308 = vadd.f32 %v3306, 1.0
  %v3309 = vrcp.pop %v3307
  %v3310 = vmul.f32 1.0, %v3309
  %v3311 = vrcp.pop %v3308
  %v3312 = vmul.f32 1.0, %v3311
  %v3313 = vadd.f32 %v3296, %v2830
  %v3314 = vmul.f32 %v3310, %v3313
  %v3315 = vadd.f32 %v2774, %v3314
  %v3316 = vtanh.pop %v3315
  %v3317 = vsub.f32 1.0, %v3312
  %v3318 = vmul.f32 %v3317, %v3316
  %v3319 = vmul.f32 %v3312, %v3157
  %v3320 = vadd.f32 %v3318, %v3319
  %v3321 = vld [vmem:[%s4 + $0xe] sm:$0x1]
  %v3322 = vlaneseq
  %v3323 = vshrl.u32 %v3322, 7
  %v3324 = vsub.s32 0, %v3323
  %v3325 = vrot.slane %v3321, %v3324
  %v3326 = vld [vmem:[%s1 + $0x38] sm:$0xff]
  %v3327 = vld [vmem:[%s3 + $0x480] sm:$0xff]
  %v3328 = vld [vmem:[%s3 + $0x488] sm:$0xff]
  %v3329 = vld [vmem:[%s3 + $0x490] sm:$0xff]
  %v3330 = vld [vmem:[%s3 + $0x498] sm:$0xff]
  %v3331 = vld [vmem:[%s3 + $0x4a0] sm:$0xff]
  %v3332 = vld [vmem:[%s3 + $0x4a8] sm:$0xff]
  %v3333 = vld [vmem:[%s3 + $0x4b0] sm:$0xff]
  %v3334 = vld [vmem:[%s3 + $0x4b8] sm:$0xff]
  %v3335 = vld [vmem:[%s3 + $0x4c0] sm:$0xff]
  %v3336 = vld [vmem:[%s3 + $0x4c8] sm:$0xff]
  %v3337 = vld [vmem:[%s3 + $0x4d0] sm:$0xff]
  %v3338 = vld [vmem:[%s3 + $0x4d8] sm:$0xff]
  %v3339 = vld [vmem:[%s3 + $0x4e0] sm:$0xff]
  %v3340 = vld [vmem:[%s3 + $0x4e8] sm:$0xff]
  %v3341 = vld [vmem:[%s3 + $0x4f0] sm:$0xff]
  %v3342 = vld [vmem:[%s3 + $0x4f8] sm:$0xff]
  %v3343 = vld [vmem:[%s3 + $0x500] sm:$0xff]
  %v3344 = vld [vmem:[%s3 + $0x508] sm:$0xff]
  %v3345 = vld [vmem:[%s3 + $0x510] sm:$0xff]
  %v3346 = vld [vmem:[%s3 + $0x518] sm:$0xff]
  %v3347 = vld [vmem:[%s3 + $0x520] sm:$0xff]
  %v3348 = vld [vmem:[%s3 + $0x528] sm:$0xff]
  %v3349 = vld [vmem:[%s3 + $0x530] sm:$0xff]
  %v3350 = vld [vmem:[%s3 + $0x538] sm:$0xff]
  %v3351 = vld [vmem:[%s3 + $0x540] sm:$0xff]
  %v3352 = vld [vmem:[%s3 + $0x548] sm:$0xff]
  %v3353 = vld [vmem:[%s3 + $0x550] sm:$0xff]
  %v3354 = vld [vmem:[%s3 + $0x558] sm:$0xff]
  %v3355 = vld [vmem:[%s3 + $0x560] sm:$0xff]
  %v3356 = vld [vmem:[%s3 + $0x568] sm:$0xff]
  %v3357 = vld [vmem:[%s3 + $0x570] sm:$0xff]
  %v3358 = vld [vmem:[%s3 + $0x578] sm:$0xff]
  %v3359 = vld [vmem:[%s3 + $0x580] sm:$0xff]
  %v3360 = vld [vmem:[%s3 + $0x588] sm:$0xff]
  %v3361 = vld [vmem:[%s3 + $0x590] sm:$0xff]
  %v3362 = vld [vmem:[%s3 + $0x598] sm:$0xff]
  %v3363 = vld [vmem:[%s3 + $0x5a0] sm:$0xff]
  %v3364 = vld [vmem:[%s3 + $0x5a8] sm:$0xff]
  %v3365 = vld [vmem:[%s3 + $0x5b0] sm:$0xff]
  %v3366 = vld [vmem:[%s3 + $0x5b8] sm:$0xff]
  %v3367 = vld [vmem:[%s3 + $0x5c0] sm:$0xff]
  %v3368 = vld [vmem:[%s3 + $0x5c8] sm:$0xff]
  %v3369 = vld [vmem:[%s3 + $0x5d0] sm:$0xff]
  %v3370 = vld [vmem:[%s3 + $0x5d8] sm:$0xff]
  %v3371 = vld [vmem:[%s3 + $0x5e0] sm:$0xff]
  %v3372 = vld [vmem:[%s3 + $0x5e8] sm:$0xff]
  %v3373 = vld [vmem:[%s3 + $0x5f0] sm:$0xff]
  %v3374 = vld [vmem:[%s3 + $0x5f8] sm:$0xff]
  %3375 = vmatprep.subr.mxu0 %v3328
  %3376 = vmatpush1.msra.mxu0 %v3327
  %3377 = vmatprep.subr.mxu0 %v3331
  %3378 = vmatpush1.msra.mxu0 %v3330
  %3379 = vmatprep.subr.mxu0 %v3334
  %3380 = vmatpush1.msra.mxu0 %v3333
  %3381 = vmatprep.subr.mxu0 %v3337
  %3382 = vmatpush1.msra.mxu0 %v3336
  %3383 = vmatprep.subr.mxu0 %v3340
  %3384 = vmatpush1.msra.mxu0 %v3339
  %3385 = vmatprep.subr.mxu0 %v3343
  %3386 = vmatpush1.msra.mxu0 %v3342
  %3387 = vmatprep.subr.mxu0 %v3346
  %3388 = vmatpush1.msra.mxu0 %v3345
  %3389 = vmatprep.subr.mxu0 %v3349
  %3390 = vmatpush1.msra.mxu0 %v3348
  %3391 = vmatprep.subr.mxu0 %v3352
  %3392 = vmatpush1.msra.mxu0 %v3351
  %3393 = vmatprep.subr.mxu0 %v3355
  %3394 = vmatpush1.msra.mxu0 %v3354
  %3395 = vmatprep.subr.mxu0 %v3358
  %3396 = vmatpush1.msra.mxu0 %v3357
  %3397 = vmatprep.subr.mxu0 %v3361
  %3398 = vmatpush1.msra.mxu0 %v3360
  %3399 = vmatprep.subr.mxu0 %v3364
  %3400 = vmatpush1.msra.mxu0 %v3363
  %3401 = vmatprep.subr.mxu0 %v3367
  %3402 = vmatpush1.msra.mxu0 %v3366
  %3403 = vmatprep.subr.mxu0 %v3370
  %3404 = vmatpush1.msra.mxu0 %v3369
  %3405 = vmatprep.subr.mxu0 %v3373
  %3406 = vmatpush1.msra.mxu0 %v3372
  %3407 = vmatprep.subr.mxu0 0.0
  %3408 = vmatpush1.msra.mxu0 0.0
  %3409 = vmatprep.subr.mxu0 0.0
  %3410 = vmatpush1.msra.mxu0 0.0
  %3411 = vmatprep.subr.mxu0 0.0
  %3412 = vmatpush1.msra.mxu0 0.0
  %3413 = vmatprep.subr.mxu0 0.0
  %3414 = vmatpush1.msra.mxu0 0.0
  %3415 = vmatprep.subr.mxu0 0.0
  %3416 = vmatpush1.msra.mxu0 0.0
  %3417 = vmatprep.subr.mxu0 0.0
  %3418 = vmatpush1.msra.mxu0 0.0
  %3419 = vmatprep.subr.mxu0 0.0
  %3420 = vmatpush1.msra.mxu0 0.0
  %3421 = vmatprep.subr.mxu0 0.0
  %3422 = vmatpush1.msra.mxu0 0.0
  %3423 = vmatprep.subr.mxu0 0.0
  %3424 = vmatpush1.msra.mxu0 0.0
  %3425 = vmatprep.subr.mxu0 0.0
  %3426 = vmatpush1.msra.mxu0 0.0
  %3427 = vmatprep.subr.mxu0 0.0
  %3428 = vmatpush1.msra.mxu0 0.0
  %3429 = vmatprep.subr.mxu0 0.0
  %3430 = vmatpush1.msra.mxu0 0.0
  %3431 = vmatprep.subr.mxu0 0.0
  %3432 = vmatpush1.msra.mxu0 0.0
  %3433 = vmatprep.subr.mxu0 0.0
  %3434 = vmatpush1.msra.mxu0 0.0
  %3435 = vmatprep.subr.mxu0 0.0
  %3436 = vmatpush1.msra.mxu0 0.0
  %3437 = vmatprep.subr.mxu0 0.0
  %3438 = vmatpush1.msra.mxu0 0.0
  %3439 = vmatprep.mubr.f32.mxu0 0.0
  %3440 = vmatmul.mubr.f32.gmra.mrb[0].mxu0 %v3326
  %v3441 = vpop.f32.mrb[0].mxu0
  %v3442 = vadd.f32 0.0, %v3441
  %v3443 = vpop.f32.mrb[0].mxu0
  %v3444 = vadd.f32 0.0, %v3443
  %3445 = vdwg.mxu0
  %3446 = vmatprep.subr.mxu0 0.0
  %3447 = vmatpush1.msra.mxu0 %v3329
  %3448 = vmatprep.subr.mxu0 0.0
  %3449 = vmatpush1.msra.mxu0 %v3332
  %3450 = vmatprep.subr.mxu0 0.0
  %3451 = vmatpush1.msra.mxu0 %v3335
  %3452 = vmatprep.subr.mxu0 0.0
  %3453 = vmatpush1.msra.mxu0 %v3338
  %3454 = vmatprep.subr.mxu0 0.0
  %3455 = vmatpush1.msra.mxu0 %v3341
  %3456 = vmatprep.subr.mxu0 0.0
  %3457 = vmatpush1.msra.mxu0 %v3344
  %3458 = vmatprep.subr.mxu0 0.0
  %3459 = vmatpush1.msra.mxu0 %v3347
  %3460 = vmatprep.subr.mxu0 0.0
  %3461 = vmatpush1.msra.mxu0 %v3350
  %3462 = vmatprep.subr.mxu0 0.0
  %3463 = vmatpush1.msra.mxu0 %v3353
  %3464 = vmatprep.subr.mxu0 0.0
  %3465 = vmatpush1.msra.mxu0 %v3356
  %3466 = vmatprep.subr.mxu0 0.0
  %3467 = vmatpush1.msra.mxu0 %v3359
  %3468 = vmatprep.subr.mxu0 0.0
  %3469 = vmatpush1.msra.mxu0 %v3362
  %3470 = vmatprep.subr.mxu0 0.0
  %3471 = vmatpush1.msra.mxu0 %v3365
  %3472 = vmatprep.subr.mxu0 0.0
  %3473 = vmatpush1.msra.mxu0 %v3368
  %3474 = vmatprep.subr.mxu0 0.0
  %3475 = vmatpush1.msra.mxu0 %v3371
  %3476 = vmatprep.subr.mxu0 0.0
  %3477 = vmatpush1.msra.mxu0 %v3374
  %3478 = vmatprep.subr.mxu0 0.0
  %3479 = vmatpush1.msra.mxu0 0.0
  %3480 = vmatprep.subr.mxu0 0.0
  %3481 = vmatpush1.msra.mxu0 0.0
  %3482 = vmatprep.subr.mxu0 0.0
  %3483 = vmatpush1.msra.mxu0 0.0
  %3484 = vmatprep.subr.mxu0 0.0
  %3485 = vmatpush1.msra.mxu0 0.0
  %3486 = vmatprep.subr.mxu0 0.0
  %3487 = vmatpush1.msra.mxu0 0.0
  %3488 = vmatprep.subr.mxu0 0.0
  %3489 = vmatpush1.msra.mxu0 0.0
  %3490 = vmatprep.subr.mxu0 0.0
  %3491 = vmatpush1.msra.mxu0 0.0
  %3492 = vmatprep.subr.mxu0 0.0
  %3493 = vmatpush1.msra.mxu0 0.0
  %3494 = vmatprep.subr.mxu0 0.0
  %3495 = vmatpush1.msra.mxu0 0.0
  %3496 = vmatprep.subr.mxu0 0.0
  %3497 = vmatpush1.msra.mxu0 0.0
  %3498 = vmatprep.subr.mxu0 0.0
  %3499 = vmatpush1.msra.mxu0 0.0
  %3500 = vmatprep.subr.mxu0 0.0
  %3501 = vmatpush1.msra.mxu0 0.0
  %3502 = vmatprep.subr.mxu0 0.0
  %3503 = vmatpush1.msra.mxu0 0.0
  %3504 = vmatprep.subr.mxu0 0.0
  %3505 = vmatpush1.msra.mxu0 0.0
  %3506 = vmatprep.subr.mxu0 0.0
  %3507 = vmatpush1.msra.mxu0 0.0
  %3508 = vmatprep.subr.mxu0 0.0
  %3509 = vmatpush1.msra.mxu0 0.0
  %3510 = vmatprep.mubr.f32.mxu0 0.0
  %3511 = vmatmul.mubr.f32.gmra.mrb[0].mxu0 %v3326
  %v3512 = vpop.f32.mrb[0].mxu0
  %v3513 = vadd.f32 0.0, %v3512
  %v3514 = vpop.f32.mrb[0].mxu0
  %3515 = vdwg.mxu0
  %v3516 = vadd.f32 %v2775, %v3442
  %v3517 = vadd.f32 %v2776, %v3444
  %v3518 = vxor.u32 %v3516, 2147483648
  %v3519 = vxor.u32 %v3517, 2147483648
  %v3520 = vmul.f32 %v3518, 1.442695
  %v3521 = vpow.pop %v3520
  %v3522 = vmul.f32 %v3519, 1.442695
  %v3523 = vpow.pop %v3522
  %v3524 = vadd.f32 %v3521, 1.0
  %v3525 = vadd.f32 %v3523, 1.0
  %v3526 = vrcp.pop %v3524
  %v3527 = vmul.f32 1.0, %v3526
  %v3528 = vrcp.pop %v3525
  %v3529 = vmul.f32 1.0, %v3528
  %v3530 = vadd.f32 %v3513, %v3325
  %v3531 = vmul.f32 %v3527, %v3530
  %v3532 = vadd.f32 %v2777, %v3531
  %v3533 = vtanh.pop %v3532
  %v3534 = vsub.f32 1.0, %v3529
  %v3535 = vmul.f32 %v3534, %v3533
  %v3536 = vmul.f32 %v3529, %v3326
  %v3537 = vadd.f32 %v3535, %v3536
  %v3538 = vld [vmem:[%s5] sm:$0xff]
  %v3539 = vld [vmem:[%s5 + $0x8] sm:$0xff]
  %v3540 = vld [vmem:[%s5 + $0x10] sm:$0xff]
  %v3541 = vld [vmem:[%s5 + $0x18] sm:$0xff]
  %v3542 = vld [vmem:[%s5 + $0x20] sm:$0xff]
  %v3543 = vld [vmem:[%s5 + $0x28] sm:$0xff]
  %v3544 = vld [vmem:[%s5 + $0x30] sm:$0xff]
  %v3545 = vld [vmem:[%s5 + $0x38] sm:$0xff]
  %v3546 = vld [vmem:[%s5 + $0x40] sm:$0xff]
  %v3547 = vld [vmem:[%s5 + $0x48] sm:$0xff]
  %v3548 = vld [vmem:[%s5 + $0x50] sm:$0xff]
  %v3549 = vld [vmem:[%s5 + $0x58] sm:$0xff]
  %v3550 = vld [vmem:[%s5 + $0x60] sm:$0xff]
  %v3551 = vld [vmem:[%s5 + $0x68] sm:$0xff]
  %v3552 = vld [vmem:[%s5 + $0x70] sm:$0xff]
  %v3553 = vld [vmem:[%s5 + $0x78] sm:$0xff]
  %v3554 = vld [vmem:[%s5 + $0x80] sm:$0xff]
  %v3555 = vld [vmem:[%s5 + $0x88] sm:$0xff]
  %v3556 = vld [vmem:[%s5 + $0x90] sm:$0xff]
  %v3557 = vld [vmem:[%s5 + $0x98] sm:$0xff]
  %v3558 = vld [vmem:[%s5 + $0xa0] sm:$0xff]
  %v3559 = vld [vmem:[%s5 + $0xa8] sm:$0xff]
  %v3560 = vld [vmem:[%s5 + $0xb0] sm:$0xff]
  %v3561 = vld [vmem:[%s5 + $0xb8] sm:$0xff]
  %v3562 = vld [vmem:[%s5 + $0xc0] sm:$0xff]
  %v3563 = vld [vmem:[%s5 + $0xc8] sm:$0xff]
  %v3564 = vld [vmem:[%s5 + $0xd0] sm:$0xff]
  %v3565 = vld [vmem:[%s5 + $0xd8] sm:$0xff]
  %v3566 = vld [vmem:[%s5 + $0xe0] sm:$0xff]
  %v3567 = vld [vmem:[%s5 + $0xe8] sm:$0xff]
  %v3568 = vld [vmem:[%s5 + $0xf0] sm:$0xff]
  %v3569 = vld [vmem:[%s5 + $0xf8] sm:$0xff]
  %3570 = vmatprep.subr.mxu0 0.0
  %3571 = vmatpush1.msra.mxu0 %v3554
  %3572 = vmatprep.subr.mxu0 0.0
  %3573 = vmatpush1.msra.mxu0 %v3555
  %3574 = vmatprep.subr.mxu0 0.0
  %3575 = vmatpush1.msra.mxu0 %v3556
  %3576 = vmatprep.subr.mxu0 0.0
  %3577 = vmatpush1.msra.mxu0 %v3557
  %3578 = vmatprep.subr.mxu0 0.0
  %3579 = vmatpush1.msra.mxu0 %v3558
  %3580 = vmatprep.subr.mxu0 0.0
  %3581 = vmatpush1.msra.mxu0 %v3559
  %3582 = vmatprep.subr.mxu0 0.0
  %3583 = vmatpush1.msra.mxu0 %v3560
  %3584 = vmatprep.subr.mxu0 0.0
  %3585 = vmatpush1.msra.mxu0 %v3561
  %3586 = vmatprep.subr.mxu0 0.0
  %3587 = vmatpush1.msra.mxu0 %v3562
  %3588 = vmatprep.subr.mxu0 0.0
  %3589 = vmatpush1.msra.mxu0 %v3563
  %3590 = vmatprep.subr.mxu0 0.0
  %3591 = vmatpush1.msra.mxu0 %v3564
  %3592 = vmatprep.subr.mxu0 0.0
  %3593 = vmatpush1.msra.mxu0 %v3565
  %3594 = vmatprep.subr.mxu0 0.0
  %3595 = vmatpush1.msra.mxu0 %v3566
  %3596 = vmatprep.subr.mxu0 0.0
  %3597 = vmatpush1.msra.mxu0 %v3567
  %3598 = vmatprep.subr.mxu0 0.0
  %3599 = vmatpush1.msra.mxu0 %v3568
  %3600 = vmatprep.subr.mxu0 0.0
  %3601 = vmatpush1.msra.mxu0 %v3569
  %3602 = vmatprep.subr.mxu0 0.0
  %3603 = vmatpush1.msra.mxu0 0.0
  %3604 = vmatprep.subr.mxu0 0.0
  %3605 = vmatpush1.msra.mxu0 0.0
  %3606 = vmatprep.subr.mxu0 0.0
  %3607 = vmatpush1.msra.mxu0 0.0
  %3608 = vmatprep.subr.mxu0 0.0
  %3609 = vmatpush1.msra.mxu0 0.0
  %3610 = vmatprep.subr.mxu0 0.0
  %3611 = vmatpush1.msra.mxu0 0.0
  %3612 = vmatprep.subr.mxu0 0.0
  %3613 = vmatpush1.msra.mxu0 0.0
  %3614 = vmatprep.subr.mxu0 0.0
  %3615 = vmatpush1.msra.mxu0 0.0
  %3616 = vmatprep.subr.mxu0 0.0
  %3617 = vmatpush1.msra.mxu0 0.0
  %3618 = vmatprep.subr.mxu0 0.0
  %3619 = vmatpush1.msra.mxu0 0.0
  %3620 = vmatprep.subr.mxu0 0.0
  %3621 = vmatpush1.msra.mxu0 0.0
  %3622 = vmatprep.subr.mxu0 0.0
  %3623 = vmatpush1.msra.mxu0 0.0
  %3624 = vmatprep.subr.mxu0 0.0
  %3625 = vmatpush1.msra.mxu0 0.0
  %3626 = vmatprep.subr.mxu0 0.0
  %3627 = vmatpush1.msra.mxu0 0.0
  %3628 = vmatprep.subr.mxu0 0.0
  %3629 = vmatpush1.msra.mxu0 0.0
  %3630 = vmatprep.subr.mxu0 0.0
  %3631 = vmatpush1.msra.mxu0 0.0
  %3632 = vmatprep.subr.mxu0 0.0
  %3633 = vmatpush1.msra.mxu0 0.0
  %3634 = vmatprep.mubr.f32.mxu0 0.0
  %3635 = vmatmul.mubr.f32.gmra.mrb[0].mxu0 %v3537
  %v3636 = vpop.f32.mrb[0].mxu0
  %v3637 = vadd.f32 0.0, %v3636
  %v3638 = vpop.f32.mrb[0].mxu0
  %3639 = vdwg.mxu0
  %3640 = vmatprep.subr.mxu0 0.0
  %3641 = vmatpush1.msra.mxu0 %v3538
  %3642 = vmatprep.subr.mxu0 0.0
  %3643 = vmatpush1.msra.mxu0 %v3539
  %3644 = vmatprep.subr.mxu0 0.0
  %3645 = vmatpush1.msra.mxu0 %v3540
  %3646 = vmatprep.subr.mxu0 0.0
  %3647 = vmatpush1.msra.mxu0 %v3541
  %3648 = vmatprep.subr.mxu0 0.0
  %3649 = vmatpush1.msra.mxu0 %v3542
  %3650 = vmatprep.subr.mxu0 0.0
  %3651 = vmatpush1.msra.mxu0 %v3543
  %3652 = vmatprep.subr.mxu0 0.0
  %3653 = vmatpush1.msra.mxu0 %v3544
  %3654 = vmatprep.subr.mxu0 0.0
  %3655 = vmatpush1.msra.mxu0 %v3545
  %3656 = vmatprep.subr.mxu0 0.0
  %3657 = vmatpush1.msra.mxu0 %v3546
  %3658 = vmatprep.subr.mxu0 0.0
  %3659 = vmatpush1.msra.mxu0 %v3547
  %3660 = vmatprep.subr.mxu0 0.0
  %3661 = vmatpush1.msra.mxu0 %v3548
  %3662 = vmatprep.subr.mxu0 0.0
  %3663 = vmatpush1.msra.mxu0 %v3549
  %3664 = vmatprep.subr.mxu0 0.0
  %3665 = vmatpush1.msra.mxu0 %v3550
  %3666 = vmatprep.subr.mxu0 0.0
  %3667 = vmatpush1.msra.mxu0 %v3551
  %3668 = vmatprep.subr.mxu0 0.0
  %3669 = vmatpush1.msra.mxu0 %v3552
  %3670 = vmatprep.subr.mxu0 0.0
  %3671 = vmatpush1.msra.mxu0 %v3553
  %3672 = vmatprep.subr.mxu0 0.0
  %3673 = vmatpush1.msra.mxu0 0.0
  %3674 = vmatprep.subr.mxu0 0.0
  %3675 = vmatpush1.msra.mxu0 0.0
  %3676 = vmatprep.subr.mxu0 0.0
  %3677 = vmatpush1.msra.mxu0 0.0
  %3678 = vmatprep.subr.mxu0 0.0
  %3679 = vmatpush1.msra.mxu0 0.0
  %3680 = vmatprep.subr.mxu0 0.0
  %3681 = vmatpush1.msra.mxu0 0.0
  %3682 = vmatprep.subr.mxu0 0.0
  %3683 = vmatpush1.msra.mxu0 0.0
  %3684 = vmatprep.subr.mxu0 0.0
  %3685 = vmatpush1.msra.mxu0 0.0
  %3686 = vmatprep.subr.mxu0 0.0
  %3687 = vmatpush1.msra.mxu0 0.0
  %3688 = vmatprep.subr.mxu0 0.0
  %3689 = vmatpush1.msra.mxu0 0.0
  %3690 = vmatprep.subr.mxu0 0.0
  %3691 = vmatpush1.msra.mxu0 0.0
  %3692 = vmatprep.subr.mxu0 0.0
  %3693 = vmatpush1.msra.mxu0 0.0
  %3694 = vmatprep.subr.mxu0 0.0
  %3695 = vmatpush1.msra.mxu0 0.0
  %3696 = vmatprep.subr.mxu0 0.0
  %3697 = vmatpush1.msra.mxu0 0.0
  %3698 = vmatprep.subr.mxu0 0.0
  %3699 = vmatpush1.msra.mxu0 0.0
  %3700 = vmatprep.subr.mxu0 0.0
  %3701 = vmatpush1.msra.mxu0 0.0
  %3702 = vmatprep.subr.mxu0 0.0
  %3703 = vmatpush1.msra.mxu0 0.0
  %3704 = vmatprep.mubr.f32.mxu0 0.0
  %3705 = vmatmul.mubr.f32.gmra.mrb[0].mxu0 %v3320
  %v3706 = vpop.f32.mrb[0].mxu0
  %v3707 = vadd.f32 %v3637, %v3706
  %v3708 = vpop.f32.mrb[0].mxu0
  %3709 = vdwg.mxu0
  %v3710 = vld [vmem:[%s4 + $0x3] sm:$0x1]
  %v3711 = vlaneseq
  %v3712 = vshrl.u32 %v3711, 7
  %v3713 = vsub.s32 0, %v3712
  %v3714 = vrot.slane %v3710, %v3713
  %v3715 = vadd.f32 %v3707, %v3714
  %vm3716 = vcmask 31744
  %3717 = vst.msk [vmem:[%s6] sm:$0xff] %vm3716, %v3715
  // Predicated region
  $region26: #{word_sent_model_forward.1} parent=0 // pred_check
    _
  $region27: #{word_sent_model_forward.1} parent=0 // pred_check_branch
    %3719 = sbr.rel (0) target = $region29
  $region28: #{word_sent_model_forward.1} parent=0 // pred_region
    _
  $region29: #{word_sent_model_forward.1} parent=0 // pred_fallthru
    _
  // Predicated region
  $region30: #{word_sent_model_forward.1} parent=0 // pred_check
    _
  $region31: #{word_sent_model_forward.1} parent=0 // pred_check_branch
    %3721 = sbr.rel (0) target = $region33
  $region32: #{word_sent_model_forward.1} parent=0 // pred_region
    _
  $region33: #{word_sent_model_forward.1} parent=0 // pred_fallthru
    _

</llo_original>
